<compile_context>
chip_gen: v7x
topology: tpu7x:2x2x1
jax: 0.10.0
libtpu: 0.0.40
codegen_flags: <defaults>
</compile_context>

<pallas_src>
import functools
import math

import jax
import jax.numpy as jnp
import numpy as np
from jax import lax
from jax.experimental import pallas as pl
from jax.experimental.pallas import tpu as pltpu

NUM_HEADS = 4  # fixed by the PyTorch module


def attention_block_kernel(x_ref, w_proj_ref, b_proj_ref, w_out_ref, b_out_ref,
                           o_ref, *, in_channels):
    C = in_channels
    H = NUM_HEADS
    hd = C // H
    N = x_ref.shape[-1]

    x = x_ref[...]                                                      # (C, N)

    # Fused (to_qkv o in_proj) projection, channel-major: (3C, C) @ (C, N).
    proj = jnp.dot(w_proj_ref[...], x,
                   preferred_element_type=jnp.float32) + b_proj_ref[...]  # (3C, N)

    # Head split is a free sublane reshape in channel-major layout.
    q = proj[0 * C:1 * C].reshape(H, hd, N)    # already scaled by 1/sqrt(hd)
    k = proj[1 * C:2 * C].reshape(H, hd, N)
    v = proj[2 * C:3 * C].reshape(H, hd, N)

    # scores[h, n, m] = sum_d q[h, d, n] * k[h, d, m]
    qt = jnp.swapaxes(q, 1, 2)                                          # (H, N, hd)
    s = lax.dot_general(qt, k, (((2,), (1,)), ((0,), (0,))),
                        preferred_element_type=jnp.float32)             # (H, N, N)

    # softmax over keys (lane dim), normalisation via approx reciprocal (EUP).
    s = s - jnp.max(s, axis=-1, keepdims=True)
    p = jnp.exp(s)
    p = p * pl.reciprocal(jnp.sum(p, axis=-1, keepdims=True), approx=True)

    # out[h, d, n] = sum_m v[h, d, m] * p[h, n, m]  (rhs-transposed matmul)
    o_heads = lax.dot_general(v, p, (((2,), (2,)), ((0,), (0,))),
                              preferred_element_type=jnp.float32)       # (H, hd, N)
    attn = o_heads.reshape(C, N)                                        # free merge

    # out_proj, channel-major: (C, C) @ (C, N) -- no weight transpose needed.
    y = jnp.dot(w_out_ref[...], attn,
                preferred_element_type=jnp.float32) + b_out_ref[...]    # (C, N)
    o_ref[...] = y.astype(o_ref.dtype)


def _fuse_params(params, in_channels):
    """Fold to_qkv + mha.in_proj (+ the 1/sqrt(hd) query scale) offline."""
    C = in_channels
    hd = C // NUM_HEADS
    w_qkv, b_qkv, w_in, b_in, w_out, b_out = params
    scale = 1.0 / math.sqrt(hd)

    def fuse(sl, s=1.0):
        w = (w_in[sl] @ w_qkv[sl]) * s
        b = (w_in[sl] @ b_qkv[sl] + b_in[sl]) * s
        return w, b

    wq, bq = fuse(slice(0, C), scale)
    wk, bk = fuse(slice(C, 2 * C))
    wv, bv = fuse(slice(2 * C, 3 * C))
    w_proj = jnp.concatenate([wq, wk, wv], axis=0)                  # (3C, C)
    b_proj = jnp.concatenate([bq, bk, bv], axis=0).reshape(3 * C, 1)
    return w_proj, b_proj, w_out, b_out.reshape(C, 1)


def attention_block(x, params):
    """x: (B, C, s, s) float32 (NCHW, like the PyTorch module)."""
    B, C, s, _ = x.shape
    N = s * s
    x_cm = x.reshape(B, C, N)        # pure reshape: no transpose, no extra HBM pass

    w_proj, b_proj, w_out, b_out = _fuse_params(params, C)

    kernel = functools.partial(attention_block_kernel, in_channels=C)

    out_cm = pl.pallas_call(
        kernel,
        out_shape=jax.ShapeDtypeStruct((B, C, N), x.dtype),
        grid=(B,),
        in_specs=[
            pl.BlockSpec((None, C, N), lambda b: (b, 0, 0)),    # x (batch squeezed)
            pl.BlockSpec((3 * C, C), lambda b: (0, 0)),         # fused projection W
            pl.BlockSpec((3 * C, 1), lambda b: (0, 0)),         # fused projection b
            pl.BlockSpec((C, C), lambda b: (0, 0)),             # out_proj W
            pl.BlockSpec((C, 1), lambda b: (0, 0)),             # out_proj b
        ],
        out_specs=pl.BlockSpec((None, C, N), lambda b: (b, 0, 0)),
        compiler_params=pltpu.CompilerParams(
            dimension_semantics=("parallel",)),
    )(x_cm, w_proj, b_proj, w_out, b_out)

    return out_cm.reshape(B, C, s, s)


def reference_attention_block(x, params):
    """Pure-JAX reference mirroring PyTorch AttentionBlock.forward."""
    w_qkv, b_qkv, w_in, b_in, w_out, b_out = params
    B, C, s, _ = x.shape
    H = NUM_HEADS
    hd = C // H
    N = s * s
    xt = jnp.transpose(x.reshape(B, C, N), (0, 2, 1))                 # (B, N, C)
    qkv = xt @ w_qkv.T + b_qkv                                        # (B, N, 3C)
    q, k, v = qkv[..., :C], qkv[..., C:2 * C], qkv[..., 2 * C:]
    qp = q @ w_in[:C].T + b_in[:C]
    kp = k @ w_in[C:2 * C].T + b_in[C:2 * C]
    vp = v @ w_in[2 * C:].T + b_in[2 * C:]

    def split(t):
        return jnp.transpose(t.reshape(B, N, H, hd), (0, 2, 1, 3))    # (B, H, N, hd)

    qh, kh, vh = split(qp), split(kp), split(vp)
    scores = jnp.einsum("bhnd,bhmd->bhnm", qh, kh) / jnp.sqrt(jnp.float32(hd))
    p = jax.nn.softmax(scores, axis=-1)
    o = jnp.einsum("bhnm,bhmd->bhnd", p, vh)                          # (B, H, N, hd)
    o = jnp.transpose(o, (0, 2, 1, 3)).reshape(B, N, C)
    o = o @ w_out.T + b_out
    return jnp.transpose(o, (0, 2, 1)).reshape(B, C, s, s)


def init_params(key, in_channels):
    C = in_channels
    ks = jax.random.split(key, 6)
    scale = 0.05
    w_qkv = scale * jax.random.normal(ks[0], (3 * C, C), jnp.float32)
    b_qkv = scale * jax.random.normal(ks[1], (3 * C,), jnp.float32)
    w_in = scale * jax.random.normal(ks[2], (3 * C, C), jnp.float32)
    b_in = scale * jax.random.normal(ks[3], (3 * C,), jnp.float32)
    w_out = scale * jax.random.normal(ks[4], (C, C), jnp.float32)
    b_out = scale * jax.random.normal(ks[5], (C,), jnp.float32)
    return (w_qkv, b_qkv, w_in, b_in, w_out, b_out)


if __name__ == "__main__":
    # in_channels divisible by num_heads=4; N = 16*16 = 256 (lane-dense),
    # head_dim = 8 (exactly one sublane tile).
    B, C, s = 2, 32, 16
    key = jax.random.PRNGKey(0)
    k_x, k_p = jax.random.split(key)
    x = jax.random.normal(k_x, (B, C, s, s), jnp.float32)
    params = init_params(k_p, C)

    out = jax.block_until_ready(attention_block(x, params))
    ref = jax.block_until_ready(reference_attention_block(x, params))
    assert out.shape == (B, C, s, s)
    # Slightly relaxed tolerances vs exact division: the softmax denominator
    # uses the EUP approximate reciprocal.
    np.testing.assert_allclose(np.asarray(out), np.asarray(ref),
                               rtol=5e-3, atol=5e-4)
    print("KERNEL_OK")
</pallas_src>

<mosaic_0001>
module attributes {stable_mosaic.version = 11 : i64} {
  func.func @attention_block_kernel(%arg0: i32, %arg1: memref<1x32x256xf32, #tpu.memory_space<vmem>>, %arg2: memref<96x32xf32, #tpu.memory_space<vmem>>, %arg3: memref<96x1xf32, #tpu.memory_space<vmem>>, %arg4: memref<32x32xf32, #tpu.memory_space<vmem>>, %arg5: memref<32x1xf32, #tpu.memory_space<vmem>>, %arg6: memref<1x32x256xf32, #tpu.memory_space<vmem>>) attributes {dimension_semantics = [#tpu.dimension_semantics<parallel>], iteration_bounds = array<i64: 2>, scalar_prefetch = 0 : i64, scratch_operands = 0 : i64, tpu.core_type = #tpu.core_type<tc>, window_params = [{transform_indices = @transform_0, window_bounds = array<i64: 1, 32, 256>}, {pipeline_mode = #tpu.pipeline_mode<synchronous>, transform_indices = @transform_1, window_bounds = array<i64: 96, 32>}, {pipeline_mode = #tpu.pipeline_mode<synchronous>, transform_indices = @transform_2, window_bounds = array<i64: 96, 1>}, {pipeline_mode = #tpu.pipeline_mode<synchronous>, transform_indices = @transform_3, window_bounds = array<i64: 32, 32>}, {pipeline_mode = #tpu.pipeline_mode<synchronous>, transform_indices = @transform_4, window_bounds = array<i64: 32, 1>}, {transform_indices = @transform_5, window_bounds = array<i64: 1, 32, 256>}]} {
    %c0 = arith.constant 0 : index
    %c0_0 = arith.constant 0 : index
    %c0_1 = arith.constant 0 : index
    %0 = vector.load %arg1[%c0, %c0_0, %c0_1] : memref<1x32x256xf32, #tpu.memory_space<vmem>>, vector<1x32x256xf32>
    %1 = vector.shape_cast %0 : vector<1x32x256xf32> to vector<32x256xf32>
    %c0_2 = arith.constant 0 : index
    %c0_3 = arith.constant 0 : index
    %2 = vector.load %arg2[%c0_2, %c0_3] : memref<96x32xf32, #tpu.memory_space<vmem>>, vector<96x32xf32>
    %cst = arith.constant dense<0.000000e+00> : vector<96x256xf32>
    %3 = tpu.matmul %2, %1, %cst {dimension_numbers = #tpu.dot_dimension_numbers<[1], [0], [0], [1], [0, 0, 1, 1], [], []>} : vector<96x32xf32>, vector<32x256xf32>, vector<96x256xf32> -> vector<96x256xf32>
    %c0_4 = arith.constant 0 : index
    %c0_5 = arith.constant 0 : index
    %4 = vector.load %arg3[%c0_4, %c0_5] : memref<96x1xf32, #tpu.memory_space<vmem>>, vector<96x1xf32>
    %5 = vector.broadcast %4 : vector<96x1xf32> to vector<96x256xf32>
    %6 = arith.addf %3, %5 : vector<96x256xf32>
    %7 = vector.extract_strided_slice %6 {offsets = [0, 0], sizes = [32, 256], strides = [1, 1]} : vector<96x256xf32> to vector<32x256xf32>
    %8 = vector.shape_cast %7 : vector<32x256xf32> to vector<4x8x256xf32>
    %9 = vector.extract_strided_slice %6 {offsets = [32, 0], sizes = [32, 256], strides = [1, 1]} : vector<96x256xf32> to vector<32x256xf32>
    %10 = vector.shape_cast %9 : vector<32x256xf32> to vector<4x8x256xf32>
    %11 = vector.extract_strided_slice %6 {offsets = [64, 0], sizes = [32, 256], strides = [1, 1]} : vector<96x256xf32> to vector<32x256xf32>
    %12 = vector.shape_cast %11 : vector<32x256xf32> to vector<4x8x256xf32>
    %13 = tpu.transpose %8, [0, 2, 1] : vector<4x8x256xf32> -> vector<4x256x8xf32>
    %cst_6 = arith.constant dense<0.000000e+00> : vector<4x256x256xf32>
    %14 = tpu.matmul %13, %10, %cst_6 {dimension_numbers = #tpu.dot_dimension_numbers<[2], [1], [1], [2], [0, 0, 0, 1, 1, 2], [0], [0]>} : vector<4x256x8xf32>, vector<4x8x256xf32>, vector<4x256x256xf32> -> vector<4x256x256xf32>
    %cst_7 = arith.constant dense<0xFF800000> : vector<4x256xf32>
    %15 = vector.multi_reduction <maximumf>, %14, %cst_7 [2] : vector<4x256x256xf32> to vector<4x256xf32>
    %16 = vector.shape_cast %15 : vector<4x256xf32> to vector<4x256x1xf32>
    %17 = vector.broadcast %16 : vector<4x256x1xf32> to vector<4x256x256xf32>
    %18 = arith.subf %14, %17 : vector<4x256x256xf32>
    %19 = math.exp %18 : vector<4x256x256xf32>
    %cst_8 = arith.constant dense<0.000000e+00> : vector<4x256xf32>
    %20 = vector.multi_reduction <add>, %19, %cst_8 [2] : vector<4x256x256xf32> to vector<4x256xf32>
    %21 = vector.shape_cast %20 : vector<4x256xf32> to vector<4x256x1xf32>
    %22 = tpu.reciprocal %21 {approx = true} : vector<4x256x1xf32> -> vector<4x256x1xf32>
    %23 = vector.broadcast %22 : vector<4x256x1xf32> to vector<4x256x256xf32>
    %24 = arith.mulf %19, %23 : vector<4x256x256xf32>
    %cst_9 = arith.constant dense<0.000000e+00> : vector<4x8x256xf32>
    %25 = tpu.matmul %12, %24, %cst_9 {dimension_numbers = #tpu.dot_dimension_numbers<[2], [2], [1], [1], [0, 0, 0, 1, 1, 1], [0], [0]>} : vector<4x8x256xf32>, vector<4x256x256xf32>, vector<4x8x256xf32> -> vector<4x8x256xf32>
    %26 = vector.shape_cast %25 : vector<4x8x256xf32> to vector<32x256xf32>
    %c0_10 = arith.constant 0 : index
    %c0_11 = arith.constant 0 : index
    %27 = vector.load %arg4[%c0_10, %c0_11] : memref<32x32xf32, #tpu.memory_space<vmem>>, vector<32x32xf32>
    %cst_12 = arith.constant dense<0.000000e+00> : vector<32x256xf32>
    %28 = tpu.matmul %27, %26, %cst_12 {dimension_numbers = #tpu.dot_dimension_numbers<[1], [0], [0], [1], [0, 0, 1, 1], [], []>} : vector<32x32xf32>, vector<32x256xf32>, vector<32x256xf32> -> vector<32x256xf32>
    %c0_13 = arith.constant 0 : index
    %c0_14 = arith.constant 0 : index
    %29 = vector.load %arg5[%c0_13, %c0_14] : memref<32x1xf32, #tpu.memory_space<vmem>>, vector<32x1xf32>
    %30 = vector.broadcast %29 : vector<32x1xf32> to vector<32x256xf32>
    %31 = arith.addf %28, %30 : vector<32x256xf32>
    %c0_15 = arith.constant 0 : index
    %c0_16 = arith.constant 0 : index
    %c0_17 = arith.constant 0 : index
    %32 = vector.load %arg6[%c0_15, %c0_16, %c0_17] : memref<1x32x256xf32, #tpu.memory_space<vmem>>, vector<1x32x256xf32>
    %33 = vector.shape_cast %32 : vector<1x32x256xf32> to vector<32x256xf32>
    %34 = vector.shape_cast %31 : vector<32x256xf32> to vector<1x32x256xf32>
    tpu.vector_store %arg6[%c0_15, %c0_16, %c0_17], %34 {strides = array<i32>} : memref<1x32x256xf32, #tpu.memory_space<vmem>>, vector<1x32x256xf32>,
    return
  }
  func.func @transform_0(%arg0: i32) -> (i32, i32, i32) {
    %c0_i32 = arith.constant 0 : i32
    %c0_i32_0 = arith.constant 0 : i32
    %c0_i32_1 = arith.constant 0 : i32
    return %arg0, %c0_i32, %c0_i32_0 : i32, i32, i32
  }
  func.func @transform_1(%arg0: i32) -> (i32, i32) {
    %c0_i32 = arith.constant 0 : i32
    %c0_i32_0 = arith.constant 0 : i32
    %c0_i32_1 = arith.constant 0 : i32
    return %c0_i32, %c0_i32_0 : i32, i32
  }
  func.func @transform_2(%arg0: i32) -> (i32, i32) {
    %c0_i32 = arith.constant 0 : i32
    %c0_i32_0 = arith.constant 0 : i32
    %c0_i32_1 = arith.constant 0 : i32
    return %c0_i32, %c0_i32_0 : i32, i32
  }
  func.func @transform_3(%arg0: i32) -> (i32, i32) {
    %c0_i32 = arith.constant 0 : i32
    %c0_i32_0 = arith.constant 0 : i32
    %c0_i32_1 = arith.constant 0 : i32
    return %c0_i32, %c0_i32_0 : i32, i32
  }
  func.func @transform_4(%arg0: i32) -> (i32, i32) {
    %c0_i32 = arith.constant 0 : i32
    %c0_i32_0 = arith.constant 0 : i32
    %c0_i32_1 = arith.constant 0 : i32
    return %c0_i32, %c0_i32_0 : i32, i32
  }
  func.func @transform_5(%arg0: i32) -> (i32, i32, i32) {
    %c0_i32 = arith.constant 0 : i32
    %c0_i32_0 = arith.constant 0 : i32
    %c0_i32_1 = arith.constant 0 : i32
    return %arg0, %c0_i32, %c0_i32_0 : i32, i32, i32
  }
}

</mosaic_0001>

<llo_original>
// kernel: tpu_custom_call.1
$region0: #{tpu_custom_call.1}
  #allocation0 [shape = 'u32[]', space=smem, size = 0x4, offset = 0x4, fixed_abs, tag = 'smem constant byte address 0x4 - core index']
  #allocation1 [shape = 'u32[144,128]{1,0:T(1,128)}', space=vmem, size = 0x12000, scoped, tag = 'internal scratch']
  %s0 = inlined_call_operand.vmem [shape: f32[2,32,256], index: 0, kind: input, shape index: {}]
  %s1 = inlined_call_operand.vmem [shape: f32[96,32], index: 1, kind: input, shape index: {}]
  %s2 = inlined_call_operand.vmem [shape: f32[96,1], index: 2, kind: input, shape index: {}]
  %s3 = inlined_call_operand.vmem [shape: f32[32,32], index: 3, kind: input, shape index: {}]
  %s4 = inlined_call_operand.vmem [shape: f32[32,1], index: 4, kind: input, shape index: {}]
  %s5 = inlined_call_operand.hbm [shape: f32[2,32,256], index: 5, kind: output, shape index: {}]
  %s6 = sld [smem:[#allocation0]]
  $region53: #{tpu_custom_call.1} parent=0
    _
  %s8 = ssub.s32 1, %s6
  %s9 = scalar_select 0, %s8, %s6
  $region1: #{tpu_custom_call.1} parent=0
    #allocation2 [shape = 'u8[65536]{0}', space=vmem, size = 0x10000, scoped, tag = 'output window, operand 0']
    #allocation3 [shape = 's32[2]{0}', space=sflag, size = 0x8, scoped, tag = 'scoped memory for tpu_custom_call.1']
    %10 = vsyncpa [#allocation3], 0
    %s11 = scalar_lea.sflag [#allocation3], 1
    %12 = vsyncpa %s11, 0
    loop: start=0, step=1, limit=4
    $region2: #{tpu_custom_call.1} parent=1 // loop_pre_header
      _
    $region3: #{tpu_custom_call.1} parent=1 // loop_header
      %s14 = sphi 0, %s18
      %p15 = scmp.ge.s32.totalorder %s14, 4
      %s24 = sphi 0, %s26
      %s27 = sphi 0, %s24
      %s28 = sphi 0, %s27
      %s44 = sphi 0, %s28
      %s48 = sphi 0, %s48
      %s50 = sphi 0, %s48
      %s51 = sphi 0, %s50
      %s65 = sphi 0, %s51
      %s69 = sphi 0, %s69
      %s71 = sphi 0, %s69
      %s72 = sphi 0, %s71
      %s86 = sphi 0, %s72
      %s90 = sphi 0, %s90
      %s92 = sphi 0, %s90
      %s93 = sphi 0, %s92
      %s107 = sphi 0, %s93
      %s111 = sphi 0, %s111
      %s113 = sphi 0, %s111
      %s114 = sphi 0, %s113
      %s128 = sphi 0, %s114
      %s134 = sphi 0, %s136
      %s137 = sphi 0, %s134
      %s138 = sphi 0, %s137
      %s154 = sphi 0, %s138
    $region4: #{tpu_custom_call.1} parent=1 // loop_header_branch
      %17 = sbr.rel (%p15) target = $region8
    $region5: #{tpu_custom_call.1} parent=1 // loop_body
      %s19 = ssub.s32 %s14, 1
      %s20 = ssub.s32 %s14, 2
      %s21 = sadd.s32 %s14, 1
      %s22 = ssub.s32 %s14, %s21
      %p23 = scmp.eq.s32.totalorder %s22, 0
      %s25 = sadd.s32 %s24, 1
      %s26 = scalar_select %p23, %s24, %s25
      %p29 = pneg %p23
      %p30 = scmp.eq.s32.totalorder %s14, 1
      %p31 = por %p29, %p30
      %p32 = scmp.ne.s32.totalorder %s24, %s27
      %p33 = scmp.eq.s32.totalorder %s14, 0
      %p34 = por %p32, %p33
      %p35 = scmp.ne.s32.totalorder %s24, %s27
      %p36 = scmp.eq.s32.totalorder %s19, 1
      %p37 = por %p35, %p36
      %p38 = scmp.ne.s32.totalorder %s27, %s28
      %p39 = scmp.eq.s32.totalorder %s19, 0
      %p40 = por %p38, %p39
      %p41 = scmp.ne.s32.totalorder %s27, %s28
      %p42 = scmp.eq.s32.totalorder %s20, 1
      %p43 = por %p41, %p42
      %p45 = scmp.ne.s32.totalorder %s28, %s44
      %p46 = scmp.eq.s32.totalorder %s20, 0
      %p47 = por %p45, %p46
      %s49 = sadd.s32 %s48, 1
      %p52 = scmp.eq.s32.totalorder %s14, 1
      %p53 = scmp.ne.s32.totalorder %s48, %s50
      %p54 = scmp.eq.s32.totalorder %s14, 0
      %p55 = por %p53, %p54
      %p56 = scmp.ne.s32.totalorder %s48, %s50
      %p57 = scmp.eq.s32.totalorder %s19, 1
      %p58 = por %p56, %p57
      %p59 = scmp.ne.s32.totalorder %s50, %s51
      %p60 = scmp.eq.s32.totalorder %s19, 0
      %p61 = por %p59, %p60
      %p62 = scmp.ne.s32.totalorder %s50, %s51
      %p63 = scmp.eq.s32.totalorder %s20, 1
      %p64 = por %p62, %p63
      %p66 = scmp.ne.s32.totalorder %s51, %s65
      %p67 = scmp.eq.s32.totalorder %s20, 0
      %p68 = por %p66, %p67
      %s70 = sadd.s32 %s69, 1
      %p73 = scmp.eq.s32.totalorder %s14, 1
      %p74 = scmp.ne.s32.totalorder %s69, %s71
      %p75 = scmp.eq.s32.totalorder %s14, 0
      %p76 = por %p74, %p75
      %p77 = scmp.ne.s32.totalorder %s69, %s71
      %p78 = scmp.eq.s32.totalorder %s19, 1
      %p79 = por %p77, %p78
      %p80 = scmp.ne.s32.totalorder %s71, %s72
      %p81 = scmp.eq.s32.totalorder %s19, 0
      %p82 = por %p80, %p81
      %p83 = scmp.ne.s32.totalorder %s71, %s72
      %p84 = scmp.eq.s32.totalorder %s20, 1
      %p85 = por %p83, %p84
      %p87 = scmp.ne.s32.totalorder %s72, %s86
      %p88 = scmp.eq.s32.totalorder %s20, 0
      %p89 = por %p87, %p88
      %s91 = sadd.s32 %s90, 1
      %p94 = scmp.eq.s32.totalorder %s14, 1
      %p95 = scmp.ne.s32.totalorder %s90, %s92
      %p96 = scmp.eq.s32.totalorder %s14, 0
      %p97 = por %p95, %p96
      %p98 = scmp.ne.s32.totalorder %s90, %s92
      %p99 = scmp.eq.s32.totalorder %s19, 1
      %p100 = por %p98, %p99
      %p101 = scmp.ne.s32.totalorder %s92, %s93
      %p102 = scmp.eq.s32.totalorder %s19, 0
      %p103 = por %p101, %p102
      %p104 = scmp.ne.s32.totalorder %s92, %s93
      %p105 = scmp.eq.s32.totalorder %s20, 1
      %p106 = por %p104, %p105
      %p108 = scmp.ne.s32.totalorder %s93, %s107
      %p109 = scmp.eq.s32.totalorder %s20, 0
      %p110 = por %p108, %p109
      %s112 = sadd.s32 %s111, 1
      %p115 = scmp.eq.s32.totalorder %s14, 1
      %p116 = scmp.ne.s32.totalorder %s111, %s113
      %p117 = scmp.eq.s32.totalorder %s14, 0
      %p118 = por %p116, %p117
      %p119 = scmp.ne.s32.totalorder %s111, %s113
      %p120 = scmp.eq.s32.totalorder %s19, 1
      %p121 = por %p119, %p120
      %p122 = scmp.ne.s32.totalorder %s113, %s114
      %p123 = scmp.eq.s32.totalorder %s19, 0
      %p124 = por %p122, %p123
      %p125 = scmp.ne.s32.totalorder %s113, %s114
      %p126 = scmp.eq.s32.totalorder %s20, 1
      %p127 = por %p125, %p126
      %p129 = scmp.ne.s32.totalorder %s114, %s128
      %p130 = scmp.eq.s32.totalorder %s20, 0
      %p131 = por %p129, %p130
      %s132 = ssub.s32 %s14, %s21
      %p133 = scmp.eq.s32.totalorder %s132, 0
      %s135 = sadd.s32 %s134, 1
      %s136 = scalar_select %p133, %s134, %s135
      %p139 = pneg %p133
      %p140 = scmp.eq.s32.totalorder %s14, 1
      %p141 = por %p139, %p140
      %p142 = scmp.ne.s32.totalorder %s134, %s137
      %p143 = scmp.eq.s32.totalorder %s14, 0
      %p144 = por %p142, %p143
      %p145 = scmp.ne.s32.totalorder %s134, %s137
      %p146 = scmp.eq.s32.totalorder %s19, 1
      %p147 = por %p145, %p146
      %p148 = scmp.ne.s32.totalorder %s137, %s138
      %p149 = scmp.eq.s32.totalorder %s19, 0
      %p150 = por %p148, %p149
      %p151 = scmp.ne.s32.totalorder %s137, %s138
      %p152 = scmp.eq.s32.totalorder %s20, 1
      %p153 = por %p151, %p152
      %p155 = scmp.ne.s32.totalorder %s138, %s154
      %p156 = scmp.eq.s32.totalorder %s20, 0
      %p157 = por %p155, %p156
      %p158 = scmp.le.s32.totalorder 1, %s14
      %p159 = scmp.lt.s32.totalorder %s14, 3
      %p160 = pnand %p158, %p159
      %p161 = pneg %p160
      // Predicated region
      $region9: #{tpu_custom_call.1} parent=5 // pred_check
        _
      $region10: #{tpu_custom_call.1} parent=5 // pred_check_branch
        %163 = sbr.rel (%p160) target = $region12
      $region11: #{tpu_custom_call.1} parent=5 // pred_region
        %s164 = ssub.s32 %s14, 1
        // Predicated region
        $region13: #{tpu_custom_call.1} parent=11 // pred_check
          %p165 = pneg %p61
        $region14: #{tpu_custom_call.1} parent=11 // pred_check_branch
          %167 = sbr.rel (%p165) target = $region16
        $region15: #{tpu_custom_call.1} parent=11 // pred_region
          _
        $region16: #{tpu_custom_call.1} parent=11 // pred_fallthru
          _
        // Predicated region
        $region17: #{tpu_custom_call.1} parent=11 // pred_check
          %p168 = pneg %p82
        $region18: #{tpu_custom_call.1} parent=11 // pred_check_branch
          %170 = sbr.rel (%p168) target = $region20
        $region19: #{tpu_custom_call.1} parent=11 // pred_region
          _
        $region20: #{tpu_custom_call.1} parent=11 // pred_fallthru
          _
        // Predicated region
        $region21: #{tpu_custom_call.1} parent=11 // pred_check
          %p171 = pneg %p103
        $region22: #{tpu_custom_call.1} parent=11 // pred_check_branch
          %173 = sbr.rel (%p171) target = $region24
        $region23: #{tpu_custom_call.1} parent=11 // pred_region
          _
        $region24: #{tpu_custom_call.1} parent=11 // pred_fallthru
          _
        // Predicated region
        $region25: #{tpu_custom_call.1} parent=11 // pred_check
          %p174 = pneg %p124
        $region26: #{tpu_custom_call.1} parent=11 // pred_check_branch
          %176 = sbr.rel (%p174) target = $region28
        $region27: #{tpu_custom_call.1} parent=11 // pred_region
          _
        $region28: #{tpu_custom_call.1} parent=11 // pred_fallthru
          _
      $region12: #{tpu_custom_call.1} parent=5 // pred_fallthru
        _
      %p177 = scmp.lt.s32.totalorder %s14, 2
      // Predicated region
      $region29: #{tpu_custom_call.1} parent=5 // pred_check
        %p178 = pneg %p177
      $region30: #{tpu_custom_call.1} parent=5 // pred_check_branch
        %180 = sbr.rel (%p178) target = $region32
      $region31: #{tpu_custom_call.1} parent=5 // pred_region
        // Predicated region
        $region33: #{tpu_custom_call.1} parent=31 // pred_check
          %p181 = pneg %p34
        $region34: #{tpu_custom_call.1} parent=31 // pred_check_branch
          %183 = sbr.rel (%p181) target = $region36
        $region35: #{tpu_custom_call.1} parent=31 // pred_region
          %p184 = scmp.lt.s32.totalorder %s14, 1
          %s185 = scalar_select %p184, %s14, 1
          %s186 = smul.addr %s185, 8
          %s187 = smul.addr %s186, 8
          %s188 = scalar_lea.vmem %s0, %s187
        $region36: #{tpu_custom_call.1} parent=31 // pred_fallthru
          _
      $region32: #{tpu_custom_call.1} parent=5 // pred_fallthru
        _
      %p189 = scmp.le.s32.totalorder 1, %s14
      %p190 = scmp.lt.s32.totalorder %s14, 3
      %p191 = pnand %p189, %p190
      %p192 = pneg %p191
      // Predicated region
      $region37: #{tpu_custom_call.1} parent=5 // pred_check
        _
      $region38: #{tpu_custom_call.1} parent=5 // pred_check_branch
        %194 = sbr.rel (%p191) target = $region40
      $region39: #{tpu_custom_call.1} parent=5 // pred_region
        %s195 = ssub.s32 %s14, 1
        %p196 = scmp.lt.s32.totalorder %s19, 1
        %s197 = scalar_select %p196, %s19, 1
        %s198 = smul.addr %s197, 8
        %s199 = smul.addr %s198, 8
        %s200 = scalar_lea.vmem %s0, %s199
        %p201 = pneg %p40
        %p202 = pneg %p37
        %p203 = pneg %p61
        %p204 = pneg %p58
        %p205 = pneg %p82
        %p206 = pneg %p79
        %p207 = pneg %p103
        %p208 = pneg %p100
        %p209 = pneg %p124
        %p210 = pneg %p121
        %p211 = pneg %p150
        %p212 = pneg %p147
        %s213 = sand.u32 %s137, 1
        %s214 = scalar_lea.sflag [#allocation3], %s213
        %s215 = sand.u32 %s137, 1
        %s216 = smul.addr %s215, 64
        %s217 = scalar_lea.vmem [#allocation2], %s216
        %p218 = scmp.lt.s32.totalorder %s19, 1
        %s219 = scalar_select %p218, %s19, 1
        %s220 = smul.addr %s219, 8
        %s221 = smul.addr %s220, 8
        %s222 = scalar_lea.vmem %s0, %s221
        %v223 = vld [vmem:[%s222] sm:$0xff]
        %v224 = vld [vmem:[%s222 + $0x8] sm:$0xff]
        %v225 = vld [vmem:[%s222 + $0x10] sm:$0xff]
        %v226 = vld [vmem:[%s222 + $0x18] sm:$0xff]
        %v227 = vld [vmem:[%s222 + $0x20] sm:$0xff]
        %v228 = vld [vmem:[%s222 + $0x28] sm:$0xff]
        %v229 = vld [vmem:[%s222 + $0x30] sm:$0xff]
        %v230 = vld [vmem:[%s222 + $0x38] sm:$0xff]
        %v231 = vld [vmem:[%s1] sm:$0xff]
        %v232 = vld [vmem:[%s1 + $0x8] sm:$0xff]
        %v233 = vld [vmem:[%s1 + $0x10] sm:$0xff]
        %v234 = vld [vmem:[%s1 + $0x18] sm:$0xff]
        %v235 = vld [vmem:[%s1 + $0x20] sm:$0xff]
        %v236 = vld [vmem:[%s1 + $0x28] sm:$0xff]
        %v237 = vld [vmem:[%s1 + $0x30] sm:$0xff]
        %v238 = vld [vmem:[%s1 + $0x38] sm:$0xff]
        %v239 = vld [vmem:[%s1 + $0x40] sm:$0xff]
        %v240 = vld [vmem:[%s1 + $0x48] sm:$0xff]
        %v241 = vld [vmem:[%s1 + $0x50] sm:$0xff]
        %v242 = vld [vmem:[%s1 + $0x58] sm:$0xff]
        %v243 = vld [vmem:[%s2] sm:$0xff]
        %v244 = vld [vmem:[%s2 + $0x8] sm:$0xff]
        %v245 = vld [vmem:[%s2 + $0x10] sm:$0xff]
        %v246 = vld [vmem:[%s2 + $0x18] sm:$0xff]
        %v247 = vld [vmem:[%s2 + $0x20] sm:$0xff]
        %v248 = vld [vmem:[%s2 + $0x28] sm:$0xff]
        %v249 = vld [vmem:[%s2 + $0x30] sm:$0xff]
        %v250 = vld [vmem:[%s2 + $0x38] sm:$0xff]
        %v251 = vld [vmem:[%s2 + $0x40] sm:$0xff]
        %v252 = vld [vmem:[%s2 + $0x48] sm:$0xff]
        %v253 = vld [vmem:[%s2 + $0x50] sm:$0xff]
        %v254 = vld [vmem:[%s2 + $0x58] sm:$0xff]
        %256 = vset.pattern.permute.xlu0 0
        %257 = vperm.xlu0 %256, %v243
        %v258 = vpop.permute.xlu0 %257
        %261 = vset.pattern.permute.xlu0 0
        %262 = vperm.xlu0 %261, %v244
        %v263 = vpop.permute.xlu0 %262
        %266 = vset.pattern.permute.xlu0 0
        %267 = vperm.xlu0 %266, %v245
        %v268 = vpop.permute.xlu0 %267
        %271 = vset.pattern.permute.xlu0 0
        %272 = vperm.xlu0 %271, %v246
        %v273 = vpop.permute.xlu0 %272
        %276 = vset.pattern.permute.xlu0 0
        %277 = vperm.xlu0 %276, %v247
        %v278 = vpop.permute.xlu0 %277
        %281 = vset.pattern.permute.xlu0 0
        %282 = vperm.xlu0 %281, %v248
        %v283 = vpop.permute.xlu0 %282
        %286 = vset.pattern.permute.xlu0 0
        %287 = vperm.xlu0 %286, %v249
        %v288 = vpop.permute.xlu0 %287
        %291 = vset.pattern.permute.xlu0 0
        %292 = vperm.xlu0 %291, %v250
        %v293 = vpop.permute.xlu0 %292
        %296 = vset.pattern.permute.xlu0 0
        %297 = vperm.xlu0 %296, %v251
        %v298 = vpop.permute.xlu0 %297
        %301 = vset.pattern.permute.xlu0 0
        %302 = vperm.xlu0 %301, %v252
        %v303 = vpop.permute.xlu0 %302
        %306 = vset.pattern.permute.xlu0 0
        %307 = vperm.xlu0 %306, %v253
        %v308 = vpop.permute.xlu0 %307
        %311 = vset.pattern.permute.xlu0 0
        %312 = vperm.xlu0 %311, %v254
        %v313 = vpop.permute.xlu0 %312
        %vm315 = vcmask 261120
        %v317 = vsel %vm315, %v231, 0
        %v320 = vsel %vm315, %v232, 0
        %v323 = vsel %vm315, %v233, 0
        %v326 = vsel %vm315, %v234, 0
        %v329 = vsel %vm315, %v235, 0
        %v332 = vsel %vm315, %v236, 0
        %v335 = vsel %vm315, %v237, 0
        %v338 = vsel %vm315, %v238, 0
        %v341 = vsel %vm315, %v239, 0
        %v344 = vsel %vm315, %v240, 0
        %v347 = vsel %vm315, %v241, 0
        %v350 = vsel %vm315, %v242, 0
        %352 = vmatprep.subr.mxu0 %v224
        %353 = vmatpush1.msra.mxu0 %v223
        %354 = vmatprep.subr.mxu0 %v226
        %355 = vmatpush1.msra.mxu0 %v225
        %356 = vmatprep.subr.mxu0 %v228
        %357 = vmatpush1.msra.mxu0 %v227
        %358 = vmatprep.subr.mxu0 %v230
        %359 = vmatpush1.msra.mxu0 %v229
        %360 = vmatprep.subr.mxu0 0.0
        %361 = vmatpush1.msra.mxu0 0.0
        %362 = vmatprep.subr.mxu0 0.0
        %363 = vmatpush1.msra.mxu0 0.0
        %364 = vmatprep.subr.mxu0 0.0
        %365 = vmatpush1.msra.mxu0 0.0
        %366 = vmatprep.subr.mxu0 0.0
        %367 = vmatpush1.msra.mxu0 0.0
        %368 = vmatprep.subr.mxu0 0.0
        %369 = vmatpush1.msra.mxu0 0.0
        %370 = vmatprep.subr.mxu0 0.0
        %371 = vmatpush1.msra.mxu0 0.0
        %372 = vmatprep.subr.mxu0 0.0
        %373 = vmatpush1.msra.mxu0 0.0
        %374 = vmatprep.subr.mxu0 0.0
        %375 = vmatpush1.msra.mxu0 0.0
        %376 = vmatprep.subr.mxu0 0.0
        %377 = vmatpush1.msra.mxu0 0.0
        %378 = vmatprep.subr.mxu0 0.0
        %379 = vmatpush1.msra.mxu0 0.0
        %380 = vmatprep.subr.mxu0 0.0
        %381 = vmatpush1.msra.mxu0 0.0
        %382 = vmatprep.subr.mxu0 0.0
        %383 = vmatpush1.msra.mxu0 0.0
        %384 = vmatprep.subr.mxu0 0.0
        %385 = vmatpush1.msra.mxu0 0.0
        %386 = vmatprep.subr.mxu0 0.0
        %387 = vmatpush1.msra.mxu0 0.0
        %388 = vmatprep.subr.mxu0 0.0
        %389 = vmatpush1.msra.mxu0 0.0
        %390 = vmatprep.subr.mxu0 0.0
        %391 = vmatpush1.msra.mxu0 0.0
        %392 = vmatprep.subr.mxu0 0.0
        %393 = vmatpush1.msra.mxu0 0.0
        %394 = vmatprep.subr.mxu0 0.0
        %395 = vmatpush1.msra.mxu0 0.0
        %396 = vmatprep.subr.mxu0 0.0
        %397 = vmatpush1.msra.mxu0 0.0
        %398 = vmatprep.subr.mxu0 0.0
        %399 = vmatpush1.msra.mxu0 0.0
        %400 = vmatprep.subr.mxu0 0.0
        %401 = vmatpush1.msra.mxu0 0.0
        %402 = vmatprep.subr.mxu0 0.0
        %403 = vmatpush1.msra.mxu0 0.0
        %404 = vmatprep.subr.mxu0 0.0
        %405 = vmatpush1.msra.mxu0 0.0
        %406 = vmatprep.subr.mxu0 0.0
        %407 = vmatpush1.msra.mxu0 0.0
        %408 = vmatprep.subr.mxu0 0.0
        %409 = vmatpush1.msra.mxu0 0.0
        %410 = vmatprep.subr.mxu0 0.0
        %411 = vmatpush1.msra.mxu0 0.0
        %412 = vmatprep.subr.mxu0 0.0
        %413 = vmatpush1.msra.mxu0 0.0
        %414 = vmatprep.subr.mxu0 0.0
        %415 = vmatpush1.msra.mxu0 0.0
        %416 = vmatprep.mubr.f32.mxu0 0.0
        %417 = vmatmul.mubr.f32.gmra.mrb[0].mxu0 %v317
        %v418 = vpop.f32.mrb[0].mxu0
        %v419 = vadd.f32 %v258, %v418
        %v420 = vpop.f32.mrb[0].mxu0
        %v421 = vadd.f32 %v258, %v420
        %422 = vmatprep.mubr.f32.mxu0 0.0
        %423 = vmatmul.mubr.f32.gmra.mrb[0].mxu0 %v320
        %v424 = vpop.f32.mrb[0].mxu0
        %v425 = vadd.f32 %v263, %v424
        %v426 = vpop.f32.mrb[0].mxu0
        %v427 = vadd.f32 %v263, %v426
        %428 = vmatprep.mubr.f32.mxu0 0.0
        %429 = vmatmul.mubr.f32.gmra.mrb[0].mxu0 %v323
        %v430 = vpop.f32.mrb[0].mxu0
        %v431 = vadd.f32 %v268, %v430
        %v432 = vpop.f32.mrb[0].mxu0
        %v433 = vadd.f32 %v268, %v432
        %434 = vmatprep.mubr.f32.mxu0 0.0
        %435 = vmatmul.mubr.f32.gmra.mrb[0].mxu0 %v326
        %v436 = vpop.f32.mrb[0].mxu0
        %v437 = vadd.f32 %v273, %v436
        %v438 = vpop.f32.mrb[0].mxu0
        %v439 = vadd.f32 %v273, %v438
        %440 = vmatprep.mubr.f32.mxu0 0.0
        %441 = vmatmul.mubr.f32.gmra.mrb[0].mxu0 %v329
        %v442 = vpop.f32.mrb[0].mxu0
        %v443 = vadd.f32 %v278, %v442
        %v444 = vpop.f32.mrb[0].mxu0
        %v445 = vadd.f32 %v278, %v444
        %446 = vmatprep.mubr.f32.mxu0 0.0
        %447 = vmatmul.mubr.f32.gmra.mrb[0].mxu0 %v332
        %v448 = vpop.f32.mrb[0].mxu0
        %v449 = vadd.f32 %v283, %v448
        %v450 = vpop.f32.mrb[0].mxu0
        %v451 = vadd.f32 %v283, %v450
        %452 = vmatprep.mubr.f32.mxu0 0.0
        %453 = vmatmul.mubr.f32.gmra.mrb[0].mxu0 %v335
        %v454 = vpop.f32.mrb[0].mxu0
        %v455 = vadd.f32 %v288, %v454
        %v456 = vpop.f32.mrb[0].mxu0
        %v457 = vadd.f32 %v288, %v456
        %458 = vmatprep.mubr.f32.mxu0 0.0
        %459 = vmatmul.mubr.f32.gmra.mrb[0].mxu0 %v338
        %v460 = vpop.f32.mrb[0].mxu0
        %v461 = vadd.f32 %v293, %v460
        %v462 = vpop.f32.mrb[0].mxu0
        %v463 = vadd.f32 %v293, %v462
        %464 = vmatprep.mubr.f32.mxu0 0.0
        %465 = vmatmul.mubr.f32.gmra.mrb[0].mxu0 %v341
        %v466 = vpop.f32.mrb[0].mxu0
        %v467 = vadd.f32 %v298, %v466
        %v468 = vpop.f32.mrb[0].mxu0
        %v469 = vadd.f32 %v298, %v468
        %470 = vmatprep.mubr.f32.mxu0 0.0
        %471 = vmatmul.mubr.f32.gmra.mrb[0].mxu0 %v344
        %v472 = vpop.f32.mrb[0].mxu0
        %v473 = vadd.f32 %v303, %v472
        %v474 = vpop.f32.mrb[0].mxu0
        %v475 = vadd.f32 %v303, %v474
        %476 = vmatprep.mubr.f32.mxu0 0.0
        %477 = vmatmul.mubr.f32.gmra.mrb[0].mxu0 %v347
        %v478 = vpop.f32.mrb[0].mxu0
        %v479 = vadd.f32 %v308, %v478
        %v480 = vpop.f32.mrb[0].mxu0
        %v481 = vadd.f32 %v308, %v480
        %482 = vmatprep.mubr.f32.mxu0 0.0
        %483 = vmatmul.mubr.f32.gmra.mrb[0].mxu0 %v350
        %v484 = vpop.f32.mrb[0].mxu0
        %v485 = vadd.f32 %v313, %v484
        %v486 = vpop.f32.mrb[0].mxu0
        %v487 = vadd.f32 %v313, %v486
        %488 = vdwg.mxu0
        %489 = vxpose.xlu0.b32.start [1/16] %v419, 128
        %490 = vxpose.xlu0.b32.cont [2/16] 0.0, 128
        %491 = vxpose.xlu0.b32.cont [3/16] 0.0, 128
        %492 = vxpose.xlu0.b32.cont [4/16] 0.0, 128
        %493 = vxpose.xlu0.b32.cont [5/16] 0.0, 128
        %494 = vxpose.xlu0.b32.cont [6/16] 0.0, 128
        %495 = vxpose.xlu0.b32.cont [7/16] 0.0, 128
        %496 = vxpose.xlu0.b32.cont [8/16] 0.0, 128
        %497 = vxpose.xlu0.b32.cont [9/16] 0.0, 128
        %498 = vxpose.xlu0.b32.cont [10/16] 0.0, 128
        %499 = vxpose.xlu0.b32.cont [11/16] 0.0, 128
        %500 = vxpose.xlu0.b32.cont [12/16] 0.0, 128
        %501 = vxpose.xlu0.b32.cont [13/16] 0.0, 128
        %502 = vxpose.xlu0.b32.cont [14/16] 0.0, 128
        %503 = vxpose.xlu0.b32.cont [15/16] 0.0, 128
        %504 = vxpose.xlu0.b32.end [16/16] 0.0, 128
        %v505 = vpop.trf.xlu0
        %v506 = vpop.trf.xlu0
        %v507 = vpop.trf.xlu0
        %v508 = vpop.trf.xlu0
        %v509 = vpop.trf.xlu0
        %v510 = vpop.trf.xlu0
        %v511 = vpop.trf.xlu0
        %v512 = vpop.trf.xlu0
        %v513 = vpop.trf.xlu0
        %v514 = vpop.trf.xlu0
        %v515 = vpop.trf.xlu0
        %v516 = vpop.trf.xlu0
        %v517 = vpop.trf.xlu0
        %v518 = vpop.trf.xlu0
        %v519 = vpop.trf.xlu0
        %v520 = vpop.trf.xlu0
        %521 = vxpose.xlu0.b32.start [1/16] %v421, 128
        %522 = vxpose.xlu0.b32.cont [2/16] 0.0, 128
        %523 = vxpose.xlu0.b32.cont [3/16] 0.0, 128
        %524 = vxpose.xlu0.b32.cont [4/16] 0.0, 128
        %525 = vxpose.xlu0.b32.cont [5/16] 0.0, 128
        %526 = vxpose.xlu0.b32.cont [6/16] 0.0, 128
        %527 = vxpose.xlu0.b32.cont [7/16] 0.0, 128
        %528 = vxpose.xlu0.b32.cont [8/16] 0.0, 128
        %529 = vxpose.xlu0.b32.cont [9/16] 0.0, 128
        %530 = vxpose.xlu0.b32.cont [10/16] 0.0, 128
        %531 = vxpose.xlu0.b32.cont [11/16] 0.0, 128
        %532 = vxpose.xlu0.b32.cont [12/16] 0.0, 128
        %533 = vxpose.xlu0.b32.cont [13/16] 0.0, 128
        %534 = vxpose.xlu0.b32.cont [14/16] 0.0, 128
        %535 = vxpose.xlu0.b32.cont [15/16] 0.0, 128
        %536 = vxpose.xlu0.b32.end [16/16] 0.0, 128
        %v537 = vpop.trf.xlu0
        %v538 = vpop.trf.xlu0
        %v539 = vpop.trf.xlu0
        %v540 = vpop.trf.xlu0
        %v541 = vpop.trf.xlu0
        %v542 = vpop.trf.xlu0
        %v543 = vpop.trf.xlu0
        %v544 = vpop.trf.xlu0
        %v545 = vpop.trf.xlu0
        %v546 = vpop.trf.xlu0
        %v547 = vpop.trf.xlu0
        %v548 = vpop.trf.xlu0
        %v549 = vpop.trf.xlu0
        %v550 = vpop.trf.xlu0
        %v551 = vpop.trf.xlu0
        %v552 = vpop.trf.xlu0
        %553 = vxpose.xlu0.b32.start [1/16] %v425, 128
        %554 = vxpose.xlu0.b32.cont [2/16] 0.0, 128
        %555 = vxpose.xlu0.b32.cont [3/16] 0.0, 128
        %556 = vxpose.xlu0.b32.cont [4/16] 0.0, 128
        %557 = vxpose.xlu0.b32.cont [5/16] 0.0, 128
        %558 = vxpose.xlu0.b32.cont [6/16] 0.0, 128
        %559 = vxpose.xlu0.b32.cont [7/16] 0.0, 128
        %560 = vxpose.xlu0.b32.cont [8/16] 0.0, 128
        %561 = vxpose.xlu0.b32.cont [9/16] 0.0, 128
        %562 = vxpose.xlu0.b32.cont [10/16] 0.0, 128
        %563 = vxpose.xlu0.b32.cont [11/16] 0.0, 128
        %564 = vxpose.xlu0.b32.cont [12/16] 0.0, 128
        %565 = vxpose.xlu0.b32.cont [13/16] 0.0, 128
        %566 = vxpose.xlu0.b32.cont [14/16] 0.0, 128
        %567 = vxpose.xlu0.b32.cont [15/16] 0.0, 128
        %568 = vxpose.xlu0.b32.end [16/16] 0.0, 128
        %v569 = vpop.trf.xlu0
        %v570 = vpop.trf.xlu0
        %v571 = vpop.trf.xlu0
        %v572 = vpop.trf.xlu0
        %v573 = vpop.trf.xlu0
        %v574 = vpop.trf.xlu0
        %v575 = vpop.trf.xlu0
        %v576 = vpop.trf.xlu0
        %v577 = vpop.trf.xlu0
        %v578 = vpop.trf.xlu0
        %v579 = vpop.trf.xlu0
        %v580 = vpop.trf.xlu0
        %v581 = vpop.trf.xlu0
        %v582 = vpop.trf.xlu0
        %v583 = vpop.trf.xlu0
        %v584 = vpop.trf.xlu0
        %585 = vxpose.xlu0.b32.start [1/16] %v427, 128
        %586 = vxpose.xlu0.b32.cont [2/16] 0.0, 128
        %587 = vxpose.xlu0.b32.cont [3/16] 0.0, 128
        %588 = vxpose.xlu0.b32.cont [4/16] 0.0, 128
        %589 = vxpose.xlu0.b32.cont [5/16] 0.0, 128
        %590 = vxpose.xlu0.b32.cont [6/16] 0.0, 128
        %591 = vxpose.xlu0.b32.cont [7/16] 0.0, 128
        %592 = vxpose.xlu0.b32.cont [8/16] 0.0, 128
        %593 = vxpose.xlu0.b32.cont [9/16] 0.0, 128
        %594 = vxpose.xlu0.b32.cont [10/16] 0.0, 128
        %595 = vxpose.xlu0.b32.cont [11/16] 0.0, 128
        %596 = vxpose.xlu0.b32.cont [12/16] 0.0, 128
        %597 = vxpose.xlu0.b32.cont [13/16] 0.0, 128
        %598 = vxpose.xlu0.b32.cont [14/16] 0.0, 128
        %599 = vxpose.xlu0.b32.cont [15/16] 0.0, 128
        %600 = vxpose.xlu0.b32.end [16/16] 0.0, 128
        %v601 = vpop.trf.xlu0
        %v602 = vpop.trf.xlu0
        %v603 = vpop.trf.xlu0
        %v604 = vpop.trf.xlu0
        %v605 = vpop.trf.xlu0
        %v606 = vpop.trf.xlu0
        %v607 = vpop.trf.xlu0
        %v608 = vpop.trf.xlu0
        %v609 = vpop.trf.xlu0
        %v610 = vpop.trf.xlu0
        %v611 = vpop.trf.xlu0
        %v612 = vpop.trf.xlu0
        %v613 = vpop.trf.xlu0
        %v614 = vpop.trf.xlu0
        %v615 = vpop.trf.xlu0
        %v616 = vpop.trf.xlu0
        %617 = vxpose.xlu0.b32.start [1/16] %v431, 128
        %618 = vxpose.xlu0.b32.cont [2/16] 0.0, 128
        %619 = vxpose.xlu0.b32.cont [3/16] 0.0, 128
        %620 = vxpose.xlu0.b32.cont [4/16] 0.0, 128
        %621 = vxpose.xlu0.b32.cont [5/16] 0.0, 128
        %622 = vxpose.xlu0.b32.cont [6/16] 0.0, 128
        %623 = vxpose.xlu0.b32.cont [7/16] 0.0, 128
        %624 = vxpose.xlu0.b32.cont [8/16] 0.0, 128
        %625 = vxpose.xlu0.b32.cont [9/16] 0.0, 128
        %626 = vxpose.xlu0.b32.cont [10/16] 0.0, 128
        %627 = vxpose.xlu0.b32.cont [11/16] 0.0, 128
        %628 = vxpose.xlu0.b32.cont [12/16] 0.0, 128
        %629 = vxpose.xlu0.b32.cont [13/16] 0.0, 128
        %630 = vxpose.xlu0.b32.cont [14/16] 0.0, 128
        %631 = vxpose.xlu0.b32.cont [15/16] 0.0, 128
        %632 = vxpose.xlu0.b32.end [16/16] 0.0, 128
        %v633 = vpop.trf.xlu0
        %v634 = vpop.trf.xlu0
        %v635 = vpop.trf.xlu0
        %v636 = vpop.trf.xlu0
        %v637 = vpop.trf.xlu0
        %v638 = vpop.trf.xlu0
        %v639 = vpop.trf.xlu0
        %v640 = vpop.trf.xlu0
        %v641 = vpop.trf.xlu0
        %v642 = vpop.trf.xlu0
        %v643 = vpop.trf.xlu0
        %v644 = vpop.trf.xlu0
        %v645 = vpop.trf.xlu0
        %v646 = vpop.trf.xlu0
        %v647 = vpop.trf.xlu0
        %v648 = vpop.trf.xlu0
        %649 = vxpose.xlu0.b32.start [1/16] %v433, 128
        %650 = vxpose.xlu0.b32.cont [2/16] 0.0, 128
        %651 = vxpose.xlu0.b32.cont [3/16] 0.0, 128
        %652 = vxpose.xlu0.b32.cont [4/16] 0.0, 128
        %653 = vxpose.xlu0.b32.cont [5/16] 0.0, 128
        %654 = vxpose.xlu0.b32.cont [6/16] 0.0, 128
        %655 = vxpose.xlu0.b32.cont [7/16] 0.0, 128
        %656 = vxpose.xlu0.b32.cont [8/16] 0.0, 128
        %657 = vxpose.xlu0.b32.cont [9/16] 0.0, 128
        %658 = vxpose.xlu0.b32.cont [10/16] 0.0, 128
        %659 = vxpose.xlu0.b32.cont [11/16] 0.0, 128
        %660 = vxpose.xlu0.b32.cont [12/16] 0.0, 128
        %661 = vxpose.xlu0.b32.cont [13/16] 0.0, 128
        %662 = vxpose.xlu0.b32.cont [14/16] 0.0, 128
        %663 = vxpose.xlu0.b32.cont [15/16] 0.0, 128
        %664 = vxpose.xlu0.b32.end [16/16] 0.0, 128
        %v665 = vpop.trf.xlu0
        %v666 = vpop.trf.xlu0
        %v667 = vpop.trf.xlu0
        %v668 = vpop.trf.xlu0
        %v669 = vpop.trf.xlu0
        %v670 = vpop.trf.xlu0
        %v671 = vpop.trf.xlu0
        %v672 = vpop.trf.xlu0
        %v673 = vpop.trf.xlu0
        %v674 = vpop.trf.xlu0
        %v675 = vpop.trf.xlu0
        %v676 = vpop.trf.xlu0
        %v677 = vpop.trf.xlu0
        %v678 = vpop.trf.xlu0
        %v679 = vpop.trf.xlu0
        %v680 = vpop.trf.xlu0
        %681 = vxpose.xlu0.b32.start [1/16] %v437, 128
        %682 = vxpose.xlu0.b32.cont [2/16] 0.0, 128
        %683 = vxpose.xlu0.b32.cont [3/16] 0.0, 128
        %684 = vxpose.xlu0.b32.cont [4/16] 0.0, 128
        %685 = vxpose.xlu0.b32.cont [5/16] 0.0, 128
        %686 = vxpose.xlu0.b32.cont [6/16] 0.0, 128
        %687 = vxpose.xlu0.b32.cont [7/16] 0.0, 128
        %688 = vxpose.xlu0.b32.cont [8/16] 0.0, 128
        %689 = vxpose.xlu0.b32.cont [9/16] 0.0, 128
        %690 = vxpose.xlu0.b32.cont [10/16] 0.0, 128
        %691 = vxpose.xlu0.b32.cont [11/16] 0.0, 128
        %692 = vxpose.xlu0.b32.cont [12/16] 0.0, 128
        %693 = vxpose.xlu0.b32.cont [13/16] 0.0, 128
        %694 = vxpose.xlu0.b32.cont [14/16] 0.0, 128
        %695 = vxpose.xlu0.b32.cont [15/16] 0.0, 128
        %696 = vxpose.xlu0.b32.end [16/16] 0.0, 128
        %v697 = vpop.trf.xlu0
        %v698 = vpop.trf.xlu0
        %v699 = vpop.trf.xlu0
        %v700 = vpop.trf.xlu0
        %v701 = vpop.trf.xlu0
        %v702 = vpop.trf.xlu0
        %v703 = vpop.trf.xlu0
        %v704 = vpop.trf.xlu0
        %v705 = vpop.trf.xlu0
        %v706 = vpop.trf.xlu0
        %v707 = vpop.trf.xlu0
        %v708 = vpop.trf.xlu0
        %v709 = vpop.trf.xlu0
        %v710 = vpop.trf.xlu0
        %v711 = vpop.trf.xlu0
        %v712 = vpop.trf.xlu0
        %713 = vxpose.xlu0.b32.start [1/16] %v439, 128
        %714 = vxpose.xlu0.b32.cont [2/16] 0.0, 128
        %715 = vxpose.xlu0.b32.cont [3/16] 0.0, 128
        %716 = vxpose.xlu0.b32.cont [4/16] 0.0, 128
        %717 = vxpose.xlu0.b32.cont [5/16] 0.0, 128
        %718 = vxpose.xlu0.b32.cont [6/16] 0.0, 128
        %719 = vxpose.xlu0.b32.cont [7/16] 0.0, 128
        %720 = vxpose.xlu0.b32.cont [8/16] 0.0, 128
        %721 = vxpose.xlu0.b32.cont [9/16] 0.0, 128
        %722 = vxpose.xlu0.b32.cont [10/16] 0.0, 128
        %723 = vxpose.xlu0.b32.cont [11/16] 0.0, 128
        %724 = vxpose.xlu0.b32.cont [12/16] 0.0, 128
        %725 = vxpose.xlu0.b32.cont [13/16] 0.0, 128
        %726 = vxpose.xlu0.b32.cont [14/16] 0.0, 128
        %727 = vxpose.xlu0.b32.cont [15/16] 0.0, 128
        %728 = vxpose.xlu0.b32.end [16/16] 0.0, 128
        %v729 = vpop.trf.xlu0
        %v730 = vpop.trf.xlu0
        %v731 = vpop.trf.xlu0
        %v732 = vpop.trf.xlu0
        %v733 = vpop.trf.xlu0
        %v734 = vpop.trf.xlu0
        %v735 = vpop.trf.xlu0
        %v736 = vpop.trf.xlu0
        %v737 = vpop.trf.xlu0
        %v738 = vpop.trf.xlu0
        %v739 = vpop.trf.xlu0
        %v740 = vpop.trf.xlu0
        %v741 = vpop.trf.xlu0
        %v742 = vpop.trf.xlu0
        %v743 = vpop.trf.xlu0
        %v744 = vpop.trf.xlu0
        %vm745 = vcmask 64512
        %v747 = vsel %vm745, %v505, 0
        %v750 = vsel %vm745, %v506, 0
        %v753 = vsel %vm745, %v507, 0
        %v756 = vsel %vm745, %v508, 0
        %v759 = vsel %vm745, %v509, 0
        %v762 = vsel %vm745, %v510, 0
        %v765 = vsel %vm745, %v511, 0
        %v768 = vsel %vm745, %v512, 0
        %v771 = vsel %vm745, %v513, 0
        %v774 = vsel %vm745, %v514, 0
        %v777 = vsel %vm745, %v515, 0
        %v780 = vsel %vm745, %v516, 0
        %v783 = vsel %vm745, %v517, 0
        %v786 = vsel %vm745, %v518, 0
        %v789 = vsel %vm745, %v519, 0
        %v792 = vsel %vm745, %v520, 0
        %v795 = vsel %vm745, %v537, 0
        %v798 = vsel %vm745, %v538, 0
        %v801 = vsel %vm745, %v539, 0
        %v804 = vsel %vm745, %v540, 0
        %v807 = vsel %vm745, %v541, 0
        %v810 = vsel %vm745, %v542, 0
        %v813 = vsel %vm745, %v543, 0
        %v816 = vsel %vm745, %v544, 0
        %v819 = vsel %vm745, %v545, 0
        %v822 = vsel %vm745, %v546, 0
        %v825 = vsel %vm745, %v547, 0
        %v828 = vsel %vm745, %v548, 0
        %v831 = vsel %vm745, %v549, 0
        %v834 = vsel %vm745, %v550, 0
        %v837 = vsel %vm745, %v551, 0
        %v840 = vsel %vm745, %v552, 0
        %842 = vmatprep.subr.mxu0 %v445
        %843 = vmatpush1.msra.mxu0 %v443
        %844 = vmatprep.subr.mxu0 0.0
        %845 = vmatpush1.msra.mxu0 0.0
        %846 = vmatprep.subr.mxu0 0.0
        %847 = vmatpush1.msra.mxu0 0.0
        %848 = vmatprep.subr.mxu0 0.0
        %849 = vmatpush1.msra.mxu0 0.0
        %850 = vmatprep.subr.mxu0 0.0
        %851 = vmatpush1.msra.mxu0 0.0
        %852 = vmatprep.subr.mxu0 0.0
        %853 = vmatpush1.msra.mxu0 0.0
        %854 = vmatprep.subr.mxu0 0.0
        %855 = vmatpush1.msra.mxu0 0.0
        %856 = vmatprep.subr.mxu0 0.0
        %857 = vmatpush1.msra.mxu0 0.0
        %858 = vmatprep.subr.mxu0 0.0
        %859 = vmatpush1.msra.mxu0 0.0
        %860 = vmatprep.subr.mxu0 0.0
        %861 = vmatpush1.msra.mxu0 0.0
        %862 = vmatprep.subr.mxu0 0.0
        %863 = vmatpush1.msra.mxu0 0.0
        %864 = vmatprep.subr.mxu0 0.0
        %865 = vmatpush1.msra.mxu0 0.0
        %866 = vmatprep.subr.mxu0 0.0
        %867 = vmatpush1.msra.mxu0 0.0
        %868 = vmatprep.subr.mxu0 0.0
        %869 = vmatpush1.msra.mxu0 0.0
        %870 = vmatprep.subr.mxu0 0.0
        %871 = vmatpush1.msra.mxu0 0.0
        %872 = vmatprep.subr.mxu0 0.0
        %873 = vmatpush1.msra.mxu0 0.0
        %874 = vmatprep.subr.mxu0 0.0
        %875 = vmatpush1.msra.mxu0 0.0
        %876 = vmatprep.subr.mxu0 0.0
        %877 = vmatpush1.msra.mxu0 0.0
        %878 = vmatprep.subr.mxu0 0.0
        %879 = vmatpush1.msra.mxu0 0.0
        %880 = vmatprep.subr.mxu0 0.0
        %881 = vmatpush1.msra.mxu0 0.0
        %882 = vmatprep.subr.mxu0 0.0
        %883 = vmatpush1.msra.mxu0 0.0
        %884 = vmatprep.subr.mxu0 0.0
        %885 = vmatpush1.msra.mxu0 0.0
        %886 = vmatprep.subr.mxu0 0.0
        %887 = vmatpush1.msra.mxu0 0.0
        %888 = vmatprep.subr.mxu0 0.0
        %889 = vmatpush1.msra.mxu0 0.0
        %890 = vmatprep.subr.mxu0 0.0
        %891 = vmatpush1.msra.mxu0 0.0
        %892 = vmatprep.subr.mxu0 0.0
        %893 = vmatpush1.msra.mxu0 0.0
        %894 = vmatprep.subr.mxu0 0.0
        %895 = vmatpush1.msra.mxu0 0.0
        %896 = vmatprep.subr.mxu0 0.0
        %897 = vmatpush1.msra.mxu0 0.0
        %898 = vmatprep.subr.mxu0 0.0
        %899 = vmatpush1.msra.mxu0 0.0
        %900 = vmatprep.subr.mxu0 0.0
        %901 = vmatpush1.msra.mxu0 0.0
        %902 = vmatprep.subr.mxu0 0.0
        %903 = vmatpush1.msra.mxu0 0.0
        %904 = vmatprep.subr.mxu0 0.0
        %905 = vmatpush1.msra.mxu0 0.0
        %906 = vmatprep.mubr.f32.mxu0 0.0
        %907 = vmatmul.mubr.f32.gmra.mrb[0].mxu0 %v747
        %v908 = vpop.f32.mrb[0].mxu0
        %v909 = vadd.f32 0.0, %v908
        %v910 = vpop.f32.mrb[0].mxu0
        %v911 = vadd.f32 0.0, %v910
        %912 = vmatprep.mubr.f32.mxu0 0.0
        %913 = vmatmul.mubr.f32.gmra.mrb[0].mxu0 %v750
        %v914 = vpop.f32.mrb[0].mxu0
        %v915 = vadd.f32 0.0, %v914
        %v916 = vpop.f32.mrb[0].mxu0
        %v917 = vadd.f32 0.0, %v916
        %918 = vmatprep.mubr.f32.mxu0 0.0
        %919 = vmatmul.mubr.f32.gmra.mrb[0].mxu0 %v753
        %v920 = vpop.f32.mrb[0].mxu0
        %v921 = vadd.f32 0.0, %v920
        %v922 = vpop.f32.mrb[0].mxu0
        %v923 = vadd.f32 0.0, %v922
        %924 = vmatprep.mubr.f32.mxu0 0.0
        %925 = vmatmul.mubr.f32.gmra.mrb[0].mxu0 %v756
        %v926 = vpop.f32.mrb[0].mxu0
        %v927 = vadd.f32 0.0, %v926
        %v928 = vpop.f32.mrb[0].mxu0
        %v929 = vadd.f32 0.0, %v928
        %930 = vmatprep.mubr.f32.mxu0 0.0
        %931 = vmatmul.mubr.f32.gmra.mrb[0].mxu0 %v759
        %v932 = vpop.f32.mrb[0].mxu0
        %v933 = vadd.f32 0.0, %v932
        %v934 = vpop.f32.mrb[0].mxu0
        %v935 = vadd.f32 0.0, %v934
        %936 = vmatprep.mubr.f32.mxu0 0.0
        %937 = vmatmul.mubr.f32.gmra.mrb[0].mxu0 %v762
        %v938 = vpop.f32.mrb[0].mxu0
        %v939 = vadd.f32 0.0, %v938
        %v940 = vpop.f32.mrb[0].mxu0
        %v941 = vadd.f32 0.0, %v940
        %942 = vmatprep.mubr.f32.mxu0 0.0
        %943 = vmatmul.mubr.f32.gmra.mrb[0].mxu0 %v765
        %v944 = vpop.f32.mrb[0].mxu0
        %v945 = vadd.f32 0.0, %v944
        %v946 = vpop.f32.mrb[0].mxu0
        %v947 = vadd.f32 0.0, %v946
        %948 = vmatprep.mubr.f32.mxu0 0.0
        %949 = vmatmul.mubr.f32.gmra.mrb[0].mxu0 %v768
        %v950 = vpop.f32.mrb[0].mxu0
        %v951 = vadd.f32 0.0, %v950
        %v952 = vpop.f32.mrb[0].mxu0
        %v953 = vadd.f32 0.0, %v952
        %954 = vmatprep.mubr.f32.mxu0 0.0
        %955 = vmatmul.mubr.f32.gmra.mrb[0].mxu0 %v771
        %v956 = vpop.f32.mrb[0].mxu0
        %v957 = vadd.f32 0.0, %v956
        %v958 = vpop.f32.mrb[0].mxu0
        %v959 = vadd.f32 0.0, %v958
        %960 = vmatprep.mubr.f32.mxu0 0.0
        %961 = vmatmul.mubr.f32.gmra.mrb[0].mxu0 %v774
        %v962 = vpop.f32.mrb[0].mxu0
        %v963 = vadd.f32 0.0, %v962
        %v964 = vpop.f32.mrb[0].mxu0
        %v965 = vadd.f32 0.0, %v964
        %966 = vmatprep.mubr.f32.mxu0 0.0
        %967 = vmatmul.mubr.f32.gmra.mrb[0].mxu0 %v777
        %v968 = vpop.f32.mrb[0].mxu0
        %v969 = vadd.f32 0.0, %v968
        %v970 = vpop.f32.mrb[0].mxu0
        %v971 = vadd.f32 0.0, %v970
        %972 = vmatprep.mubr.f32.mxu0 0.0
        %973 = vmatmul.mubr.f32.gmra.mrb[0].mxu0 %v780
        %v974 = vpop.f32.mrb[0].mxu0
        %v975 = vadd.f32 0.0, %v974
        %v976 = vpop.f32.mrb[0].mxu0
        %v977 = vadd.f32 0.0, %v976
        %978 = vmatprep.mubr.f32.mxu0 0.0
        %979 = vmatmul.mubr.f32.gmra.mrb[0].mxu0 %v783
        %v980 = vpop.f32.mrb[0].mxu0
        %v981 = vadd.f32 0.0, %v980
        %v982 = vpop.f32.mrb[0].mxu0
        %v983 = vadd.f32 0.0, %v982
        %984 = vmatprep.mubr.f32.mxu0 0.0
        %985 = vmatmul.mubr.f32.gmra.mrb[0].mxu0 %v786
        %v986 = vpop.f32.mrb[0].mxu0
        %v987 = vadd.f32 0.0, %v986
        %v988 = vpop.f32.mrb[0].mxu0
        %v989 = vadd.f32 0.0, %v988
        %990 = vmatprep.mubr.f32.mxu0 0.0
        %991 = vmatmul.mubr.f32.gmra.mrb[0].mxu0 %v789
        %v992 = vpop.f32.mrb[0].mxu0
        %v993 = vadd.f32 0.0, %v992
        %v994 = vpop.f32.mrb[0].mxu0
        %v995 = vadd.f32 0.0, %v994
        %996 = vmatprep.mubr.f32.mxu0 0.0
        %997 = vmatmul.mubr.f32.gmra.mrb[0].mxu0 %v792
        %v998 = vpop.f32.mrb[0].mxu0
        %v999 = vadd.f32 0.0, %v998
        %v1000 = vpop.f32.mrb[0].mxu0
        %v1001 = vadd.f32 0.0, %v1000
        %1002 = vmatprep.mubr.f32.mxu0 0.0
        %1003 = vmatmul.mubr.f32.gmra.mrb[0].mxu0 %v795
        %v1004 = vpop.f32.mrb[0].mxu0
        %v1005 = vadd.f32 0.0, %v1004
        %v1006 = vpop.f32.mrb[0].mxu0
        %v1007 = vadd.f32 0.0, %v1006
        %1008 = vmatprep.mubr.f32.mxu0 0.0
        %1009 = vmatmul.mubr.f32.gmra.mrb[0].mxu0 %v798
        %v1010 = vpop.f32.mrb[0].mxu0
        %v1011 = vadd.f32 0.0, %v1010
        %v1012 = vpop.f32.mrb[0].mxu0
        %v1013 = vadd.f32 0.0, %v1012
        %1014 = vmatprep.mubr.f32.mxu0 0.0
        %1015 = vmatmul.mubr.f32.gmra.mrb[0].mxu0 %v801
        %v1016 = vpop.f32.mrb[0].mxu0
        %v1017 = vadd.f32 0.0, %v1016
        %v1018 = vpop.f32.mrb[0].mxu0
        %v1019 = vadd.f32 0.0, %v1018
        %1020 = vmatprep.mubr.f32.mxu0 0.0
        %1021 = vmatmul.mubr.f32.gmra.mrb[0].mxu0 %v804
        %v1022 = vpop.f32.mrb[0].mxu0
        %v1023 = vadd.f32 0.0, %v1022
        %v1024 = vpop.f32.mrb[0].mxu0
        %v1025 = vadd.f32 0.0, %v1024
        %1026 = vmatprep.mubr.f32.mxu0 0.0
        %1027 = vmatmul.mubr.f32.gmra.mrb[0].mxu0 %v807
        %v1028 = vpop.f32.mrb[0].mxu0
        %v1029 = vadd.f32 0.0, %v1028
        %v1030 = vpop.f32.mrb[0].mxu0
        %v1031 = vadd.f32 0.0, %v1030
        %1032 = vmatprep.mubr.f32.mxu0 0.0
        %1033 = vmatmul.mubr.f32.gmra.mrb[0].mxu0 %v810
        %v1034 = vpop.f32.mrb[0].mxu0
        %v1035 = vadd.f32 0.0, %v1034
        %v1036 = vpop.f32.mrb[0].mxu0
        %v1037 = vadd.f32 0.0, %v1036
        %1038 = vmatprep.mubr.f32.mxu0 0.0
        %1039 = vmatmul.mubr.f32.gmra.mrb[0].mxu0 %v813
        %v1040 = vpop.f32.mrb[0].mxu0
        %v1041 = vadd.f32 0.0, %v1040
        %v1042 = vpop.f32.mrb[0].mxu0
        %v1043 = vadd.f32 0.0, %v1042
        %1044 = vmatprep.mubr.f32.mxu0 0.0
        %1045 = vmatmul.mubr.f32.gmra.mrb[0].mxu0 %v816
        %v1046 = vpop.f32.mrb[0].mxu0
        %v1047 = vadd.f32 0.0, %v1046
        %v1048 = vpop.f32.mrb[0].mxu0
        %v1049 = vadd.f32 0.0, %v1048
        %1050 = vmatprep.mubr.f32.mxu0 0.0
        %1051 = vmatmul.mubr.f32.gmra.mrb[0].mxu0 %v819
        %v1052 = vpop.f32.mrb[0].mxu0
        %v1053 = vadd.f32 0.0, %v1052
        %v1054 = vpop.f32.mrb[0].mxu0
        %v1055 = vadd.f32 0.0, %v1054
        %1056 = vmatprep.mubr.f32.mxu0 0.0
        %1057 = vmatmul.mubr.f32.gmra.mrb[0].mxu0 %v822
        %v1058 = vpop.f32.mrb[0].mxu0
        %v1059 = vadd.f32 0.0, %v1058
        %v1060 = vpop.f32.mrb[0].mxu0
        %v1061 = vadd.f32 0.0, %v1060
        %1062 = vmatprep.mubr.f32.mxu0 0.0
        %1063 = vmatmul.mubr.f32.gmra.mrb[0].mxu0 %v825
        %v1064 = vpop.f32.mrb[0].mxu0
        %v1065 = vadd.f32 0.0, %v1064
        %v1066 = vpop.f32.mrb[0].mxu0
        %v1067 = vadd.f32 0.0, %v1066
        %1068 = vmatprep.mubr.f32.mxu0 0.0
        %1069 = vmatmul.mubr.f32.gmra.mrb[0].mxu0 %v828
        %v1070 = vpop.f32.mrb[0].mxu0
        %v1071 = vadd.f32 0.0, %v1070
        %v1072 = vpop.f32.mrb[0].mxu0
        %v1073 = vadd.f32 0.0, %v1072
        %1074 = vmatprep.mubr.f32.mxu0 0.0
        %1075 = vmatmul.mubr.f32.gmra.mrb[0].mxu0 %v831
        %v1076 = vpop.f32.mrb[0].mxu0
        %v1077 = vadd.f32 0.0, %v1076
        %v1078 = vpop.f32.mrb[0].mxu0
        %v1079 = vadd.f32 0.0, %v1078
        %1080 = vmatprep.mubr.f32.mxu0 0.0
        %1081 = vmatmul.mubr.f32.gmra.mrb[0].mxu0 %v834
        %v1082 = vpop.f32.mrb[0].mxu0
        %v1083 = vadd.f32 0.0, %v1082
        %v1084 = vpop.f32.mrb[0].mxu0
        %v1085 = vadd.f32 0.0, %v1084
        %1086 = vmatprep.mubr.f32.mxu0 0.0
        %1087 = vmatmul.mubr.f32.gmra.mrb[0].mxu0 %v837
        %v1088 = vpop.f32.mrb[0].mxu0
        %v1089 = vadd.f32 0.0, %v1088
        %v1090 = vpop.f32.mrb[0].mxu0
        %v1091 = vadd.f32 0.0, %v1090
        %1092 = vmatprep.mubr.f32.mxu0 0.0
        %1093 = vmatmul.mubr.f32.gmra.mrb[0].mxu0 %v840
        %v1094 = vpop.f32.mrb[0].mxu0
        %v1095 = vadd.f32 0.0, %v1094
        %v1096 = vpop.f32.mrb[0].mxu0
        %v1097 = vadd.f32 0.0, %v1096
        %1098 = vdwg.mxu0
        %v1100 = vsel %vm745, %v569, 0
        %v1103 = vsel %vm745, %v570, 0
        %v1106 = vsel %vm745, %v571, 0
        %v1109 = vsel %vm745, %v572, 0
        %v1112 = vsel %vm745, %v573, 0
        %v1115 = vsel %vm745, %v574, 0
        %v1118 = vsel %vm745, %v575, 0
        %v1121 = vsel %vm745, %v576, 0
        %v1124 = vsel %vm745, %v577, 0
        %v1127 = vsel %vm745, %v578, 0
        %v1130 = vsel %vm745, %v579, 0
        %v1133 = vsel %vm745, %v580, 0
        %v1136 = vsel %vm745, %v581, 0
        %v1139 = vsel %vm745, %v582, 0
        %v1142 = vsel %vm745, %v583, 0
        %v1145 = vsel %vm745, %v584, 0
        %v1148 = vsel %vm745, %v601, 0
        %v1151 = vsel %vm745, %v602, 0
        %v1154 = vsel %vm745, %v603, 0
        %v1157 = vsel %vm745, %v604, 0
        %v1160 = vsel %vm745, %v605, 0
        %v1163 = vsel %vm745, %v606, 0
        %v1166 = vsel %vm745, %v607, 0
        %v1169 = vsel %vm745, %v608, 0
        %v1172 = vsel %vm745, %v609, 0
        %v1175 = vsel %vm745, %v610, 0
        %v1178 = vsel %vm745, %v611, 0
        %v1181 = vsel %vm745, %v612, 0
        %v1184 = vsel %vm745, %v613, 0
        %v1187 = vsel %vm745, %v614, 0
        %v1190 = vsel %vm745, %v615, 0
        %v1193 = vsel %vm745, %v616, 0
        %1195 = vmatprep.subr.mxu0 %v451
        %1196 = vmatpush1.msra.mxu0 %v449
        %1197 = vmatprep.subr.mxu0 0.0
        %1198 = vmatpush1.msra.mxu0 0.0
        %1199 = vmatprep.subr.mxu0 0.0
        %1200 = vmatpush1.msra.mxu0 0.0
        %1201 = vmatprep.subr.mxu0 0.0
        %1202 = vmatpush1.msra.mxu0 0.0
        %1203 = vmatprep.subr.mxu0 0.0
        %1204 = vmatpush1.msra.mxu0 0.0
        %1205 = vmatprep.subr.mxu0 0.0
        %1206 = vmatpush1.msra.mxu0 0.0
        %1207 = vmatprep.subr.mxu0 0.0
        %1208 = vmatpush1.msra.mxu0 0.0
        %1209 = vmatprep.subr.mxu0 0.0
        %1210 = vmatpush1.msra.mxu0 0.0
        %1211 = vmatprep.subr.mxu0 0.0
        %1212 = vmatpush1.msra.mxu0 0.0
        %1213 = vmatprep.subr.mxu0 0.0
        %1214 = vmatpush1.msra.mxu0 0.0
        %1215 = vmatprep.subr.mxu0 0.0
        %1216 = vmatpush1.msra.mxu0 0.0
        %1217 = vmatprep.subr.mxu0 0.0
        %1218 = vmatpush1.msra.mxu0 0.0
        %1219 = vmatprep.subr.mxu0 0.0
        %1220 = vmatpush1.msra.mxu0 0.0
        %1221 = vmatprep.subr.mxu0 0.0
        %1222 = vmatpush1.msra.mxu0 0.0
        %1223 = vmatprep.subr.mxu0 0.0
        %1224 = vmatpush1.msra.mxu0 0.0
        %1225 = vmatprep.subr.mxu0 0.0
        %1226 = vmatpush1.msra.mxu0 0.0
        %1227 = vmatprep.subr.mxu0 0.0
        %1228 = vmatpush1.msra.mxu0 0.0
        %1229 = vmatprep.subr.mxu0 0.0
        %1230 = vmatpush1.msra.mxu0 0.0
        %1231 = vmatprep.subr.mxu0 0.0
        %1232 = vmatpush1.msra.mxu0 0.0
        %1233 = vmatprep.subr.mxu0 0.0
        %1234 = vmatpush1.msra.mxu0 0.0
        %1235 = vmatprep.subr.mxu0 0.0
        %1236 = vmatpush1.msra.mxu0 0.0
        %1237 = vmatprep.subr.mxu0 0.0
        %1238 = vmatpush1.msra.mxu0 0.0
        %1239 = vmatprep.subr.mxu0 0.0
        %1240 = vmatpush1.msra.mxu0 0.0
        %1241 = vmatprep.subr.mxu0 0.0
        %1242 = vmatpush1.msra.mxu0 0.0
        %1243 = vmatprep.subr.mxu0 0.0
        %1244 = vmatpush1.msra.mxu0 0.0
        %1245 = vmatprep.subr.mxu0 0.0
        %1246 = vmatpush1.msra.mxu0 0.0
        %1247 = vmatprep.subr.mxu0 0.0
        %1248 = vmatpush1.msra.mxu0 0.0
        %1249 = vmatprep.subr.mxu0 0.0
        %1250 = vmatpush1.msra.mxu0 0.0
        %1251 = vmatprep.subr.mxu0 0.0
        %1252 = vmatpush1.msra.mxu0 0.0
        %1253 = vmatprep.subr.mxu0 0.0
        %1254 = vmatpush1.msra.mxu0 0.0
        %1255 = vmatprep.subr.mxu0 0.0
        %1256 = vmatpush1.msra.mxu0 0.0
        %1257 = vmatprep.subr.mxu0 0.0
        %1258 = vmatpush1.msra.mxu0 0.0
        %1259 = vmatprep.mubr.f32.mxu0 0.0
        %1260 = vmatmul.mubr.f32.gmra.mrb[0].mxu0 %v1100
        %v1261 = vpop.f32.mrb[0].mxu0
        %v1262 = vadd.f32 0.0, %v1261
        %v1263 = vpop.f32.mrb[0].mxu0
        %v1264 = vadd.f32 0.0, %v1263
        %1265 = vmatprep.mubr.f32.mxu0 0.0
        %1266 = vmatmul.mubr.f32.gmra.mrb[0].mxu0 %v1103
        %v1267 = vpop.f32.mrb[0].mxu0
        %v1268 = vadd.f32 0.0, %v1267
        %v1269 = vpop.f32.mrb[0].mxu0
        %v1270 = vadd.f32 0.0, %v1269
        %1271 = vmatprep.mubr.f32.mxu0 0.0
        %1272 = vmatmul.mubr.f32.gmra.mrb[0].mxu0 %v1106
        %v1273 = vpop.f32.mrb[0].mxu0
        %v1274 = vadd.f32 0.0, %v1273
        %v1275 = vpop.f32.mrb[0].mxu0
        %v1276 = vadd.f32 0.0, %v1275
        %1277 = vmatprep.mubr.f32.mxu0 0.0
        %1278 = vmatmul.mubr.f32.gmra.mrb[0].mxu0 %v1109
        %v1279 = vpop.f32.mrb[0].mxu0
        %v1280 = vadd.f32 0.0, %v1279
        %v1281 = vpop.f32.mrb[0].mxu0
        %v1282 = vadd.f32 0.0, %v1281
        %1283 = vmatprep.mubr.f32.mxu0 0.0
        %1284 = vmatmul.mubr.f32.gmra.mrb[0].mxu0 %v1112
        %v1285 = vpop.f32.mrb[0].mxu0
        %v1286 = vadd.f32 0.0, %v1285
        %v1287 = vpop.f32.mrb[0].mxu0
        %v1288 = vadd.f32 0.0, %v1287
        %1289 = vmatprep.mubr.f32.mxu0 0.0
        %1290 = vmatmul.mubr.f32.gmra.mrb[0].mxu0 %v1115
        %v1291 = vpop.f32.mrb[0].mxu0
        %v1292 = vadd.f32 0.0, %v1291
        %v1293 = vpop.f32.mrb[0].mxu0
        %v1294 = vadd.f32 0.0, %v1293
        %1295 = vmatprep.mubr.f32.mxu0 0.0
        %1296 = vmatmul.mubr.f32.gmra.mrb[0].mxu0 %v1118
        %v1297 = vpop.f32.mrb[0].mxu0
        %v1298 = vadd.f32 0.0, %v1297
        %v1299 = vpop.f32.mrb[0].mxu0
        %v1300 = vadd.f32 0.0, %v1299
        %1301 = vmatprep.mubr.f32.mxu0 0.0
        %1302 = vmatmul.mubr.f32.gmra.mrb[0].mxu0 %v1121
        %v1303 = vpop.f32.mrb[0].mxu0
        %v1304 = vadd.f32 0.0, %v1303
        %v1305 = vpop.f32.mrb[0].mxu0
        %v1306 = vadd.f32 0.0, %v1305
        %1307 = vmatprep.mubr.f32.mxu0 0.0
        %1308 = vmatmul.mubr.f32.gmra.mrb[0].mxu0 %v1124
        %v1309 = vpop.f32.mrb[0].mxu0
        %v1310 = vadd.f32 0.0, %v1309
        %v1311 = vpop.f32.mrb[0].mxu0
        %v1312 = vadd.f32 0.0, %v1311
        %1313 = vmatprep.mubr.f32.mxu0 0.0
        %1314 = vmatmul.mubr.f32.gmra.mrb[0].mxu0 %v1127
        %v1315 = vpop.f32.mrb[0].mxu0
        %v1316 = vadd.f32 0.0, %v1315
        %v1317 = vpop.f32.mrb[0].mxu0
        %v1318 = vadd.f32 0.0, %v1317
        %1319 = vmatprep.mubr.f32.mxu0 0.0
        %1320 = vmatmul.mubr.f32.gmra.mrb[0].mxu0 %v1130
        %v1321 = vpop.f32.mrb[0].mxu0
        %v1322 = vadd.f32 0.0, %v1321
        %v1323 = vpop.f32.mrb[0].mxu0
        %v1324 = vadd.f32 0.0, %v1323
        %1325 = vmatprep.mubr.f32.mxu0 0.0
        %1326 = vmatmul.mubr.f32.gmra.mrb[0].mxu0 %v1133
        %v1327 = vpop.f32.mrb[0].mxu0
        %v1328 = vadd.f32 0.0, %v1327
        %v1329 = vpop.f32.mrb[0].mxu0
        %v1330 = vadd.f32 0.0, %v1329
        %1331 = vmatprep.mubr.f32.mxu0 0.0
        %1332 = vmatmul.mubr.f32.gmra.mrb[0].mxu0 %v1136
        %v1333 = vpop.f32.mrb[0].mxu0
        %v1334 = vadd.f32 0.0, %v1333
        %v1335 = vpop.f32.mrb[0].mxu0
        %v1336 = vadd.f32 0.0, %v1335
        %1337 = vmatprep.mubr.f32.mxu0 0.0
        %1338 = vmatmul.mubr.f32.gmra.mrb[0].mxu0 %v1139
        %v1339 = vpop.f32.mrb[0].mxu0
        %v1340 = vadd.f32 0.0, %v1339
        %v1341 = vpop.f32.mrb[0].mxu0
        %v1342 = vadd.f32 0.0, %v1341
        %1343 = vmatprep.mubr.f32.mxu0 0.0
        %1344 = vmatmul.mubr.f32.gmra.mrb[0].mxu0 %v1142
        %v1345 = vpop.f32.mrb[0].mxu0
        %v1346 = vadd.f32 0.0, %v1345
        %v1347 = vpop.f32.mrb[0].mxu0
        %v1348 = vadd.f32 0.0, %v1347
        %1349 = vmatprep.mubr.f32.mxu0 0.0
        %1350 = vmatmul.mubr.f32.gmra.mrb[0].mxu0 %v1145
        %v1351 = vpop.f32.mrb[0].mxu0
        %v1352 = vadd.f32 0.0, %v1351
        %v1353 = vpop.f32.mrb[0].mxu0
        %v1354 = vadd.f32 0.0, %v1353
        %1355 = vmatprep.mubr.f32.mxu0 0.0
        %1356 = vmatmul.mubr.f32.gmra.mrb[0].mxu0 %v1148
        %v1357 = vpop.f32.mrb[0].mxu0
        %v1358 = vadd.f32 0.0, %v1357
        %v1359 = vpop.f32.mrb[0].mxu0
        %v1360 = vadd.f32 0.0, %v1359
        %1361 = vmatprep.mubr.f32.mxu0 0.0
        %1362 = vmatmul.mubr.f32.gmra.mrb[0].mxu0 %v1151
        %v1363 = vpop.f32.mrb[0].mxu0
        %v1364 = vadd.f32 0.0, %v1363
        %v1365 = vpop.f32.mrb[0].mxu0
        %v1366 = vadd.f32 0.0, %v1365
        %1367 = vmatprep.mubr.f32.mxu0 0.0
        %1368 = vmatmul.mubr.f32.gmra.mrb[0].mxu0 %v1154
        %v1369 = vpop.f32.mrb[0].mxu0
        %v1370 = vadd.f32 0.0, %v1369
        %v1371 = vpop.f32.mrb[0].mxu0
        %v1372 = vadd.f32 0.0, %v1371
        %1373 = vmatprep.mubr.f32.mxu0 0.0
        %1374 = vmatmul.mubr.f32.gmra.mrb[0].mxu0 %v1157
        %v1375 = vpop.f32.mrb[0].mxu0
        %v1376 = vadd.f32 0.0, %v1375
        %v1377 = vpop.f32.mrb[0].mxu0
        %v1378 = vadd.f32 0.0, %v1377
        %1379 = vmatprep.mubr.f32.mxu0 0.0
        %1380 = vmatmul.mubr.f32.gmra.mrb[0].mxu0 %v1160
        %v1381 = vpop.f32.mrb[0].mxu0
        %v1382 = vadd.f32 0.0, %v1381
        %v1383 = vpop.f32.mrb[0].mxu0
        %v1384 = vadd.f32 0.0, %v1383
        %1385 = vmatprep.mubr.f32.mxu0 0.0
        %1386 = vmatmul.mubr.f32.gmra.mrb[0].mxu0 %v1163
        %v1387 = vpop.f32.mrb[0].mxu0
        %v1388 = vadd.f32 0.0, %v1387
        %v1389 = vpop.f32.mrb[0].mxu0
        %v1390 = vadd.f32 0.0, %v1389
        %1391 = vmatprep.mubr.f32.mxu0 0.0
        %1392 = vmatmul.mubr.f32.gmra.mrb[0].mxu0 %v1166
        %v1393 = vpop.f32.mrb[0].mxu0
        %v1394 = vadd.f32 0.0, %v1393
        %v1395 = vpop.f32.mrb[0].mxu0
        %v1396 = vadd.f32 0.0, %v1395
        %1397 = vmatprep.mubr.f32.mxu0 0.0
        %1398 = vmatmul.mubr.f32.gmra.mrb[0].mxu0 %v1169
        %v1399 = vpop.f32.mrb[0].mxu0
        %v1400 = vadd.f32 0.0, %v1399
        %v1401 = vpop.f32.mrb[0].mxu0
        %v1402 = vadd.f32 0.0, %v1401
        %1403 = vmatprep.mubr.f32.mxu0 0.0
        %1404 = vmatmul.mubr.f32.gmra.mrb[0].mxu0 %v1172
        %v1405 = vpop.f32.mrb[0].mxu0
        %v1406 = vadd.f32 0.0, %v1405
        %v1407 = vpop.f32.mrb[0].mxu0
        %v1408 = vadd.f32 0.0, %v1407
        %1409 = vmatprep.mubr.f32.mxu0 0.0
        %1410 = vmatmul.mubr.f32.gmra.mrb[0].mxu0 %v1175
        %v1411 = vpop.f32.mrb[0].mxu0
        %v1412 = vadd.f32 0.0, %v1411
        %v1413 = vpop.f32.mrb[0].mxu0
        %v1414 = vadd.f32 0.0, %v1413
        %1415 = vmatprep.mubr.f32.mxu0 0.0
        %1416 = vmatmul.mubr.f32.gmra.mrb[0].mxu0 %v1178
        %v1417 = vpop.f32.mrb[0].mxu0
        %v1418 = vadd.f32 0.0, %v1417
        %v1419 = vpop.f32.mrb[0].mxu0
        %v1420 = vadd.f32 0.0, %v1419
        %1421 = vmatprep.mubr.f32.mxu0 0.0
        %1422 = vmatmul.mubr.f32.gmra.mrb[0].mxu0 %v1181
        %v1423 = vpop.f32.mrb[0].mxu0
        %v1424 = vadd.f32 0.0, %v1423
        %v1425 = vpop.f32.mrb[0].mxu0
        %v1426 = vadd.f32 0.0, %v1425
        %1427 = vmatprep.mubr.f32.mxu0 0.0
        %1428 = vmatmul.mubr.f32.gmra.mrb[0].mxu0 %v1184
        %v1429 = vpop.f32.mrb[0].mxu0
        %v1430 = vadd.f32 0.0, %v1429
        %v1431 = vpop.f32.mrb[0].mxu0
        %v1432 = vadd.f32 0.0, %v1431
        %1433 = vmatprep.mubr.f32.mxu0 0.0
        %1434 = vmatmul.mubr.f32.gmra.mrb[0].mxu0 %v1187
        %v1435 = vpop.f32.mrb[0].mxu0
        %v1436 = vadd.f32 0.0, %v1435
        %v1437 = vpop.f32.mrb[0].mxu0
        %v1438 = vadd.f32 0.0, %v1437
        %1439 = vmatprep.mubr.f32.mxu0 0.0
        %1440 = vmatmul.mubr.f32.gmra.mrb[0].mxu0 %v1190
        %v1441 = vpop.f32.mrb[0].mxu0
        %v1442 = vadd.f32 0.0, %v1441
        %v1443 = vpop.f32.mrb[0].mxu0
        %v1444 = vadd.f32 0.0, %v1443
        %1445 = vmatprep.mubr.f32.mxu0 0.0
        %1446 = vmatmul.mubr.f32.gmra.mrb[0].mxu0 %v1193
        %v1447 = vpop.f32.mrb[0].mxu0
        %v1448 = vadd.f32 0.0, %v1447
        %v1449 = vpop.f32.mrb[0].mxu0
        %v1450 = vadd.f32 0.0, %v1449
        %1451 = vdwg.mxu0
        %v1453 = vsel %vm745, %v633, 0
        %v1456 = vsel %vm745, %v634, 0
        %v1459 = vsel %vm745, %v635, 0
        %v1462 = vsel %vm745, %v636, 0
        %v1465 = vsel %vm745, %v637, 0
        %v1468 = vsel %vm745, %v638, 0
        %v1471 = vsel %vm745, %v639, 0
        %v1474 = vsel %vm745, %v640, 0
        %v1477 = vsel %vm745, %v641, 0
        %v1480 = vsel %vm745, %v642, 0
        %v1483 = vsel %vm745, %v643, 0
        %v1486 = vsel %vm745, %v644, 0
        %v1489 = vsel %vm745, %v645, 0
        %v1492 = vsel %vm745, %v646, 0
        %v1495 = vsel %vm745, %v647, 0
        %v1498 = vsel %vm745, %v648, 0
        %v1501 = vsel %vm745, %v665, 0
        %v1504 = vsel %vm745, %v666, 0
        %v1507 = vsel %vm745, %v667, 0
        %v1510 = vsel %vm745, %v668, 0
        %v1513 = vsel %vm745, %v669, 0
        %v1516 = vsel %vm745, %v670, 0
        %v1519 = vsel %vm745, %v671, 0
        %v1522 = vsel %vm745, %v672, 0
        %v1525 = vsel %vm745, %v673, 0
        %v1528 = vsel %vm745, %v674, 0
        %v1531 = vsel %vm745, %v675, 0
        %v1534 = vsel %vm745, %v676, 0
        %v1537 = vsel %vm745, %v677, 0
        %v1540 = vsel %vm745, %v678, 0
        %v1543 = vsel %vm745, %v679, 0
        %v1546 = vsel %vm745, %v680, 0
        %1548 = vmatprep.subr.mxu0 %v457
        %1549 = vmatpush1.msra.mxu0 %v455
        %1550 = vmatprep.subr.mxu0 0.0
        %1551 = vmatpush1.msra.mxu0 0.0
        %1552 = vmatprep.subr.mxu0 0.0
        %1553 = vmatpush1.msra.mxu0 0.0
        %1554 = vmatprep.subr.mxu0 0.0
        %1555 = vmatpush1.msra.mxu0 0.0
        %1556 = vmatprep.subr.mxu0 0.0
        %1557 = vmatpush1.msra.mxu0 0.0
        %1558 = vmatprep.subr.mxu0 0.0
        %1559 = vmatpush1.msra.mxu0 0.0
        %1560 = vmatprep.subr.mxu0 0.0
        %1561 = vmatpush1.msra.mxu0 0.0
        %1562 = vmatprep.subr.mxu0 0.0
        %1563 = vmatpush1.msra.mxu0 0.0
        %1564 = vmatprep.subr.mxu0 0.0
        %1565 = vmatpush1.msra.mxu0 0.0
        %1566 = vmatprep.subr.mxu0 0.0
        %1567 = vmatpush1.msra.mxu0 0.0
        %1568 = vmatprep.subr.mxu0 0.0
        %1569 = vmatpush1.msra.mxu0 0.0
        %1570 = vmatprep.subr.mxu0 0.0
        %1571 = vmatpush1.msra.mxu0 0.0
        %1572 = vmatprep.subr.mxu0 0.0
        %1573 = vmatpush1.msra.mxu0 0.0
        %1574 = vmatprep.subr.mxu0 0.0
        %1575 = vmatpush1.msra.mxu0 0.0
        %1576 = vmatprep.subr.mxu0 0.0
        %1577 = vmatpush1.msra.mxu0 0.0
        %1578 = vmatprep.subr.mxu0 0.0
        %1579 = vmatpush1.msra.mxu0 0.0
        %1580 = vmatprep.subr.mxu0 0.0
        %1581 = vmatpush1.msra.mxu0 0.0
        %1582 = vmatprep.subr.mxu0 0.0
        %1583 = vmatpush1.msra.mxu0 0.0
        %1584 = vmatprep.subr.mxu0 0.0
        %1585 = vmatpush1.msra.mxu0 0.0
        %1586 = vmatprep.subr.mxu0 0.0
        %1587 = vmatpush1.msra.mxu0 0.0
        %1588 = vmatprep.subr.mxu0 0.0
        %1589 = vmatpush1.msra.mxu0 0.0
        %1590 = vmatprep.subr.mxu0 0.0
        %1591 = vmatpush1.msra.mxu0 0.0
        %1592 = vmatprep.subr.mxu0 0.0
        %1593 = vmatpush1.msra.mxu0 0.0
        %1594 = vmatprep.subr.mxu0 0.0
        %1595 = vmatpush1.msra.mxu0 0.0
        %1596 = vmatprep.subr.mxu0 0.0
        %1597 = vmatpush1.msra.mxu0 0.0
        %1598 = vmatprep.subr.mxu0 0.0
        %1599 = vmatpush1.msra.mxu0 0.0
        %1600 = vmatprep.subr.mxu0 0.0
        %1601 = vmatpush1.msra.mxu0 0.0
        %1602 = vmatprep.subr.mxu0 0.0
        %1603 = vmatpush1.msra.mxu0 0.0
        %1604 = vmatprep.subr.mxu0 0.0
        %1605 = vmatpush1.msra.mxu0 0.0
        %1606 = vmatprep.subr.mxu0 0.0
        %1607 = vmatpush1.msra.mxu0 0.0
        %1608 = vmatprep.subr.mxu0 0.0
        %1609 = vmatpush1.msra.mxu0 0.0
        %1610 = vmatprep.subr.mxu0 0.0
        %1611 = vmatpush1.msra.mxu0 0.0
        %1612 = vmatprep.mubr.f32.mxu0 0.0
        %1613 = vmatmul.mubr.f32.gmra.mrb[0].mxu0 %v1453
        %v1614 = vpop.f32.mrb[0].mxu0
        %v1615 = vadd.f32 0.0, %v1614
        %v1616 = vpop.f32.mrb[0].mxu0
        %v1617 = vadd.f32 0.0, %v1616
        %1618 = vmatprep.mubr.f32.mxu0 0.0
        %1619 = vmatmul.mubr.f32.gmra.mrb[0].mxu0 %v1456
        %v1620 = vpop.f32.mrb[0].mxu0
        %v1621 = vadd.f32 0.0, %v1620
        %v1622 = vpop.f32.mrb[0].mxu0
        %v1623 = vadd.f32 0.0, %v1622
        %1624 = vmatprep.mubr.f32.mxu0 0.0
        %1625 = vmatmul.mubr.f32.gmra.mrb[0].mxu0 %v1459
        %v1626 = vpop.f32.mrb[0].mxu0
        %v1627 = vadd.f32 0.0, %v1626
        %v1628 = vpop.f32.mrb[0].mxu0
        %v1629 = vadd.f32 0.0, %v1628
        %1630 = vmatprep.mubr.f32.mxu0 0.0
        %1631 = vmatmul.mubr.f32.gmra.mrb[0].mxu0 %v1462
        %v1632 = vpop.f32.mrb[0].mxu0
        %v1633 = vadd.f32 0.0, %v1632
        %v1634 = vpop.f32.mrb[0].mxu0
        %v1635 = vadd.f32 0.0, %v1634
        %1636 = vmatprep.mubr.f32.mxu0 0.0
        %1637 = vmatmul.mubr.f32.gmra.mrb[0].mxu0 %v1465
        %v1638 = vpop.f32.mrb[0].mxu0
        %v1639 = vadd.f32 0.0, %v1638
        %v1640 = vpop.f32.mrb[0].mxu0
        %v1641 = vadd.f32 0.0, %v1640
        %1642 = vmatprep.mubr.f32.mxu0 0.0
        %1643 = vmatmul.mubr.f32.gmra.mrb[0].mxu0 %v1468
        %v1644 = vpop.f32.mrb[0].mxu0
        %v1645 = vadd.f32 0.0, %v1644
        %v1646 = vpop.f32.mrb[0].mxu0
        %v1647 = vadd.f32 0.0, %v1646
        %1648 = vmatprep.mubr.f32.mxu0 0.0
        %1649 = vmatmul.mubr.f32.gmra.mrb[0].mxu0 %v1471
        %v1650 = vpop.f32.mrb[0].mxu0
        %v1651 = vadd.f32 0.0, %v1650
        %v1652 = vpop.f32.mrb[0].mxu0
        %v1653 = vadd.f32 0.0, %v1652
        %1654 = vmatprep.mubr.f32.mxu0 0.0
        %1655 = vmatmul.mubr.f32.gmra.mrb[0].mxu0 %v1474
        %v1656 = vpop.f32.mrb[0].mxu0
        %v1657 = vadd.f32 0.0, %v1656
        %v1658 = vpop.f32.mrb[0].mxu0
        %v1659 = vadd.f32 0.0, %v1658
        %1660 = vmatprep.mubr.f32.mxu0 0.0
        %1661 = vmatmul.mubr.f32.gmra.mrb[0].mxu0 %v1477
        %v1662 = vpop.f32.mrb[0].mxu0
        %v1663 = vadd.f32 0.0, %v1662
        %v1664 = vpop.f32.mrb[0].mxu0
        %v1665 = vadd.f32 0.0, %v1664
        %1666 = vmatprep.mubr.f32.mxu0 0.0
        %1667 = vmatmul.mubr.f32.gmra.mrb[0].mxu0 %v1480
        %v1668 = vpop.f32.mrb[0].mxu0
        %v1669 = vadd.f32 0.0, %v1668
        %v1670 = vpop.f32.mrb[0].mxu0
        %v1671 = vadd.f32 0.0, %v1670
        %1672 = vmatprep.mubr.f32.mxu0 0.0
        %1673 = vmatmul.mubr.f32.gmra.mrb[0].mxu0 %v1483
        %v1674 = vpop.f32.mrb[0].mxu0
        %v1675 = vadd.f32 0.0, %v1674
        %v1676 = vpop.f32.mrb[0].mxu0
        %v1677 = vadd.f32 0.0, %v1676
        %1678 = vmatprep.mubr.f32.mxu0 0.0
        %1679 = vmatmul.mubr.f32.gmra.mrb[0].mxu0 %v1486
        %v1680 = vpop.f32.mrb[0].mxu0
        %v1681 = vadd.f32 0.0, %v1680
        %v1682 = vpop.f32.mrb[0].mxu0
        %v1683 = vadd.f32 0.0, %v1682
        %1684 = vmatprep.mubr.f32.mxu0 0.0
        %1685 = vmatmul.mubr.f32.gmra.mrb[0].mxu0 %v1489
        %v1686 = vpop.f32.mrb[0].mxu0
        %v1687 = vadd.f32 0.0, %v1686
        %v1688 = vpop.f32.mrb[0].mxu0
        %v1689 = vadd.f32 0.0, %v1688
        %1690 = vmatprep.mubr.f32.mxu0 0.0
        %1691 = vmatmul.mubr.f32.gmra.mrb[0].mxu0 %v1492
        %v1692 = vpop.f32.mrb[0].mxu0
        %v1693 = vadd.f32 0.0, %v1692
        %v1694 = vpop.f32.mrb[0].mxu0
        %v1695 = vadd.f32 0.0, %v1694
        %1696 = vmatprep.mubr.f32.mxu0 0.0
        %1697 = vmatmul.mubr.f32.gmra.mrb[0].mxu0 %v1495
        %v1698 = vpop.f32.mrb[0].mxu0
        %v1699 = vadd.f32 0.0, %v1698
        %v1700 = vpop.f32.mrb[0].mxu0
        %v1701 = vadd.f32 0.0, %v1700
        %1702 = vmatprep.mubr.f32.mxu0 0.0
        %1703 = vmatmul.mubr.f32.gmra.mrb[0].mxu0 %v1498
        %v1704 = vpop.f32.mrb[0].mxu0
        %v1705 = vadd.f32 0.0, %v1704
        %v1706 = vpop.f32.mrb[0].mxu0
        %v1707 = vadd.f32 0.0, %v1706
        %1708 = vmatprep.mubr.f32.mxu0 0.0
        %1709 = vmatmul.mubr.f32.gmra.mrb[0].mxu0 %v1501
        %v1710 = vpop.f32.mrb[0].mxu0
        %v1711 = vadd.f32 0.0, %v1710
        %v1712 = vpop.f32.mrb[0].mxu0
        %v1713 = vadd.f32 0.0, %v1712
        %1714 = vmatprep.mubr.f32.mxu0 0.0
        %1715 = vmatmul.mubr.f32.gmra.mrb[0].mxu0 %v1504
        %v1716 = vpop.f32.mrb[0].mxu0
        %v1717 = vadd.f32 0.0, %v1716
        %v1718 = vpop.f32.mrb[0].mxu0
        %v1719 = vadd.f32 0.0, %v1718
        %1720 = vmatprep.mubr.f32.mxu0 0.0
        %1721 = vmatmul.mubr.f32.gmra.mrb[0].mxu0 %v1507
        %v1722 = vpop.f32.mrb[0].mxu0
        %v1723 = vadd.f32 0.0, %v1722
        %v1724 = vpop.f32.mrb[0].mxu0
        %v1725 = vadd.f32 0.0, %v1724
        %1726 = vmatprep.mubr.f32.mxu0 0.0
        %1727 = vmatmul.mubr.f32.gmra.mrb[0].mxu0 %v1510
        %v1728 = vpop.f32.mrb[0].mxu0
        %v1729 = vadd.f32 0.0, %v1728
        %v1730 = vpop.f32.mrb[0].mxu0
        %v1731 = vadd.f32 0.0, %v1730
        %1732 = vmatprep.mubr.f32.mxu0 0.0
        %1733 = vmatmul.mubr.f32.gmra.mrb[0].mxu0 %v1513
        %v1734 = vpop.f32.mrb[0].mxu0
        %v1735 = vadd.f32 0.0, %v1734
        %v1736 = vpop.f32.mrb[0].mxu0
        %v1737 = vadd.f32 0.0, %v1736
        %1738 = vmatprep.mubr.f32.mxu0 0.0
        %1739 = vmatmul.mubr.f32.gmra.mrb[0].mxu0 %v1516
        %v1740 = vpop.f32.mrb[0].mxu0
        %v1741 = vadd.f32 0.0, %v1740
        %v1742 = vpop.f32.mrb[0].mxu0
        %v1743 = vadd.f32 0.0, %v1742
        %1744 = vmatprep.mubr.f32.mxu0 0.0
        %1745 = vmatmul.mubr.f32.gmra.mrb[0].mxu0 %v1519
        %v1746 = vpop.f32.mrb[0].mxu0
        %v1747 = vadd.f32 0.0, %v1746
        %v1748 = vpop.f32.mrb[0].mxu0
        %v1749 = vadd.f32 0.0, %v1748
        %1750 = vmatprep.mubr.f32.mxu0 0.0
        %1751 = vmatmul.mubr.f32.gmra.mrb[0].mxu0 %v1522
        %v1752 = vpop.f32.mrb[0].mxu0
        %v1753 = vadd.f32 0.0, %v1752
        %v1754 = vpop.f32.mrb[0].mxu0
        %v1755 = vadd.f32 0.0, %v1754
        %1756 = vmatprep.mubr.f32.mxu0 0.0
        %1757 = vmatmul.mubr.f32.gmra.mrb[0].mxu0 %v1525
        %v1758 = vpop.f32.mrb[0].mxu0
        %v1759 = vadd.f32 0.0, %v1758
        %v1760 = vpop.f32.mrb[0].mxu0
        %v1761 = vadd.f32 0.0, %v1760
        %1762 = vmatprep.mubr.f32.mxu0 0.0
        %1763 = vmatmul.mubr.f32.gmra.mrb[0].mxu0 %v1528
        %v1764 = vpop.f32.mrb[0].mxu0
        %v1765 = vadd.f32 0.0, %v1764
        %v1766 = vpop.f32.mrb[0].mxu0
        %v1767 = vadd.f32 0.0, %v1766
        %1768 = vmatprep.mubr.f32.mxu0 0.0
        %1769 = vmatmul.mubr.f32.gmra.mrb[0].mxu0 %v1531
        %v1770 = vpop.f32.mrb[0].mxu0
        %v1771 = vadd.f32 0.0, %v1770
        %v1772 = vpop.f32.mrb[0].mxu0
        %v1773 = vadd.f32 0.0, %v1772
        %1774 = vmatprep.mubr.f32.mxu0 0.0
        %1775 = vmatmul.mubr.f32.gmra.mrb[0].mxu0 %v1534
        %v1776 = vpop.f32.mrb[0].mxu0
        %v1777 = vadd.f32 0.0, %v1776
        %v1778 = vpop.f32.mrb[0].mxu0
        %v1779 = vadd.f32 0.0, %v1778
        %1780 = vmatprep.mubr.f32.mxu0 0.0
        %1781 = vmatmul.mubr.f32.gmra.mrb[0].mxu0 %v1537
        %v1782 = vpop.f32.mrb[0].mxu0
        %v1783 = vadd.f32 0.0, %v1782
        %v1784 = vpop.f32.mrb[0].mxu0
        %v1785 = vadd.f32 0.0, %v1784
        %1786 = vmatprep.mubr.f32.mxu0 0.0
        %1787 = vmatmul.mubr.f32.gmra.mrb[0].mxu0 %v1540
        %v1788 = vpop.f32.mrb[0].mxu0
        %v1789 = vadd.f32 0.0, %v1788
        %v1790 = vpop.f32.mrb[0].mxu0
        %v1791 = vadd.f32 0.0, %v1790
        %1792 = vmatprep.mubr.f32.mxu0 0.0
        %1793 = vmatmul.mubr.f32.gmra.mrb[0].mxu0 %v1543
        %v1794 = vpop.f32.mrb[0].mxu0
        %v1795 = vadd.f32 0.0, %v1794
        %v1796 = vpop.f32.mrb[0].mxu0
        %v1797 = vadd.f32 0.0, %v1796
        %1798 = vmatprep.mubr.f32.mxu0 0.0
        %1799 = vmatmul.mubr.f32.gmra.mrb[0].mxu0 %v1546
        %v1800 = vpop.f32.mrb[0].mxu0
        %v1801 = vadd.f32 0.0, %v1800
        %v1802 = vpop.f32.mrb[0].mxu0
        %v1803 = vadd.f32 0.0, %v1802
        %1804 = vdwg.mxu0
        %v1806 = vsel %vm745, %v697, 0
        %v1809 = vsel %vm745, %v698, 0
        %v1812 = vsel %vm745, %v699, 0
        %v1815 = vsel %vm745, %v700, 0
        %v1818 = vsel %vm745, %v701, 0
        %v1821 = vsel %vm745, %v702, 0
        %v1824 = vsel %vm745, %v703, 0
        %v1827 = vsel %vm745, %v704, 0
        %v1830 = vsel %vm745, %v705, 0
        %v1833 = vsel %vm745, %v706, 0
        %v1836 = vsel %vm745, %v707, 0
        %v1839 = vsel %vm745, %v708, 0
        %v1842 = vsel %vm745, %v709, 0
        %v1845 = vsel %vm745, %v710, 0
        %v1848 = vsel %vm745, %v711, 0
        %v1851 = vsel %vm745, %v712, 0
        %v1854 = vsel %vm745, %v729, 0
        %v1857 = vsel %vm745, %v730, 0
        %v1860 = vsel %vm745, %v731, 0
        %v1863 = vsel %vm745, %v732, 0
        %v1866 = vsel %vm745, %v733, 0
        %v1869 = vsel %vm745, %v734, 0
        %v1872 = vsel %vm745, %v735, 0
        %v1875 = vsel %vm745, %v736, 0
        %v1878 = vsel %vm745, %v737, 0
        %v1881 = vsel %vm745, %v738, 0
        %v1884 = vsel %vm745, %v739, 0
        %v1887 = vsel %vm745, %v740, 0
        %v1890 = vsel %vm745, %v741, 0
        %v1893 = vsel %vm745, %v742, 0
        %v1896 = vsel %vm745, %v743, 0
        %v1899 = vsel %vm745, %v744, 0
        %1901 = vmatprep.subr.mxu0 %v463
        %1902 = vmatpush1.msra.mxu0 %v461
        %1903 = vmatprep.subr.mxu0 0.0
        %1904 = vmatpush1.msra.mxu0 0.0
        %1905 = vmatprep.subr.mxu0 0.0
        %1906 = vmatpush1.msra.mxu0 0.0
        %1907 = vmatprep.subr.mxu0 0.0
        %1908 = vmatpush1.msra.mxu0 0.0
        %1909 = vmatprep.subr.mxu0 0.0
        %1910 = vmatpush1.msra.mxu0 0.0
        %1911 = vmatprep.subr.mxu0 0.0
        %1912 = vmatpush1.msra.mxu0 0.0
        %1913 = vmatprep.subr.mxu0 0.0
        %1914 = vmatpush1.msra.mxu0 0.0
        %1915 = vmatprep.subr.mxu0 0.0
        %1916 = vmatpush1.msra.mxu0 0.0
        %1917 = vmatprep.subr.mxu0 0.0
        %1918 = vmatpush1.msra.mxu0 0.0
        %1919 = vmatprep.subr.mxu0 0.0
        %1920 = vmatpush1.msra.mxu0 0.0
        %1921 = vmatprep.subr.mxu0 0.0
        %1922 = vmatpush1.msra.mxu0 0.0
        %1923 = vmatprep.subr.mxu0 0.0
        %1924 = vmatpush1.msra.mxu0 0.0
        %1925 = vmatprep.subr.mxu0 0.0
        %1926 = vmatpush1.msra.mxu0 0.0
        %1927 = vmatprep.subr.mxu0 0.0
        %1928 = vmatpush1.msra.mxu0 0.0
        %1929 = vmatprep.subr.mxu0 0.0
        %1930 = vmatpush1.msra.mxu0 0.0
        %1931 = vmatprep.subr.mxu0 0.0
        %1932 = vmatpush1.msra.mxu0 0.0
        %1933 = vmatprep.subr.mxu0 0.0
        %1934 = vmatpush1.msra.mxu0 0.0
        %1935 = vmatprep.subr.mxu0 0.0
        %1936 = vmatpush1.msra.mxu0 0.0
        %1937 = vmatprep.subr.mxu0 0.0
        %1938 = vmatpush1.msra.mxu0 0.0
        %1939 = vmatprep.subr.mxu0 0.0
        %1940 = vmatpush1.msra.mxu0 0.0
        %1941 = vmatprep.subr.mxu0 0.0
        %1942 = vmatpush1.msra.mxu0 0.0
        %1943 = vmatprep.subr.mxu0 0.0
        %1944 = vmatpush1.msra.mxu0 0.0
        %1945 = vmatprep.subr.mxu0 0.0
        %1946 = vmatpush1.msra.mxu0 0.0
        %1947 = vmatprep.subr.mxu0 0.0
        %1948 = vmatpush1.msra.mxu0 0.0
        %1949 = vmatprep.subr.mxu0 0.0
        %1950 = vmatpush1.msra.mxu0 0.0
        %1951 = vmatprep.subr.mxu0 0.0
        %1952 = vmatpush1.msra.mxu0 0.0
        %1953 = vmatprep.subr.mxu0 0.0
        %1954 = vmatpush1.msra.mxu0 0.0
        %1955 = vmatprep.subr.mxu0 0.0
        %1956 = vmatpush1.msra.mxu0 0.0
        %1957 = vmatprep.subr.mxu0 0.0
        %1958 = vmatpush1.msra.mxu0 0.0
        %1959 = vmatprep.subr.mxu0 0.0
        %1960 = vmatpush1.msra.mxu0 0.0
        %1961 = vmatprep.subr.mxu0 0.0
        %1962 = vmatpush1.msra.mxu0 0.0
        %1963 = vmatprep.subr.mxu0 0.0
        %1964 = vmatpush1.msra.mxu0 0.0
        %1965 = vmatprep.mubr.f32.mxu0 0.0
        %1966 = vmatmul.mubr.f32.gmra.mrb[0].mxu0 %v1806
        %v1967 = vpop.f32.mrb[0].mxu0
        %v1968 = vadd.f32 0.0, %v1967
        %v1969 = vpop.f32.mrb[0].mxu0
        %v1970 = vadd.f32 0.0, %v1969
        %1971 = vmatprep.mubr.f32.mxu0 0.0
        %1972 = vmatmul.mubr.f32.gmra.mrb[0].mxu0 %v1809
        %v1973 = vpop.f32.mrb[0].mxu0
        %v1974 = vadd.f32 0.0, %v1973
        %v1975 = vpop.f32.mrb[0].mxu0
        %v1976 = vadd.f32 0.0, %v1975
        %1977 = vmatprep.mubr.f32.mxu0 0.0
        %1978 = vmatmul.mubr.f32.gmra.mrb[0].mxu0 %v1812
        %v1979 = vpop.f32.mrb[0].mxu0
        %v1980 = vadd.f32 0.0, %v1979
        %v1981 = vpop.f32.mrb[0].mxu0
        %v1982 = vadd.f32 0.0, %v1981
        %1983 = vmatprep.mubr.f32.mxu0 0.0
        %1984 = vmatmul.mubr.f32.gmra.mrb[0].mxu0 %v1815
        %v1985 = vpop.f32.mrb[0].mxu0
        %v1986 = vadd.f32 0.0, %v1985
        %v1987 = vpop.f32.mrb[0].mxu0
        %v1988 = vadd.f32 0.0, %v1987
        %1989 = vmatprep.mubr.f32.mxu0 0.0
        %1990 = vmatmul.mubr.f32.gmra.mrb[0].mxu0 %v1818
        %v1991 = vpop.f32.mrb[0].mxu0
        %v1992 = vadd.f32 0.0, %v1991
        %v1993 = vpop.f32.mrb[0].mxu0
        %v1994 = vadd.f32 0.0, %v1993
        %1995 = vmatprep.mubr.f32.mxu0 0.0
        %1996 = vmatmul.mubr.f32.gmra.mrb[0].mxu0 %v1821
        %v1997 = vpop.f32.mrb[0].mxu0
        %v1998 = vadd.f32 0.0, %v1997
        %v1999 = vpop.f32.mrb[0].mxu0
        %v2000 = vadd.f32 0.0, %v1999
        %2001 = vmatprep.mubr.f32.mxu0 0.0
        %2002 = vmatmul.mubr.f32.gmra.mrb[0].mxu0 %v1824
        %v2003 = vpop.f32.mrb[0].mxu0
        %v2004 = vadd.f32 0.0, %v2003
        %v2005 = vpop.f32.mrb[0].mxu0
        %v2006 = vadd.f32 0.0, %v2005
        %2007 = vmatprep.mubr.f32.mxu0 0.0
        %2008 = vmatmul.mubr.f32.gmra.mrb[0].mxu0 %v1827
        %v2009 = vpop.f32.mrb[0].mxu0
        %v2010 = vadd.f32 0.0, %v2009
        %v2011 = vpop.f32.mrb[0].mxu0
        %v2012 = vadd.f32 0.0, %v2011
        %2013 = vmatprep.mubr.f32.mxu0 0.0
        %2014 = vmatmul.mubr.f32.gmra.mrb[0].mxu0 %v1830
        %v2015 = vpop.f32.mrb[0].mxu0
        %v2016 = vadd.f32 0.0, %v2015
        %v2017 = vpop.f32.mrb[0].mxu0
        %v2018 = vadd.f32 0.0, %v2017
        %2019 = vmatprep.mubr.f32.mxu0 0.0
        %2020 = vmatmul.mubr.f32.gmra.mrb[0].mxu0 %v1833
        %v2021 = vpop.f32.mrb[0].mxu0
        %v2022 = vadd.f32 0.0, %v2021
        %v2023 = vpop.f32.mrb[0].mxu0
        %v2024 = vadd.f32 0.0, %v2023
        %2025 = vmatprep.mubr.f32.mxu0 0.0
        %2026 = vmatmul.mubr.f32.gmra.mrb[0].mxu0 %v1836
        %v2027 = vpop.f32.mrb[0].mxu0
        %v2028 = vadd.f32 0.0, %v2027
        %v2029 = vpop.f32.mrb[0].mxu0
        %v2030 = vadd.f32 0.0, %v2029
        %2031 = vmatprep.mubr.f32.mxu0 0.0
        %2032 = vmatmul.mubr.f32.gmra.mrb[0].mxu0 %v1839
        %v2033 = vpop.f32.mrb[0].mxu0
        %v2034 = vadd.f32 0.0, %v2033
        %v2035 = vpop.f32.mrb[0].mxu0
        %v2036 = vadd.f32 0.0, %v2035
        %2037 = vmatprep.mubr.f32.mxu0 0.0
        %2038 = vmatmul.mubr.f32.gmra.mrb[0].mxu0 %v1842
        %v2039 = vpop.f32.mrb[0].mxu0
        %v2040 = vadd.f32 0.0, %v2039
        %v2041 = vpop.f32.mrb[0].mxu0
        %v2042 = vadd.f32 0.0, %v2041
        %2043 = vmatprep.mubr.f32.mxu0 0.0
        %2044 = vmatmul.mubr.f32.gmra.mrb[0].mxu0 %v1845
        %v2045 = vpop.f32.mrb[0].mxu0
        %v2046 = vadd.f32 0.0, %v2045
        %v2047 = vpop.f32.mrb[0].mxu0
        %v2048 = vadd.f32 0.0, %v2047
        %2049 = vmatprep.mubr.f32.mxu0 0.0
        %2050 = vmatmul.mubr.f32.gmra.mrb[0].mxu0 %v1848
        %v2051 = vpop.f32.mrb[0].mxu0
        %v2052 = vadd.f32 0.0, %v2051
        %v2053 = vpop.f32.mrb[0].mxu0
        %v2054 = vadd.f32 0.0, %v2053
        %2055 = vmatprep.mubr.f32.mxu0 0.0
        %2056 = vmatmul.mubr.f32.gmra.mrb[0].mxu0 %v1851
        %v2057 = vpop.f32.mrb[0].mxu0
        %v2058 = vadd.f32 0.0, %v2057
        %v2059 = vpop.f32.mrb[0].mxu0
        %v2060 = vadd.f32 0.0, %v2059
        %2061 = vmatprep.mubr.f32.mxu0 0.0
        %2062 = vmatmul.mubr.f32.gmra.mrb[0].mxu0 %v1854
        %v2063 = vpop.f32.mrb[0].mxu0
        %v2064 = vadd.f32 0.0, %v2063
        %v2065 = vpop.f32.mrb[0].mxu0
        %v2066 = vadd.f32 0.0, %v2065
        %2067 = vmatprep.mubr.f32.mxu0 0.0
        %2068 = vmatmul.mubr.f32.gmra.mrb[0].mxu0 %v1857
        %v2069 = vpop.f32.mrb[0].mxu0
        %v2070 = vadd.f32 0.0, %v2069
        %v2071 = vpop.f32.mrb[0].mxu0
        %v2072 = vadd.f32 0.0, %v2071
        %2073 = vmatprep.mubr.f32.mxu0 0.0
        %2074 = vmatmul.mubr.f32.gmra.mrb[0].mxu0 %v1860
        %v2075 = vpop.f32.mrb[0].mxu0
        %v2076 = vadd.f32 0.0, %v2075
        %v2077 = vpop.f32.mrb[0].mxu0
        %v2078 = vadd.f32 0.0, %v2077
        %2079 = vmatprep.mubr.f32.mxu0 0.0
        %2080 = vmatmul.mubr.f32.gmra.mrb[0].mxu0 %v1863
        %v2081 = vpop.f32.mrb[0].mxu0
        %v2082 = vadd.f32 0.0, %v2081
        %v2083 = vpop.f32.mrb[0].mxu0
        %v2084 = vadd.f32 0.0, %v2083
        %2085 = vmatprep.mubr.f32.mxu0 0.0
        %2086 = vmatmul.mubr.f32.gmra.mrb[0].mxu0 %v1866
        %v2087 = vpop.f32.mrb[0].mxu0
        %v2088 = vadd.f32 0.0, %v2087
        %v2089 = vpop.f32.mrb[0].mxu0
        %v2090 = vadd.f32 0.0, %v2089
        %2091 = vmatprep.mubr.f32.mxu0 0.0
        %2092 = vmatmul.mubr.f32.gmra.mrb[0].mxu0 %v1869
        %v2093 = vpop.f32.mrb[0].mxu0
        %v2094 = vadd.f32 0.0, %v2093
        %v2095 = vpop.f32.mrb[0].mxu0
        %v2096 = vadd.f32 0.0, %v2095
        %2097 = vmatprep.mubr.f32.mxu0 0.0
        %2098 = vmatmul.mubr.f32.gmra.mrb[0].mxu0 %v1872
        %v2099 = vpop.f32.mrb[0].mxu0
        %v2100 = vadd.f32 0.0, %v2099
        %v2101 = vpop.f32.mrb[0].mxu0
        %v2102 = vadd.f32 0.0, %v2101
        %2103 = vmatprep.mubr.f32.mxu0 0.0
        %2104 = vmatmul.mubr.f32.gmra.mrb[0].mxu0 %v1875
        %v2105 = vpop.f32.mrb[0].mxu0
        %v2106 = vadd.f32 0.0, %v2105
        %v2107 = vpop.f32.mrb[0].mxu0
        %v2108 = vadd.f32 0.0, %v2107
        %2109 = vmatprep.mubr.f32.mxu0 0.0
        %2110 = vmatmul.mubr.f32.gmra.mrb[0].mxu0 %v1878
        %v2111 = vpop.f32.mrb[0].mxu0
        %v2112 = vadd.f32 0.0, %v2111
        %v2113 = vpop.f32.mrb[0].mxu0
        %v2114 = vadd.f32 0.0, %v2113
        %2115 = vmatprep.mubr.f32.mxu0 0.0
        %2116 = vmatmul.mubr.f32.gmra.mrb[0].mxu0 %v1881
        %v2117 = vpop.f32.mrb[0].mxu0
        %v2118 = vadd.f32 0.0, %v2117
        %v2119 = vpop.f32.mrb[0].mxu0
        %v2120 = vadd.f32 0.0, %v2119
        %2121 = vmatprep.mubr.f32.mxu0 0.0
        %2122 = vmatmul.mubr.f32.gmra.mrb[0].mxu0 %v1884
        %v2123 = vpop.f32.mrb[0].mxu0
        %v2124 = vadd.f32 0.0, %v2123
        %v2125 = vpop.f32.mrb[0].mxu0
        %v2126 = vadd.f32 0.0, %v2125
        %2127 = vmatprep.mubr.f32.mxu0 0.0
        %2128 = vmatmul.mubr.f32.gmra.mrb[0].mxu0 %v1887
        %v2129 = vpop.f32.mrb[0].mxu0
        %v2130 = vadd.f32 0.0, %v2129
        %v2131 = vpop.f32.mrb[0].mxu0
        %v2132 = vadd.f32 0.0, %v2131
        %2133 = vmatprep.mubr.f32.mxu0 0.0
        %2134 = vmatmul.mubr.f32.gmra.mrb[0].mxu0 %v1890
        %v2135 = vpop.f32.mrb[0].mxu0
        %v2136 = vadd.f32 0.0, %v2135
        %v2137 = vpop.f32.mrb[0].mxu0
        %v2138 = vadd.f32 0.0, %v2137
        %2139 = vmatprep.mubr.f32.mxu0 0.0
        %2140 = vmatmul.mubr.f32.gmra.mrb[0].mxu0 %v1893
        %v2141 = vpop.f32.mrb[0].mxu0
        %v2142 = vadd.f32 0.0, %v2141
        %v2143 = vpop.f32.mrb[0].mxu0
        %v2144 = vadd.f32 0.0, %v2143
        %2145 = vmatprep.mubr.f32.mxu0 0.0
        %2146 = vmatmul.mubr.f32.gmra.mrb[0].mxu0 %v1896
        %v2147 = vpop.f32.mrb[0].mxu0
        %v2148 = vadd.f32 0.0, %v2147
        %v2149 = vpop.f32.mrb[0].mxu0
        %v2150 = vadd.f32 0.0, %v2149
        %2151 = vmatprep.mubr.f32.mxu0 0.0
        %2152 = vmatmul.mubr.f32.gmra.mrb[0].mxu0 %v1899
        %v2153 = vpop.f32.mrb[0].mxu0
        %v2154 = vadd.f32 0.0, %v2153
        %v2155 = vpop.f32.mrb[0].mxu0
        %v2156 = vadd.f32 0.0, %v2155
        %2157 = vdwg.mxu0
        %v2158 = vmax.f32 %v909, %v911
        %2159 = vmax.xlane.f32.xlu0 %v2158
        %v2160 = vpop.xlane.xlu0 %2159
        %v2161 = vmax.f32 %v915, %v917
        %2162 = vmax.xlane.f32.xlu0 %v2161
        %v2163 = vpop.xlane.xlu0 %2162
        %v2164 = vmax.f32 %v921, %v923
        %2165 = vmax.xlane.f32.xlu0 %v2164
        %v2166 = vpop.xlane.xlu0 %2165
        %v2167 = vmax.f32 %v927, %v929
        %2168 = vmax.xlane.f32.xlu0 %v2167
        %v2169 = vpop.xlane.xlu0 %2168
        %v2170 = vmax.f32 %v933, %v935
        %2171 = vmax.xlane.f32.xlu0 %v2170
        %v2172 = vpop.xlane.xlu0 %2171
        %v2173 = vmax.f32 %v939, %v941
        %2174 = vmax.xlane.f32.xlu0 %v2173
        %v2175 = vpop.xlane.xlu0 %2174
        %v2176 = vmax.f32 %v945, %v947
        %2177 = vmax.xlane.f32.xlu0 %v2176
        %v2178 = vpop.xlane.xlu0 %2177
        %v2179 = vmax.f32 %v951, %v953
        %2180 = vmax.xlane.f32.xlu0 %v2179
        %v2181 = vpop.xlane.xlu0 %2180
        %v2182 = vmax.f32 %v957, %v959
        %2183 = vmax.xlane.f32.xlu0 %v2182
        %v2184 = vpop.xlane.xlu0 %2183
        %v2185 = vmax.f32 %v963, %v965
        %2186 = vmax.xlane.f32.xlu0 %v2185
        %v2187 = vpop.xlane.xlu0 %2186
        %v2188 = vmax.f32 %v969, %v971
        %2189 = vmax.xlane.f32.xlu0 %v2188
        %v2190 = vpop.xlane.xlu0 %2189
        %v2191 = vmax.f32 %v975, %v977
        %2192 = vmax.xlane.f32.xlu0 %v2191
        %v2193 = vpop.xlane.xlu0 %2192
        %v2194 = vmax.f32 %v981, %v983
        %2195 = vmax.xlane.f32.xlu0 %v2194
        %v2196 = vpop.xlane.xlu0 %2195
        %v2197 = vmax.f32 %v987, %v989
        %2198 = vmax.xlane.f32.xlu0 %v2197
        %v2199 = vpop.xlane.xlu0 %2198
        %v2200 = vmax.f32 %v993, %v995
        %2201 = vmax.xlane.f32.xlu0 %v2200
        %v2202 = vpop.xlane.xlu0 %2201
        %v2203 = vmax.f32 %v999, %v1001
        %2204 = vmax.xlane.f32.xlu0 %v2203
        %v2205 = vpop.xlane.xlu0 %2204
        %v2206 = vmax.f32 %v1005, %v1007
        %2207 = vmax.xlane.f32.xlu0 %v2206
        %v2208 = vpop.xlane.xlu0 %2207
        %v2209 = vmax.f32 %v1011, %v1013
        %2210 = vmax.xlane.f32.xlu0 %v2209
        %v2211 = vpop.xlane.xlu0 %2210
        %v2212 = vmax.f32 %v1017, %v1019
        %2213 = vmax.xlane.f32.xlu0 %v2212
        %v2214 = vpop.xlane.xlu0 %2213
        %v2215 = vmax.f32 %v1023, %v1025
        %2216 = vmax.xlane.f32.xlu0 %v2215
        %v2217 = vpop.xlane.xlu0 %2216
        %v2218 = vmax.f32 %v1029, %v1031
        %2219 = vmax.xlane.f32.xlu0 %v2218
        %v2220 = vpop.xlane.xlu0 %2219
        %v2221 = vmax.f32 %v1035, %v1037
        %2222 = vmax.xlane.f32.xlu0 %v2221
        %v2223 = vpop.xlane.xlu0 %2222
        %v2224 = vmax.f32 %v1041, %v1043
        %2225 = vmax.xlane.f32.xlu0 %v2224
        %v2226 = vpop.xlane.xlu0 %2225
        %v2227 = vmax.f32 %v1047, %v1049
        %2228 = vmax.xlane.f32.xlu0 %v2227
        %v2229 = vpop.xlane.xlu0 %2228
        %v2230 = vmax.f32 %v1053, %v1055
        %2231 = vmax.xlane.f32.xlu0 %v2230
        %v2232 = vpop.xlane.xlu0 %2231
        %v2233 = vmax.f32 %v1059, %v1061
        %2234 = vmax.xlane.f32.xlu0 %v2233
        %v2235 = vpop.xlane.xlu0 %2234
        %v2236 = vmax.f32 %v1065, %v1067
        %2237 = vmax.xlane.f32.xlu0 %v2236
        %v2238 = vpop.xlane.xlu0 %2237
        %v2239 = vmax.f32 %v1071, %v1073
        %2240 = vmax.xlane.f32.xlu0 %v2239
        %v2241 = vpop.xlane.xlu0 %2240
        %v2242 = vmax.f32 %v1077, %v1079
        %2243 = vmax.xlane.f32.xlu0 %v2242
        %v2244 = vpop.xlane.xlu0 %2243
        %v2245 = vmax.f32 %v1083, %v1085
        %2246 = vmax.xlane.f32.xlu0 %v2245
        %v2247 = vpop.xlane.xlu0 %2246
        %v2248 = vmax.f32 %v1089, %v1091
        %2249 = vmax.xlane.f32.xlu0 %v2248
        %v2250 = vpop.xlane.xlu0 %2249
        %v2251 = vmax.f32 %v1095, %v1097
        %2252 = vmax.xlane.f32.xlu0 %v2251
        %v2253 = vpop.xlane.xlu0 %2252
        %v2254 = vmax.f32 %v1262, %v1264
        %2255 = vmax.xlane.f32.xlu0 %v2254
        %v2256 = vpop.xlane.xlu0 %2255
        %v2257 = vmax.f32 %v1268, %v1270
        %2258 = vmax.xlane.f32.xlu0 %v2257
        %v2259 = vpop.xlane.xlu0 %2258
        %v2260 = vmax.f32 %v1274, %v1276
        %2261 = vmax.xlane.f32.xlu0 %v2260
        %v2262 = vpop.xlane.xlu0 %2261
        %v2263 = vmax.f32 %v1280, %v1282
        %2264 = vmax.xlane.f32.xlu0 %v2263
        %v2265 = vpop.xlane.xlu0 %2264
        %v2266 = vmax.f32 %v1286, %v1288
        %2267 = vmax.xlane.f32.xlu0 %v2266
        %v2268 = vpop.xlane.xlu0 %2267
        %v2269 = vmax.f32 %v1292, %v1294
        %2270 = vmax.xlane.f32.xlu0 %v2269
        %v2271 = vpop.xlane.xlu0 %2270
        %v2272 = vmax.f32 %v1298, %v1300
        %2273 = vmax.xlane.f32.xlu0 %v2272
        %v2274 = vpop.xlane.xlu0 %2273
        %v2275 = vmax.f32 %v1304, %v1306
        %2276 = vmax.xlane.f32.xlu0 %v2275
        %v2277 = vpop.xlane.xlu0 %2276
        %v2278 = vmax.f32 %v1310, %v1312
        %2279 = vmax.xlane.f32.xlu0 %v2278
        %v2280 = vpop.xlane.xlu0 %2279
        %v2281 = vmax.f32 %v1316, %v1318
        %2282 = vmax.xlane.f32.xlu0 %v2281
        %v2283 = vpop.xlane.xlu0 %2282
        %v2284 = vmax.f32 %v1322, %v1324
        %2285 = vmax.xlane.f32.xlu0 %v2284
        %v2286 = vpop.xlane.xlu0 %2285
        %v2287 = vmax.f32 %v1328, %v1330
        %2288 = vmax.xlane.f32.xlu0 %v2287
        %v2289 = vpop.xlane.xlu0 %2288
        %v2290 = vmax.f32 %v1334, %v1336
        %2291 = vmax.xlane.f32.xlu0 %v2290
        %v2292 = vpop.xlane.xlu0 %2291
        %v2293 = vmax.f32 %v1340, %v1342
        %2294 = vmax.xlane.f32.xlu0 %v2293
        %v2295 = vpop.xlane.xlu0 %2294
        %v2296 = vmax.f32 %v1346, %v1348
        %2297 = vmax.xlane.f32.xlu0 %v2296
        %v2298 = vpop.xlane.xlu0 %2297
        %v2299 = vmax.f32 %v1352, %v1354
        %2300 = vmax.xlane.f32.xlu0 %v2299
        %v2301 = vpop.xlane.xlu0 %2300
        %v2302 = vmax.f32 %v1358, %v1360
        %2303 = vmax.xlane.f32.xlu0 %v2302
        %v2304 = vpop.xlane.xlu0 %2303
        %v2305 = vmax.f32 %v1364, %v1366
        %2306 = vmax.xlane.f32.xlu0 %v2305
        %v2307 = vpop.xlane.xlu0 %2306
        %v2308 = vmax.f32 %v1370, %v1372
        %2309 = vmax.xlane.f32.xlu0 %v2308
        %v2310 = vpop.xlane.xlu0 %2309
        %v2311 = vmax.f32 %v1376, %v1378
        %2312 = vmax.xlane.f32.xlu0 %v2311
        %v2313 = vpop.xlane.xlu0 %2312
        %v2314 = vmax.f32 %v1382, %v1384
        %2315 = vmax.xlane.f32.xlu0 %v2314
        %v2316 = vpop.xlane.xlu0 %2315
        %v2317 = vmax.f32 %v1388, %v1390
        %2318 = vmax.xlane.f32.xlu0 %v2317
        %v2319 = vpop.xlane.xlu0 %2318
        %v2320 = vmax.f32 %v1394, %v1396
        %2321 = vmax.xlane.f32.xlu0 %v2320
        %v2322 = vpop.xlane.xlu0 %2321
        %v2323 = vmax.f32 %v1400, %v1402
        %2324 = vmax.xlane.f32.xlu0 %v2323
        %v2325 = vpop.xlane.xlu0 %2324
        %v2326 = vmax.f32 %v1406, %v1408
        %2327 = vmax.xlane.f32.xlu0 %v2326
        %v2328 = vpop.xlane.xlu0 %2327
        %v2329 = vmax.f32 %v1412, %v1414
        %2330 = vmax.xlane.f32.xlu0 %v2329
        %v2331 = vpop.xlane.xlu0 %2330
        %v2332 = vmax.f32 %v1418, %v1420
        %2333 = vmax.xlane.f32.xlu0 %v2332
        %v2334 = vpop.xlane.xlu0 %2333
        %v2335 = vmax.f32 %v1424, %v1426
        %2336 = vmax.xlane.f32.xlu0 %v2335
        %v2337 = vpop.xlane.xlu0 %2336
        %v2338 = vmax.f32 %v1430, %v1432
        %2339 = vmax.xlane.f32.xlu0 %v2338
        %v2340 = vpop.xlane.xlu0 %2339
        %v2341 = vmax.f32 %v1436, %v1438
        %2342 = vmax.xlane.f32.xlu0 %v2341
        %v2343 = vpop.xlane.xlu0 %2342
        %v2344 = vmax.f32 %v1442, %v1444
        %2345 = vmax.xlane.f32.xlu0 %v2344
        %v2346 = vpop.xlane.xlu0 %2345
        %v2347 = vmax.f32 %v1448, %v1450
        %2348 = vmax.xlane.f32.xlu0 %v2347
        %v2349 = vpop.xlane.xlu0 %2348
        %v2350 = vmax.f32 %v1615, %v1617
        %2351 = vmax.xlane.f32.xlu0 %v2350
        %v2352 = vpop.xlane.xlu0 %2351
        %v2353 = vmax.f32 %v1621, %v1623
        %2354 = vmax.xlane.f32.xlu0 %v2353
        %v2355 = vpop.xlane.xlu0 %2354
        %v2356 = vmax.f32 %v1627, %v1629
        %2357 = vmax.xlane.f32.xlu0 %v2356
        %v2358 = vpop.xlane.xlu0 %2357
        %v2359 = vmax.f32 %v1633, %v1635
        %2360 = vmax.xlane.f32.xlu0 %v2359
        %v2361 = vpop.xlane.xlu0 %2360
        %v2362 = vmax.f32 %v1639, %v1641
        %2363 = vmax.xlane.f32.xlu0 %v2362
        %v2364 = vpop.xlane.xlu0 %2363
        %v2365 = vmax.f32 %v1645, %v1647
        %2366 = vmax.xlane.f32.xlu0 %v2365
        %v2367 = vpop.xlane.xlu0 %2366
        %v2368 = vmax.f32 %v1651, %v1653
        %2369 = vmax.xlane.f32.xlu0 %v2368
        %v2370 = vpop.xlane.xlu0 %2369
        %v2371 = vmax.f32 %v1657, %v1659
        %2372 = vmax.xlane.f32.xlu0 %v2371
        %v2373 = vpop.xlane.xlu0 %2372
        %v2374 = vmax.f32 %v1663, %v1665
        %2375 = vmax.xlane.f32.xlu0 %v2374
        %v2376 = vpop.xlane.xlu0 %2375
        %v2377 = vmax.f32 %v1669, %v1671
        %2378 = vmax.xlane.f32.xlu0 %v2377
        %v2379 = vpop.xlane.xlu0 %2378
        %v2380 = vmax.f32 %v1675, %v1677
        %2381 = vmax.xlane.f32.xlu0 %v2380
        %v2382 = vpop.xlane.xlu0 %2381
        %v2383 = vmax.f32 %v1681, %v1683
        %2384 = vmax.xlane.f32.xlu0 %v2383
        %v2385 = vpop.xlane.xlu0 %2384
        %v2386 = vmax.f32 %v1687, %v1689
        %2387 = vmax.xlane.f32.xlu0 %v2386
        %v2388 = vpop.xlane.xlu0 %2387
        %v2389 = vmax.f32 %v1693, %v1695
        %2390 = vmax.xlane.f32.xlu0 %v2389
        %v2391 = vpop.xlane.xlu0 %2390
        %v2392 = vmax.f32 %v1699, %v1701
        %2393 = vmax.xlane.f32.xlu0 %v2392
        %v2394 = vpop.xlane.xlu0 %2393
        %v2395 = vmax.f32 %v1705, %v1707
        %2396 = vmax.xlane.f32.xlu0 %v2395
        %v2397 = vpop.xlane.xlu0 %2396
        %v2398 = vmax.f32 %v1711, %v1713
        %2399 = vmax.xlane.f32.xlu0 %v2398
        %v2400 = vpop.xlane.xlu0 %2399
        %v2401 = vmax.f32 %v1717, %v1719
        %2402 = vmax.xlane.f32.xlu0 %v2401
        %v2403 = vpop.xlane.xlu0 %2402
        %v2404 = vmax.f32 %v1723, %v1725
        %2405 = vmax.xlane.f32.xlu0 %v2404
        %v2406 = vpop.xlane.xlu0 %2405
        %v2407 = vmax.f32 %v1729, %v1731
        %2408 = vmax.xlane.f32.xlu0 %v2407
        %v2409 = vpop.xlane.xlu0 %2408
        %v2410 = vmax.f32 %v1735, %v1737
        %2411 = vmax.xlane.f32.xlu0 %v2410
        %v2412 = vpop.xlane.xlu0 %2411
        %v2413 = vmax.f32 %v1741, %v1743
        %2414 = vmax.xlane.f32.xlu0 %v2413
        %v2415 = vpop.xlane.xlu0 %2414
        %v2416 = vmax.f32 %v1747, %v1749
        %2417 = vmax.xlane.f32.xlu0 %v2416
        %v2418 = vpop.xlane.xlu0 %2417
        %v2419 = vmax.f32 %v1753, %v1755
        %2420 = vmax.xlane.f32.xlu0 %v2419
        %v2421 = vpop.xlane.xlu0 %2420
        %v2422 = vmax.f32 %v1759, %v1761
        %2423 = vmax.xlane.f32.xlu0 %v2422
        %v2424 = vpop.xlane.xlu0 %2423
        %v2425 = vmax.f32 %v1765, %v1767
        %2426 = vmax.xlane.f32.xlu0 %v2425
        %v2427 = vpop.xlane.xlu0 %2426
        %v2428 = vmax.f32 %v1771, %v1773
        %2429 = vmax.xlane.f32.xlu0 %v2428
        %v2430 = vpop.xlane.xlu0 %2429
        %v2431 = vmax.f32 %v1777, %v1779
        %2432 = vmax.xlane.f32.xlu0 %v2431
        %v2433 = vpop.xlane.xlu0 %2432
        %v2434 = vmax.f32 %v1783, %v1785
        %2435 = vmax.xlane.f32.xlu0 %v2434
        %v2436 = vpop.xlane.xlu0 %2435
        %v2437 = vmax.f32 %v1789, %v1791
        %2438 = vmax.xlane.f32.xlu0 %v2437
        %v2439 = vpop.xlane.xlu0 %2438
        %v2440 = vmax.f32 %v1795, %v1797
        %2441 = vmax.xlane.f32.xlu0 %v2440
        %v2442 = vpop.xlane.xlu0 %2441
        %v2443 = vmax.f32 %v1801, %v1803
        %2444 = vmax.xlane.f32.xlu0 %v2443
        %v2445 = vpop.xlane.xlu0 %2444
        %v2446 = vmax.f32 %v1968, %v1970
        %2447 = vmax.xlane.f32.xlu0 %v2446
        %v2448 = vpop.xlane.xlu0 %2447
        %v2449 = vmax.f32 %v1974, %v1976
        %2450 = vmax.xlane.f32.xlu0 %v2449
        %v2451 = vpop.xlane.xlu0 %2450
        %v2452 = vmax.f32 %v1980, %v1982
        %2453 = vmax.xlane.f32.xlu0 %v2452
        %v2454 = vpop.xlane.xlu0 %2453
        %v2455 = vmax.f32 %v1986, %v1988
        %2456 = vmax.xlane.f32.xlu0 %v2455
        %v2457 = vpop.xlane.xlu0 %2456
        %v2458 = vmax.f32 %v1992, %v1994
        %2459 = vmax.xlane.f32.xlu0 %v2458
        %v2460 = vpop.xlane.xlu0 %2459
        %v2461 = vmax.f32 %v1998, %v2000
        %2462 = vmax.xlane.f32.xlu0 %v2461
        %v2463 = vpop.xlane.xlu0 %2462
        %v2464 = vmax.f32 %v2004, %v2006
        %2465 = vmax.xlane.f32.xlu0 %v2464
        %v2466 = vpop.xlane.xlu0 %2465
        %v2467 = vmax.f32 %v2010, %v2012
        %2468 = vmax.xlane.f32.xlu0 %v2467
        %v2469 = vpop.xlane.xlu0 %2468
        %v2470 = vmax.f32 %v2016, %v2018
        %2471 = vmax.xlane.f32.xlu0 %v2470
        %v2472 = vpop.xlane.xlu0 %2471
        %v2473 = vmax.f32 %v2022, %v2024
        %2474 = vmax.xlane.f32.xlu0 %v2473
        %v2475 = vpop.xlane.xlu0 %2474
        %v2476 = vmax.f32 %v2028, %v2030
        %2477 = vmax.xlane.f32.xlu0 %v2476
        %v2478 = vpop.xlane.xlu0 %2477
        %v2479 = vmax.f32 %v2034, %v2036
        %2480 = vmax.xlane.f32.xlu0 %v2479
        %v2481 = vpop.xlane.xlu0 %2480
        %v2482 = vmax.f32 %v2040, %v2042
        %2483 = vmax.xlane.f32.xlu0 %v2482
        %v2484 = vpop.xlane.xlu0 %2483
        %v2485 = vmax.f32 %v2046, %v2048
        %2486 = vmax.xlane.f32.xlu0 %v2485
        %v2487 = vpop.xlane.xlu0 %2486
        %v2488 = vmax.f32 %v2052, %v2054
        %2489 = vmax.xlane.f32.xlu0 %v2488
        %v2490 = vpop.xlane.xlu0 %2489
        %v2491 = vmax.f32 %v2058, %v2060
        %2492 = vmax.xlane.f32.xlu0 %v2491
        %v2493 = vpop.xlane.xlu0 %2492
        %v2494 = vmax.f32 %v2064, %v2066
        %2495 = vmax.xlane.f32.xlu0 %v2494
        %v2496 = vpop.xlane.xlu0 %2495
        %v2497 = vmax.f32 %v2070, %v2072
        %2498 = vmax.xlane.f32.xlu0 %v2497
        %v2499 = vpop.xlane.xlu0 %2498
        %v2500 = vmax.f32 %v2076, %v2078
        %2501 = vmax.xlane.f32.xlu0 %v2500
        %v2502 = vpop.xlane.xlu0 %2501
        %v2503 = vmax.f32 %v2082, %v2084
        %2504 = vmax.xlane.f32.xlu0 %v2503
        %v2505 = vpop.xlane.xlu0 %2504
        %v2506 = vmax.f32 %v2088, %v2090
        %2507 = vmax.xlane.f32.xlu0 %v2506
        %v2508 = vpop.xlane.xlu0 %2507
        %v2509 = vmax.f32 %v2094, %v2096
        %2510 = vmax.xlane.f32.xlu0 %v2509
        %v2511 = vpop.xlane.xlu0 %2510
        %v2512 = vmax.f32 %v2100, %v2102
        %2513 = vmax.xlane.f32.xlu0 %v2512
        %v2514 = vpop.xlane.xlu0 %2513
        %v2515 = vmax.f32 %v2106, %v2108
        %2516 = vmax.xlane.f32.xlu0 %v2515
        %v2517 = vpop.xlane.xlu0 %2516
        %v2518 = vmax.f32 %v2112, %v2114
        %2519 = vmax.xlane.f32.xlu0 %v2518
        %v2520 = vpop.xlane.xlu0 %2519
        %v2521 = vmax.f32 %v2118, %v2120
        %2522 = vmax.xlane.f32.xlu0 %v2521
        %v2523 = vpop.xlane.xlu0 %2522
        %v2524 = vmax.f32 %v2124, %v2126
        %2525 = vmax.xlane.f32.xlu0 %v2524
        %v2526 = vpop.xlane.xlu0 %2525
        %v2527 = vmax.f32 %v2130, %v2132
        %2528 = vmax.xlane.f32.xlu0 %v2527
        %v2529 = vpop.xlane.xlu0 %2528
        %v2530 = vmax.f32 %v2136, %v2138
        %2531 = vmax.xlane.f32.xlu0 %v2530
        %v2532 = vpop.xlane.xlu0 %2531
        %v2533 = vmax.f32 %v2142, %v2144
        %2534 = vmax.xlane.f32.xlu0 %v2533
        %v2535 = vpop.xlane.xlu0 %2534
        %v2536 = vmax.f32 %v2148, %v2150
        %2537 = vmax.xlane.f32.xlu0 %v2536
        %v2538 = vpop.xlane.xlu0 %2537
        %v2539 = vmax.f32 %v2154, %v2156
        %2540 = vmax.xlane.f32.xlu0 %v2539
        %v2541 = vpop.xlane.xlu0 %2540
        %v2542 = vsub.f32 %v909, %v2160
        %v2543 = vsub.f32 %v911, %v2160
        %v2544 = vsub.f32 %v915, %v2163
        %v2545 = vsub.f32 %v917, %v2163
        %v2546 = vsub.f32 %v921, %v2166
        %v2547 = vsub.f32 %v923, %v2166
        %v2548 = vsub.f32 %v927, %v2169
        %v2549 = vsub.f32 %v929, %v2169
        %v2550 = vsub.f32 %v933, %v2172
        %v2551 = vsub.f32 %v935, %v2172
        %v2552 = vsub.f32 %v939, %v2175
        %v2553 = vsub.f32 %v941, %v2175
        %v2554 = vsub.f32 %v945, %v2178
        %v2555 = vsub.f32 %v947, %v2178
        %v2556 = vsub.f32 %v951, %v2181
        %v2557 = vsub.f32 %v953, %v2181
        %v2558 = vsub.f32 %v957, %v2184
        %v2559 = vsub.f32 %v959, %v2184
        %v2560 = vsub.f32 %v963, %v2187
        %v2561 = vsub.f32 %v965, %v2187
        %v2562 = vsub.f32 %v969, %v2190
        %v2563 = vsub.f32 %v971, %v2190
        %v2564 = vsub.f32 %v975, %v2193
        %v2565 = vsub.f32 %v977, %v2193
        %v2566 = vsub.f32 %v981, %v2196
        %v2567 = vsub.f32 %v983, %v2196
        %v2568 = vsub.f32 %v987, %v2199
        %v2569 = vsub.f32 %v989, %v2199
        %v2570 = vsub.f32 %v993, %v2202
        %v2571 = vsub.f32 %v995, %v2202
        %v2572 = vsub.f32 %v999, %v2205
        %v2573 = vsub.f32 %v1001, %v2205
        %v2574 = vsub.f32 %v1005, %v2208
        %v2575 = vsub.f32 %v1007, %v2208
        %v2576 = vsub.f32 %v1011, %v2211
        %v2577 = vsub.f32 %v1013, %v2211
        %v2578 = vsub.f32 %v1017, %v2214
        %v2579 = vsub.f32 %v1019, %v2214
        %v2580 = vsub.f32 %v1023, %v2217
        %v2581 = vsub.f32 %v1025, %v2217
        %v2582 = vsub.f32 %v1029, %v2220
        %v2583 = vsub.f32 %v1031, %v2220
        %v2584 = vsub.f32 %v1035, %v2223
        %v2585 = vsub.f32 %v1037, %v2223
        %v2586 = vsub.f32 %v1041, %v2226
        %v2587 = vsub.f32 %v1043, %v2226
        %v2588 = vsub.f32 %v1047, %v2229
        %v2589 = vsub.f32 %v1049, %v2229
        %v2590 = vsub.f32 %v1053, %v2232
        %v2591 = vsub.f32 %v1055, %v2232
        %v2592 = vsub.f32 %v1059, %v2235
        %v2593 = vsub.f32 %v1061, %v2235
        %v2594 = vsub.f32 %v1065, %v2238
        %v2595 = vsub.f32 %v1067, %v2238
        %v2596 = vsub.f32 %v1071, %v2241
        %v2597 = vsub.f32 %v1073, %v2241
        %v2598 = vsub.f32 %v1077, %v2244
        %v2599 = vsub.f32 %v1079, %v2244
        %v2600 = vsub.f32 %v1083, %v2247
        %v2601 = vsub.f32 %v1085, %v2247
        %v2602 = vsub.f32 %v1089, %v2250
        %v2603 = vsub.f32 %v1091, %v2250
        %v2604 = vsub.f32 %v1095, %v2253
        %v2605 = vsub.f32 %v1097, %v2253
        %v2606 = vsub.f32 %v1262, %v2256
        %v2607 = vsub.f32 %v1264, %v2256
        %v2608 = vsub.f32 %v1268, %v2259
        %v2609 = vsub.f32 %v1270, %v2259
        %v2610 = vsub.f32 %v1274, %v2262
        %v2611 = vsub.f32 %v1276, %v2262
        %v2612 = vsub.f32 %v1280, %v2265
        %v2613 = vsub.f32 %v1282, %v2265
        %v2614 = vsub.f32 %v1286, %v2268
        %v2615 = vsub.f32 %v1288, %v2268
        %v2616 = vsub.f32 %v1292, %v2271
        %v2617 = vsub.f32 %v1294, %v2271
        %v2618 = vsub.f32 %v1298, %v2274
        %v2619 = vsub.f32 %v1300, %v2274
        %v2620 = vsub.f32 %v1304, %v2277
        %v2621 = vsub.f32 %v1306, %v2277
        %v2622 = vsub.f32 %v1310, %v2280
        %v2623 = vsub.f32 %v1312, %v2280
        %v2624 = vsub.f32 %v1316, %v2283
        %v2625 = vsub.f32 %v1318, %v2283
        %v2626 = vsub.f32 %v1322, %v2286
        %v2627 = vsub.f32 %v1324, %v2286
        %v2628 = vsub.f32 %v1328, %v2289
        %v2629 = vsub.f32 %v1330, %v2289
        %v2630 = vsub.f32 %v1334, %v2292
        %v2631 = vsub.f32 %v1336, %v2292
        %v2632 = vsub.f32 %v1340, %v2295
        %v2633 = vsub.f32 %v1342, %v2295
        %v2634 = vsub.f32 %v1346, %v2298
        %v2635 = vsub.f32 %v1348, %v2298
        %v2636 = vsub.f32 %v1352, %v2301
        %v2637 = vsub.f32 %v1354, %v2301
        %v2638 = vsub.f32 %v1358, %v2304
        %v2639 = vsub.f32 %v1360, %v2304
        %v2640 = vsub.f32 %v1364, %v2307
        %v2641 = vsub.f32 %v1366, %v2307
        %v2642 = vsub.f32 %v1370, %v2310
        %v2643 = vsub.f32 %v1372, %v2310
        %v2644 = vsub.f32 %v1376, %v2313
        %v2645 = vsub.f32 %v1378, %v2313
        %v2646 = vsub.f32 %v1382, %v2316
        %v2647 = vsub.f32 %v1384, %v2316
        %v2648 = vsub.f32 %v1388, %v2319
        %v2649 = vsub.f32 %v1390, %v2319
        %v2650 = vsub.f32 %v1394, %v2322
        %v2651 = vsub.f32 %v1396, %v2322
        %v2652 = vsub.f32 %v1400, %v2325
        %v2653 = vsub.f32 %v1402, %v2325
        %v2654 = vsub.f32 %v1406, %v2328
        %v2655 = vsub.f32 %v1408, %v2328
        %v2656 = vsub.f32 %v1412, %v2331
        %v2657 = vsub.f32 %v1414, %v2331
        %v2658 = vsub.f32 %v1418, %v2334
        %v2659 = vsub.f32 %v1420, %v2334
        %v2660 = vsub.f32 %v1424, %v2337
        %v2661 = vsub.f32 %v1426, %v2337
        %v2662 = vsub.f32 %v1430, %v2340
        %v2663 = vsub.f32 %v1432, %v2340
        %v2664 = vsub.f32 %v1436, %v2343
        %v2665 = vsub.f32 %v1438, %v2343
        %v2666 = vsub.f32 %v1442, %v2346
        %v2667 = vsub.f32 %v1444, %v2346
        %v2668 = vsub.f32 %v1448, %v2349
        %v2669 = vsub.f32 %v1450, %v2349
        %v2670 = vsub.f32 %v1615, %v2352
        %v2671 = vsub.f32 %v1617, %v2352
        %v2672 = vsub.f32 %v1621, %v2355
        %v2673 = vsub.f32 %v1623, %v2355
        %v2674 = vsub.f32 %v1627, %v2358
        %v2675 = vsub.f32 %v1629, %v2358
        %v2676 = vsub.f32 %v1633, %v2361
        %v2677 = vsub.f32 %v1635, %v2361
        %v2678 = vsub.f32 %v1639, %v2364
        %v2679 = vsub.f32 %v1641, %v2364
        %v2680 = vsub.f32 %v1645, %v2367
        %v2681 = vsub.f32 %v1647, %v2367
        %v2682 = vsub.f32 %v1651, %v2370
        %v2683 = vsub.f32 %v1653, %v2370
        %v2684 = vsub.f32 %v1657, %v2373
        %v2685 = vsub.f32 %v1659, %v2373
        %v2686 = vsub.f32 %v1663, %v2376
        %v2687 = vsub.f32 %v1665, %v2376
        %v2688 = vsub.f32 %v1669, %v2379
        %v2689 = vsub.f32 %v1671, %v2379
        %v2690 = vsub.f32 %v1675, %v2382
        %v2691 = vsub.f32 %v1677, %v2382
        %v2692 = vsub.f32 %v1681, %v2385
        %v2693 = vsub.f32 %v1683, %v2385
        %v2694 = vsub.f32 %v1687, %v2388
        %v2695 = vsub.f32 %v1689, %v2388
        %v2696 = vsub.f32 %v1693, %v2391
        %v2697 = vsub.f32 %v1695, %v2391
        %v2698 = vsub.f32 %v1699, %v2394
        %v2699 = vsub.f32 %v1701, %v2394
        %v2700 = vsub.f32 %v1705, %v2397
        %v2701 = vsub.f32 %v1707, %v2397
        %v2702 = vsub.f32 %v1711, %v2400
        %v2703 = vsub.f32 %v1713, %v2400
        %v2704 = vsub.f32 %v1717, %v2403
        %v2705 = vsub.f32 %v1719, %v2403
        %v2706 = vsub.f32 %v1723, %v2406
        %v2707 = vsub.f32 %v1725, %v2406
        %v2708 = vsub.f32 %v1729, %v2409
        %v2709 = vsub.f32 %v1731, %v2409
        %v2710 = vsub.f32 %v1735, %v2412
        %v2711 = vsub.f32 %v1737, %v2412
        %v2712 = vsub.f32 %v1741, %v2415
        %v2713 = vsub.f32 %v1743, %v2415
        %v2714 = vsub.f32 %v1747, %v2418
        %v2715 = vsub.f32 %v1749, %v2418
        %v2716 = vsub.f32 %v1753, %v2421
        %v2717 = vsub.f32 %v1755, %v2421
        %v2718 = vsub.f32 %v1759, %v2424
        %v2719 = vsub.f32 %v1761, %v2424
        %v2720 = vsub.f32 %v1765, %v2427
        %v2721 = vsub.f32 %v1767, %v2427
        %v2722 = vsub.f32 %v1771, %v2430
        %v2723 = vsub.f32 %v1773, %v2430
        %v2724 = vsub.f32 %v1777, %v2433
        %v2725 = vsub.f32 %v1779, %v2433
        %v2726 = vsub.f32 %v1783, %v2436
        %v2727 = vsub.f32 %v1785, %v2436
        %v2728 = vsub.f32 %v1789, %v2439
        %v2729 = vsub.f32 %v1791, %v2439
        %v2730 = vsub.f32 %v1795, %v2442
        %v2731 = vsub.f32 %v1797, %v2442
        %v2732 = vsub.f32 %v1801, %v2445
        %v2733 = vsub.f32 %v1803, %v2445
        %v2734 = vsub.f32 %v1968, %v2448
        %v2735 = vsub.f32 %v1970, %v2448
        %v2736 = vsub.f32 %v1974, %v2451
        %v2737 = vsub.f32 %v1976, %v2451
        %v2738 = vsub.f32 %v1980, %v2454
        %v2739 = vsub.f32 %v1982, %v2454
        %v2740 = vsub.f32 %v1986, %v2457
        %v2741 = vsub.f32 %v1988, %v2457
        %v2742 = vsub.f32 %v1992, %v2460
        %v2743 = vsub.f32 %v1994, %v2460
        %v2744 = vsub.f32 %v1998, %v2463
        %v2745 = vsub.f32 %v2000, %v2463
        %v2746 = vsub.f32 %v2004, %v2466
        %v2747 = vsub.f32 %v2006, %v2466
        %v2748 = vsub.f32 %v2010, %v2469
        %v2749 = vsub.f32 %v2012, %v2469
        %v2750 = vsub.f32 %v2016, %v2472
        %v2751 = vsub.f32 %v2018, %v2472
        %v2752 = vsub.f32 %v2022, %v2475
        %v2753 = vsub.f32 %v2024, %v2475
        %v2754 = vsub.f32 %v2028, %v2478
        %v2755 = vsub.f32 %v2030, %v2478
        %v2756 = vsub.f32 %v2034, %v2481
        %v2757 = vsub.f32 %v2036, %v2481
        %v2758 = vsub.f32 %v2040, %v2484
        %v2759 = vsub.f32 %v2042, %v2484
        %v2760 = vsub.f32 %v2046, %v2487
        %v2761 = vsub.f32 %v2048, %v2487
        %v2762 = vsub.f32 %v2052, %v2490
        %v2763 = vsub.f32 %v2054, %v2490
        %v2764 = vsub.f32 %v2058, %v2493
        %v2765 = vsub.f32 %v2060, %v2493
        %v2766 = vsub.f32 %v2064, %v2496
        %v2767 = vsub.f32 %v2066, %v2496
        %v2768 = vsub.f32 %v2070, %v2499
        %v2769 = vsub.f32 %v2072, %v2499
        %v2770 = vsub.f32 %v2076, %v2502
        %v2771 = vsub.f32 %v2078, %v2502
        %v2772 = vsub.f32 %v2082, %v2505
        %v2773 = vsub.f32 %v2084, %v2505
        %v2774 = vsub.f32 %v2088, %v2508
        %v2775 = vsub.f32 %v2090, %v2508
        %v2776 = vsub.f32 %v2094, %v2511
        %v2777 = vsub.f32 %v2096, %v2511
        %v2778 = vsub.f32 %v2100, %v2514
        %v2779 = vsub.f32 %v2102, %v2514
        %v2780 = vsub.f32 %v2106, %v2517
        %v2781 = vsub.f32 %v2108, %v2517
        %v2782 = vsub.f32 %v2112, %v2520
        %v2783 = vsub.f32 %v2114, %v2520
        %v2784 = vsub.f32 %v2118, %v2523
        %v2785 = vsub.f32 %v2120, %v2523
        %v2786 = vsub.f32 %v2124, %v2526
        %v2787 = vsub.f32 %v2126, %v2526
        %v2788 = vsub.f32 %v2130, %v2529
        %v2789 = vsub.f32 %v2132, %v2529
        %v2790 = vsub.f32 %v2136, %v2532
        %v2791 = vsub.f32 %v2138, %v2532
        %v2792 = vsub.f32 %v2142, %v2535
        %v2793 = vsub.f32 %v2144, %v2535
        %v2794 = vsub.f32 %v2148, %v2538
        %v2795 = vsub.f32 %v2150, %v2538
        %v2796 = vsub.f32 %v2154, %v2541
        %v2797 = vsub.f32 %v2156, %v2541
        %v2798 = vmul.f32 %v2542, 1.442695
        %v2799 = vpow.pop %v2798
        %v2800 = vmul.f32 %v2543, 1.442695
        %v2801 = vpow.pop %v2800
        %v2802 = vmul.f32 %v2544, 1.442695
        %v2803 = vpow.pop %v2802
        %v2804 = vmul.f32 %v2545, 1.442695
        %v2805 = vpow.pop %v2804
        %v2806 = vmul.f32 %v2546, 1.442695
        %v2807 = vpow.pop %v2806
        %v2808 = vmul.f32 %v2547, 1.442695
        %v2809 = vpow.pop %v2808
        %v2810 = vmul.f32 %v2548, 1.442695
        %v2811 = vpow.pop %v2810
        %v2812 = vmul.f32 %v2549, 1.442695
        %v2813 = vpow.pop %v2812
        %v2814 = vmul.f32 %v2550, 1.442695
        %v2815 = vpow.pop %v2814
        %v2816 = vmul.f32 %v2551, 1.442695
        %v2817 = vpow.pop %v2816
        %v2818 = vmul.f32 %v2552, 1.442695
        %v2819 = vpow.pop %v2818
        %v2820 = vmul.f32 %v2553, 1.442695
        %v2821 = vpow.pop %v2820
        %v2822 = vmul.f32 %v2554, 1.442695
        %v2823 = vpow.pop %v2822
        %v2824 = vmul.f32 %v2555, 1.442695
        %v2825 = vpow.pop %v2824
        %v2826 = vmul.f32 %v2556, 1.442695
        %v2827 = vpow.pop %v2826
        %v2828 = vmul.f32 %v2557, 1.442695
        %v2829 = vpow.pop %v2828
        %v2830 = vmul.f32 %v2558, 1.442695
        %v2831 = vpow.pop %v2830
        %v2832 = vmul.f32 %v2559, 1.442695
        %v2833 = vpow.pop %v2832
        %v2834 = vmul.f32 %v2560, 1.442695
        %v2835 = vpow.pop %v2834
        %v2836 = vmul.f32 %v2561, 1.442695
        %v2837 = vpow.pop %v2836
        %v2838 = vmul.f32 %v2562, 1.442695
        %v2839 = vpow.pop %v2838
        %v2840 = vmul.f32 %v2563, 1.442695
        %v2841 = vpow.pop %v2840
        %v2842 = vmul.f32 %v2564, 1.442695
        %v2843 = vpow.pop %v2842
        %v2844 = vmul.f32 %v2565, 1.442695
        %v2845 = vpow.pop %v2844
        %v2846 = vmul.f32 %v2566, 1.442695
        %v2847 = vpow.pop %v2846
        %v2848 = vmul.f32 %v2567, 1.442695
        %v2849 = vpow.pop %v2848
        %v2850 = vmul.f32 %v2568, 1.442695
        %v2851 = vpow.pop %v2850
        %v2852 = vmul.f32 %v2569, 1.442695
        %v2853 = vpow.pop %v2852
        %v2854 = vmul.f32 %v2570, 1.442695
        %v2855 = vpow.pop %v2854
        %v2856 = vmul.f32 %v2571, 1.442695
        %v2857 = vpow.pop %v2856
        %v2858 = vmul.f32 %v2572, 1.442695
        %v2859 = vpow.pop %v2858
        %v2860 = vmul.f32 %v2573, 1.442695
        %v2861 = vpow.pop %v2860
        %v2862 = vmul.f32 %v2574, 1.442695
        %v2863 = vpow.pop %v2862
        %v2864 = vmul.f32 %v2575, 1.442695
        %v2865 = vpow.pop %v2864
        %v2866 = vmul.f32 %v2576, 1.442695
        %v2867 = vpow.pop %v2866
        %v2868 = vmul.f32 %v2577, 1.442695
        %v2869 = vpow.pop %v2868
        %v2870 = vmul.f32 %v2578, 1.442695
        %v2871 = vpow.pop %v2870
        %v2872 = vmul.f32 %v2579, 1.442695
        %v2873 = vpow.pop %v2872
        %v2874 = vmul.f32 %v2580, 1.442695
        %v2875 = vpow.pop %v2874
        %v2876 = vmul.f32 %v2581, 1.442695
        %v2877 = vpow.pop %v2876
        %v2878 = vmul.f32 %v2582, 1.442695
        %v2879 = vpow.pop %v2878
        %v2880 = vmul.f32 %v2583, 1.442695
        %v2881 = vpow.pop %v2880
        %v2882 = vmul.f32 %v2584, 1.442695
        %v2883 = vpow.pop %v2882
        %v2884 = vmul.f32 %v2585, 1.442695
        %v2885 = vpow.pop %v2884
        %v2886 = vmul.f32 %v2586, 1.442695
        %v2887 = vpow.pop %v2886
        %v2888 = vmul.f32 %v2587, 1.442695
        %v2889 = vpow.pop %v2888
        %v2890 = vmul.f32 %v2588, 1.442695
        %v2891 = vpow.pop %v2890
        %v2892 = vmul.f32 %v2589, 1.442695
        %v2893 = vpow.pop %v2892
        %v2894 = vmul.f32 %v2590, 1.442695
        %v2895 = vpow.pop %v2894
        %v2896 = vmul.f32 %v2591, 1.442695
        %v2897 = vpow.pop %v2896
        %v2898 = vmul.f32 %v2592, 1.442695
        %v2899 = vpow.pop %v2898
        %v2900 = vmul.f32 %v2593, 1.442695
        %v2901 = vpow.pop %v2900
        %v2902 = vmul.f32 %v2594, 1.442695
        %v2903 = vpow.pop %v2902
        %v2904 = vmul.f32 %v2595, 1.442695
        %v2905 = vpow.pop %v2904
        %v2906 = vmul.f32 %v2596, 1.442695
        %v2907 = vpow.pop %v2906
        %v2908 = vmul.f32 %v2597, 1.442695
        %v2909 = vpow.pop %v2908
        %v2910 = vmul.f32 %v2598, 1.442695
        %v2911 = vpow.pop %v2910
        %v2912 = vmul.f32 %v2599, 1.442695
        %v2913 = vpow.pop %v2912
        %v2914 = vmul.f32 %v2600, 1.442695
        %v2915 = vpow.pop %v2914
        %v2916 = vmul.f32 %v2601, 1.442695
        %v2917 = vpow.pop %v2916
        %v2918 = vmul.f32 %v2602, 1.442695
        %v2919 = vpow.pop %v2918
        %v2920 = vmul.f32 %v2603, 1.442695
        %v2921 = vpow.pop %v2920
        %v2922 = vmul.f32 %v2604, 1.442695
        %v2923 = vpow.pop %v2922
        %v2924 = vmul.f32 %v2605, 1.442695
        %v2925 = vpow.pop %v2924
        %v2926 = vmul.f32 %v2606, 1.442695
        %v2927 = vpow.pop %v2926
        %v2928 = vmul.f32 %v2607, 1.442695
        %v2929 = vpow.pop %v2928
        %v2930 = vmul.f32 %v2608, 1.442695
        %v2931 = vpow.pop %v2930
        %v2932 = vmul.f32 %v2609, 1.442695
        %v2933 = vpow.pop %v2932
        %v2934 = vmul.f32 %v2610, 1.442695
        %v2935 = vpow.pop %v2934
        %v2936 = vmul.f32 %v2611, 1.442695
        %v2937 = vpow.pop %v2936
        %v2938 = vmul.f32 %v2612, 1.442695
        %v2939 = vpow.pop %v2938
        %v2940 = vmul.f32 %v2613, 1.442695
        %v2941 = vpow.pop %v2940
        %v2942 = vmul.f32 %v2614, 1.442695
        %v2943 = vpow.pop %v2942
        %v2944 = vmul.f32 %v2615, 1.442695
        %v2945 = vpow.pop %v2944
        %v2946 = vmul.f32 %v2616, 1.442695
        %v2947 = vpow.pop %v2946
        %v2948 = vmul.f32 %v2617, 1.442695
        %v2949 = vpow.pop %v2948
        %v2950 = vmul.f32 %v2618, 1.442695
        %v2951 = vpow.pop %v2950
        %v2952 = vmul.f32 %v2619, 1.442695
        %v2953 = vpow.pop %v2952
        %v2954 = vmul.f32 %v2620, 1.442695
        %v2955 = vpow.pop %v2954
        %v2956 = vmul.f32 %v2621, 1.442695
        %v2957 = vpow.pop %v2956
        %v2958 = vmul.f32 %v2622, 1.442695
        %v2959 = vpow.pop %v2958
        %v2960 = vmul.f32 %v2623, 1.442695
        %v2961 = vpow.pop %v2960
        %v2962 = vmul.f32 %v2624, 1.442695
        %v2963 = vpow.pop %v2962
        %v2964 = vmul.f32 %v2625, 1.442695
        %v2965 = vpow.pop %v2964
        %v2966 = vmul.f32 %v2626, 1.442695
        %v2967 = vpow.pop %v2966
        %v2968 = vmul.f32 %v2627, 1.442695
        %v2969 = vpow.pop %v2968
        %v2970 = vmul.f32 %v2628, 1.442695
        %v2971 = vpow.pop %v2970
        %v2972 = vmul.f32 %v2629, 1.442695
        %v2973 = vpow.pop %v2972
        %v2974 = vmul.f32 %v2630, 1.442695
        %v2975 = vpow.pop %v2974
        %v2976 = vmul.f32 %v2631, 1.442695
        %v2977 = vpow.pop %v2976
        %v2978 = vmul.f32 %v2632, 1.442695
        %v2979 = vpow.pop %v2978
        %v2980 = vmul.f32 %v2633, 1.442695
        %v2981 = vpow.pop %v2980
        %v2982 = vmul.f32 %v2634, 1.442695
        %v2983 = vpow.pop %v2982
        %v2984 = vmul.f32 %v2635, 1.442695
        %v2985 = vpow.pop %v2984
        %v2986 = vmul.f32 %v2636, 1.442695
        %v2987 = vpow.pop %v2986
        %v2988 = vmul.f32 %v2637, 1.442695
        %v2989 = vpow.pop %v2988
        %v2990 = vmul.f32 %v2638, 1.442695
        %v2991 = vpow.pop %v2990
        %v2992 = vmul.f32 %v2639, 1.442695
        %v2993 = vpow.pop %v2992
        %v2994 = vmul.f32 %v2640, 1.442695
        %v2995 = vpow.pop %v2994
        %v2996 = vmul.f32 %v2641, 1.442695
        %v2997 = vpow.pop %v2996
        %v2998 = vmul.f32 %v2642, 1.442695
        %v2999 = vpow.pop %v2998
        %v3000 = vmul.f32 %v2643, 1.442695
        %v3001 = vpow.pop %v3000
        %v3002 = vmul.f32 %v2644, 1.442695
        %v3003 = vpow.pop %v3002
        %v3004 = vmul.f32 %v2645, 1.442695
        %v3005 = vpow.pop %v3004
        %v3006 = vmul.f32 %v2646, 1.442695
        %v3007 = vpow.pop %v3006
        %v3008 = vmul.f32 %v2647, 1.442695
        %v3009 = vpow.pop %v3008
        %v3010 = vmul.f32 %v2648, 1.442695
        %v3011 = vpow.pop %v3010
        %v3012 = vmul.f32 %v2649, 1.442695
        %v3013 = vpow.pop %v3012
        %v3014 = vmul.f32 %v2650, 1.442695
        %v3015 = vpow.pop %v3014
        %v3016 = vmul.f32 %v2651, 1.442695
        %v3017 = vpow.pop %v3016
        %v3018 = vmul.f32 %v2652, 1.442695
        %v3019 = vpow.pop %v3018
        %v3020 = vmul.f32 %v2653, 1.442695
        %v3021 = vpow.pop %v3020
        %v3022 = vmul.f32 %v2654, 1.442695
        %v3023 = vpow.pop %v3022
        %v3024 = vmul.f32 %v2655, 1.442695
        %v3025 = vpow.pop %v3024
        %v3026 = vmul.f32 %v2656, 1.442695
        %v3027 = vpow.pop %v3026
        %v3028 = vmul.f32 %v2657, 1.442695
        %v3029 = vpow.pop %v3028
        %v3030 = vmul.f32 %v2658, 1.442695
        %v3031 = vpow.pop %v3030
        %v3032 = vmul.f32 %v2659, 1.442695
        %v3033 = vpow.pop %v3032
        %v3034 = vmul.f32 %v2660, 1.442695
        %v3035 = vpow.pop %v3034
        %v3036 = vmul.f32 %v2661, 1.442695
        %v3037 = vpow.pop %v3036
        %v3038 = vmul.f32 %v2662, 1.442695
        %v3039 = vpow.pop %v3038
        %v3040 = vmul.f32 %v2663, 1.442695
        %v3041 = vpow.pop %v3040
        %v3042 = vmul.f32 %v2664, 1.442695
        %v3043 = vpow.pop %v3042
        %v3044 = vmul.f32 %v2665, 1.442695
        %v3045 = vpow.pop %v3044
        %v3046 = vmul.f32 %v2666, 1.442695
        %v3047 = vpow.pop %v3046
        %v3048 = vmul.f32 %v2667, 1.442695
        %v3049 = vpow.pop %v3048
        %v3050 = vmul.f32 %v2668, 1.442695
        %v3051 = vpow.pop %v3050
        %v3052 = vmul.f32 %v2669, 1.442695
        %v3053 = vpow.pop %v3052
        %v3054 = vmul.f32 %v2670, 1.442695
        %v3055 = vpow.pop %v3054
        %v3056 = vmul.f32 %v2671, 1.442695
        %v3057 = vpow.pop %v3056
        %v3058 = vmul.f32 %v2672, 1.442695
        %v3059 = vpow.pop %v3058
        %v3060 = vmul.f32 %v2673, 1.442695
        %v3061 = vpow.pop %v3060
        %v3062 = vmul.f32 %v2674, 1.442695
        %v3063 = vpow.pop %v3062
        %v3064 = vmul.f32 %v2675, 1.442695
        %v3065 = vpow.pop %v3064
        %v3066 = vmul.f32 %v2676, 1.442695
        %v3067 = vpow.pop %v3066
        %v3068 = vmul.f32 %v2677, 1.442695
        %v3069 = vpow.pop %v3068
        %v3070 = vmul.f32 %v2678, 1.442695
        %v3071 = vpow.pop %v3070
        %v3072 = vmul.f32 %v2679, 1.442695
        %v3073 = vpow.pop %v3072
        %v3074 = vmul.f32 %v2680, 1.442695
        %v3075 = vpow.pop %v3074
        %v3076 = vmul.f32 %v2681, 1.442695
        %v3077 = vpow.pop %v3076
        %v3078 = vmul.f32 %v2682, 1.442695
        %v3079 = vpow.pop %v3078
        %v3080 = vmul.f32 %v2683, 1.442695
        %v3081 = vpow.pop %v3080
        %v3082 = vmul.f32 %v2684, 1.442695
        %v3083 = vpow.pop %v3082
        %v3084 = vmul.f32 %v2685, 1.442695
        %v3085 = vpow.pop %v3084
        %v3086 = vmul.f32 %v2686, 1.442695
        %v3087 = vpow.pop %v3086
        %v3088 = vmul.f32 %v2687, 1.442695
        %v3089 = vpow.pop %v3088
        %v3090 = vmul.f32 %v2688, 1.442695
        %v3091 = vpow.pop %v3090
        %v3092 = vmul.f32 %v2689, 1.442695
        %v3093 = vpow.pop %v3092
        %v3094 = vmul.f32 %v2690, 1.442695
        %v3095 = vpow.pop %v3094
        %v3096 = vmul.f32 %v2691, 1.442695
        %v3097 = vpow.pop %v3096
        %v3098 = vmul.f32 %v2692, 1.442695
        %v3099 = vpow.pop %v3098
        %v3100 = vmul.f32 %v2693, 1.442695
        %v3101 = vpow.pop %v3100
        %v3102 = vmul.f32 %v2694, 1.442695
        %v3103 = vpow.pop %v3102
        %v3104 = vmul.f32 %v2695, 1.442695
        %v3105 = vpow.pop %v3104
        %v3106 = vmul.f32 %v2696, 1.442695
        %v3107 = vpow.pop %v3106
        %v3108 = vmul.f32 %v2697, 1.442695
        %v3109 = vpow.pop %v3108
        %v3110 = vmul.f32 %v2698, 1.442695
        %v3111 = vpow.pop %v3110
        %v3112 = vmul.f32 %v2699, 1.442695
        %v3113 = vpow.pop %v3112
        %v3114 = vmul.f32 %v2700, 1.442695
        %v3115 = vpow.pop %v3114
        %v3116 = vmul.f32 %v2701, 1.442695
        %v3117 = vpow.pop %v3116
        %v3118 = vmul.f32 %v2702, 1.442695
        %v3119 = vpow.pop %v3118
        %v3120 = vmul.f32 %v2703, 1.442695
        %v3121 = vpow.pop %v3120
        %v3122 = vmul.f32 %v2704, 1.442695
        %v3123 = vpow.pop %v3122
        %v3124 = vmul.f32 %v2705, 1.442695
        %v3125 = vpow.pop %v3124
        %v3126 = vmul.f32 %v2706, 1.442695
        %v3127 = vpow.pop %v3126
        %v3128 = vmul.f32 %v2707, 1.442695
        %v3129 = vpow.pop %v3128
        %v3130 = vmul.f32 %v2708, 1.442695
        %v3131 = vpow.pop %v3130
        %v3132 = vmul.f32 %v2709, 1.442695
        %v3133 = vpow.pop %v3132
        %v3134 = vmul.f32 %v2710, 1.442695
        %v3135 = vpow.pop %v3134
        %v3136 = vmul.f32 %v2711, 1.442695
        %v3137 = vpow.pop %v3136
        %v3138 = vmul.f32 %v2712, 1.442695
        %v3139 = vpow.pop %v3138
        %v3140 = vmul.f32 %v2713, 1.442695
        %v3141 = vpow.pop %v3140
        %v3142 = vmul.f32 %v2714, 1.442695
        %v3143 = vpow.pop %v3142
        %v3144 = vmul.f32 %v2715, 1.442695
        %v3145 = vpow.pop %v3144
        %v3146 = vmul.f32 %v2716, 1.442695
        %v3147 = vpow.pop %v3146
        %v3148 = vmul.f32 %v2717, 1.442695
        %v3149 = vpow.pop %v3148
        %v3150 = vmul.f32 %v2718, 1.442695
        %v3151 = vpow.pop %v3150
        %v3152 = vmul.f32 %v2719, 1.442695
        %v3153 = vpow.pop %v3152
        %v3154 = vmul.f32 %v2720, 1.442695
        %v3155 = vpow.pop %v3154
        %v3156 = vmul.f32 %v2721, 1.442695
        %v3157 = vpow.pop %v3156
        %v3158 = vmul.f32 %v2722, 1.442695
        %v3159 = vpow.pop %v3158
        %v3160 = vmul.f32 %v2723, 1.442695
        %v3161 = vpow.pop %v3160
        %v3162 = vmul.f32 %v2724, 1.442695
        %v3163 = vpow.pop %v3162
        %v3164 = vmul.f32 %v2725, 1.442695
        %v3165 = vpow.pop %v3164
        %v3166 = vmul.f32 %v2726, 1.442695
        %v3167 = vpow.pop %v3166
        %v3168 = vmul.f32 %v2727, 1.442695
        %v3169 = vpow.pop %v3168
        %v3170 = vmul.f32 %v2728, 1.442695
        %v3171 = vpow.pop %v3170
        %v3172 = vmul.f32 %v2729, 1.442695
        %v3173 = vpow.pop %v3172
        %v3174 = vmul.f32 %v2730, 1.442695
        %v3175 = vpow.pop %v3174
        %v3176 = vmul.f32 %v2731, 1.442695
        %v3177 = vpow.pop %v3176
        %v3178 = vmul.f32 %v2732, 1.442695
        %v3179 = vpow.pop %v3178
        %v3180 = vmul.f32 %v2733, 1.442695
        %v3181 = vpow.pop %v3180
        %v3182 = vmul.f32 %v2734, 1.442695
        %v3183 = vpow.pop %v3182
        %v3184 = vmul.f32 %v2735, 1.442695
        %v3185 = vpow.pop %v3184
        %v3186 = vmul.f32 %v2736, 1.442695
        %v3187 = vpow.pop %v3186
        %v3188 = vmul.f32 %v2737, 1.442695
        %v3189 = vpow.pop %v3188
        %v3190 = vmul.f32 %v2738, 1.442695
        %v3191 = vpow.pop %v3190
        %v3192 = vmul.f32 %v2739, 1.442695
        %v3193 = vpow.pop %v3192
        %v3194 = vmul.f32 %v2740, 1.442695
        %v3195 = vpow.pop %v3194
        %v3196 = vmul.f32 %v2741, 1.442695
        %v3197 = vpow.pop %v3196
        %v3198 = vmul.f32 %v2742, 1.442695
        %v3199 = vpow.pop %v3198
        %v3200 = vmul.f32 %v2743, 1.442695
        %v3201 = vpow.pop %v3200
        %v3202 = vmul.f32 %v2744, 1.442695
        %v3203 = vpow.pop %v3202
        %v3204 = vmul.f32 %v2745, 1.442695
        %v3205 = vpow.pop %v3204
        %v3206 = vmul.f32 %v2746, 1.442695
        %v3207 = vpow.pop %v3206
        %v3208 = vmul.f32 %v2747, 1.442695
        %v3209 = vpow.pop %v3208
        %v3210 = vmul.f32 %v2748, 1.442695
        %v3211 = vpow.pop %v3210
        %v3212 = vmul.f32 %v2749, 1.442695
        %v3213 = vpow.pop %v3212
        %v3214 = vmul.f32 %v2750, 1.442695
        %v3215 = vpow.pop %v3214
        %v3216 = vmul.f32 %v2751, 1.442695
        %v3217 = vpow.pop %v3216
        %v3218 = vmul.f32 %v2752, 1.442695
        %v3219 = vpow.pop %v3218
        %v3220 = vmul.f32 %v2753, 1.442695
        %v3221 = vpow.pop %v3220
        %v3222 = vmul.f32 %v2754, 1.442695
        %v3223 = vpow.pop %v3222
        %v3224 = vmul.f32 %v2755, 1.442695
        %v3225 = vpow.pop %v3224
        %v3226 = vmul.f32 %v2756, 1.442695
        %v3227 = vpow.pop %v3226
        %v3228 = vmul.f32 %v2757, 1.442695
        %v3229 = vpow.pop %v3228
        %v3230 = vmul.f32 %v2758, 1.442695
        %v3231 = vpow.pop %v3230
        %v3232 = vmul.f32 %v2759, 1.442695
        %v3233 = vpow.pop %v3232
        %v3234 = vmul.f32 %v2760, 1.442695
        %v3235 = vpow.pop %v3234
        %v3236 = vmul.f32 %v2761, 1.442695
        %v3237 = vpow.pop %v3236
        %v3238 = vmul.f32 %v2762, 1.442695
        %v3239 = vpow.pop %v3238
        %v3240 = vmul.f32 %v2763, 1.442695
        %v3241 = vpow.pop %v3240
        %v3242 = vmul.f32 %v2764, 1.442695
        %v3243 = vpow.pop %v3242
        %v3244 = vmul.f32 %v2765, 1.442695
        %v3245 = vpow.pop %v3244
        %v3246 = vmul.f32 %v2766, 1.442695
        %v3247 = vpow.pop %v3246
        %v3248 = vmul.f32 %v2767, 1.442695
        %v3249 = vpow.pop %v3248
        %v3250 = vmul.f32 %v2768, 1.442695
        %v3251 = vpow.pop %v3250
        %v3252 = vmul.f32 %v2769, 1.442695
        %v3253 = vpow.pop %v3252
        %v3254 = vmul.f32 %v2770, 1.442695
        %v3255 = vpow.pop %v3254
        %v3256 = vmul.f32 %v2771, 1.442695
        %v3257 = vpow.pop %v3256
        %v3258 = vmul.f32 %v2772, 1.442695
        %v3259 = vpow.pop %v3258
        %v3260 = vmul.f32 %v2773, 1.442695
        %v3261 = vpow.pop %v3260
        %v3262 = vmul.f32 %v2774, 1.442695
        %v3263 = vpow.pop %v3262
        %v3264 = vmul.f32 %v2775, 1.442695
        %v3265 = vpow.pop %v3264
        %v3266 = vmul.f32 %v2776, 1.442695
        %v3267 = vpow.pop %v3266
        %v3268 = vmul.f32 %v2777, 1.442695
        %v3269 = vpow.pop %v3268
        %v3270 = vmul.f32 %v2778, 1.442695
        %v3271 = vpow.pop %v3270
        %v3272 = vmul.f32 %v2779, 1.442695
        %v3273 = vpow.pop %v3272
        %v3274 = vmul.f32 %v2780, 1.442695
        %v3275 = vpow.pop %v3274
        %v3276 = vmul.f32 %v2781, 1.442695
        %v3277 = vpow.pop %v3276
        %v3278 = vmul.f32 %v2782, 1.442695
        %v3279 = vpow.pop %v3278
        %v3280 = vmul.f32 %v2783, 1.442695
        %v3281 = vpow.pop %v3280
        %v3282 = vmul.f32 %v2784, 1.442695
        %v3283 = vpow.pop %v3282
        %v3284 = vmul.f32 %v2785, 1.442695
        %v3285 = vpow.pop %v3284
        %v3286 = vmul.f32 %v2786, 1.442695
        %v3287 = vpow.pop %v3286
        %v3288 = vmul.f32 %v2787, 1.442695
        %v3289 = vpow.pop %v3288
        %v3290 = vmul.f32 %v2788, 1.442695
        %v3291 = vpow.pop %v3290
        %v3292 = vmul.f32 %v2789, 1.442695
        %v3293 = vpow.pop %v3292
        %v3294 = vmul.f32 %v2790, 1.442695
        %v3295 = vpow.pop %v3294
        %v3296 = vmul.f32 %v2791, 1.442695
        %v3297 = vpow.pop %v3296
        %v3298 = vmul.f32 %v2792, 1.442695
        %v3299 = vpow.pop %v3298
        %v3300 = vmul.f32 %v2793, 1.442695
        %v3301 = vpow.pop %v3300
        %v3302 = vmul.f32 %v2794, 1.442695
        %v3303 = vpow.pop %v3302
        %v3304 = vmul.f32 %v2795, 1.442695
        %v3305 = vpow.pop %v3304
        %v3306 = vmul.f32 %v2796, 1.442695
        %v3307 = vpow.pop %v3306
        %v3308 = vmul.f32 %v2797, 1.442695
        %v3309 = vpow.pop %v3308
        %v3310 = vadd.f32 %v2799, %v2801
        %3311 = vadd.xlane.f32.xlu0 %v3310
        %v3312 = vpop.xlane.xlu0 %3311
        %v3313 = vadd.f32 %v2803, %v2805
        %3314 = vadd.xlane.f32.xlu0 %v3313
        %v3315 = vpop.xlane.xlu0 %3314
        %v3316 = vadd.f32 %v2807, %v2809
        %3317 = vadd.xlane.f32.xlu0 %v3316
        %v3318 = vpop.xlane.xlu0 %3317
        %v3319 = vadd.f32 %v2811, %v2813
        %3320 = vadd.xlane.f32.xlu0 %v3319
        %v3321 = vpop.xlane.xlu0 %3320
        %v3322 = vadd.f32 %v2815, %v2817
        %3323 = vadd.xlane.f32.xlu0 %v3322
        %v3324 = vpop.xlane.xlu0 %3323
        %v3325 = vadd.f32 %v2819, %v2821
        %3326 = vadd.xlane.f32.xlu0 %v3325
        %v3327 = vpop.xlane.xlu0 %3326
        %v3328 = vadd.f32 %v2823, %v2825
        %3329 = vadd.xlane.f32.xlu0 %v3328
        %v3330 = vpop.xlane.xlu0 %3329
        %v3331 = vadd.f32 %v2827, %v2829
        %3332 = vadd.xlane.f32.xlu0 %v3331
        %v3333 = vpop.xlane.xlu0 %3332
        %v3334 = vadd.f32 %v2831, %v2833
        %3335 = vadd.xlane.f32.xlu0 %v3334
        %v3336 = vpop.xlane.xlu0 %3335
        %v3337 = vadd.f32 %v2835, %v2837
        %3338 = vadd.xlane.f32.xlu0 %v3337
        %v3339 = vpop.xlane.xlu0 %3338
        %v3340 = vadd.f32 %v2839, %v2841
        %3341 = vadd.xlane.f32.xlu0 %v3340
        %v3342 = vpop.xlane.xlu0 %3341
        %v3343 = vadd.f32 %v2843, %v2845
        %3344 = vadd.xlane.f32.xlu0 %v3343
        %v3345 = vpop.xlane.xlu0 %3344
        %v3346 = vadd.f32 %v2847, %v2849
        %3347 = vadd.xlane.f32.xlu0 %v3346
        %v3348 = vpop.xlane.xlu0 %3347
        %v3349 = vadd.f32 %v2851, %v2853
        %3350 = vadd.xlane.f32.xlu0 %v3349
        %v3351 = vpop.xlane.xlu0 %3350
        %v3352 = vadd.f32 %v2855, %v2857
        %3353 = vadd.xlane.f32.xlu0 %v3352
        %v3354 = vpop.xlane.xlu0 %3353
        %v3355 = vadd.f32 %v2859, %v2861
        %3356 = vadd.xlane.f32.xlu0 %v3355
        %v3357 = vpop.xlane.xlu0 %3356
        %v3358 = vadd.f32 %v2863, %v2865
        %3359 = vadd.xlane.f32.xlu0 %v3358
        %v3360 = vpop.xlane.xlu0 %3359
        %v3361 = vadd.f32 %v2867, %v2869
        %3362 = vadd.xlane.f32.xlu0 %v3361
        %v3363 = vpop.xlane.xlu0 %3362
        %v3364 = vadd.f32 %v2871, %v2873
        %3365 = vadd.xlane.f32.xlu0 %v3364
        %v3366 = vpop.xlane.xlu0 %3365
        %v3367 = vadd.f32 %v2875, %v2877
        %3368 = vadd.xlane.f32.xlu0 %v3367
        %v3369 = vpop.xlane.xlu0 %3368
        %v3370 = vadd.f32 %v2879, %v2881
        %3371 = vadd.xlane.f32.xlu0 %v3370
        %v3372 = vpop.xlane.xlu0 %3371
        %v3373 = vadd.f32 %v2883, %v2885
        %3374 = vadd.xlane.f32.xlu0 %v3373
        %v3375 = vpop.xlane.xlu0 %3374
        %v3376 = vadd.f32 %v2887, %v2889
        %3377 = vadd.xlane.f32.xlu0 %v3376
        %v3378 = vpop.xlane.xlu0 %3377
        %v3379 = vadd.f32 %v2891, %v2893
        %3380 = vadd.xlane.f32.xlu0 %v3379
        %v3381 = vpop.xlane.xlu0 %3380
        %v3382 = vadd.f32 %v2895, %v2897
        %3383 = vadd.xlane.f32.xlu0 %v3382
        %v3384 = vpop.xlane.xlu0 %3383
        %v3385 = vadd.f32 %v2899, %v2901
        %3386 = vadd.xlane.f32.xlu0 %v3385
        %v3387 = vpop.xlane.xlu0 %3386
        %v3388 = vadd.f32 %v2903, %v2905
        %3389 = vadd.xlane.f32.xlu0 %v3388
        %v3390 = vpop.xlane.xlu0 %3389
        %v3391 = vadd.f32 %v2907, %v2909
        %3392 = vadd.xlane.f32.xlu0 %v3391
        %v3393 = vpop.xlane.xlu0 %3392
        %v3394 = vadd.f32 %v2911, %v2913
        %3395 = vadd.xlane.f32.xlu0 %v3394
        %v3396 = vpop.xlane.xlu0 %3395
        %v3397 = vadd.f32 %v2915, %v2917
        %3398 = vadd.xlane.f32.xlu0 %v3397
        %v3399 = vpop.xlane.xlu0 %3398
        %v3400 = vadd.f32 %v2919, %v2921
        %3401 = vadd.xlane.f32.xlu0 %v3400
        %v3402 = vpop.xlane.xlu0 %3401
        %v3403 = vadd.f32 %v2923, %v2925
        %3404 = vadd.xlane.f32.xlu0 %v3403
        %v3405 = vpop.xlane.xlu0 %3404
        %v3406 = vadd.f32 %v2927, %v2929
        %3407 = vadd.xlane.f32.xlu0 %v3406
        %v3408 = vpop.xlane.xlu0 %3407
        %v3409 = vadd.f32 %v2931, %v2933
        %3410 = vadd.xlane.f32.xlu0 %v3409
        %v3411 = vpop.xlane.xlu0 %3410
        %v3412 = vadd.f32 %v2935, %v2937
        %3413 = vadd.xlane.f32.xlu0 %v3412
        %v3414 = vpop.xlane.xlu0 %3413
        %v3415 = vadd.f32 %v2939, %v2941
        %3416 = vadd.xlane.f32.xlu0 %v3415
        %v3417 = vpop.xlane.xlu0 %3416
        %v3418 = vadd.f32 %v2943, %v2945
        %3419 = vadd.xlane.f32.xlu0 %v3418
        %v3420 = vpop.xlane.xlu0 %3419
        %v3421 = vadd.f32 %v2947, %v2949
        %3422 = vadd.xlane.f32.xlu0 %v3421
        %v3423 = vpop.xlane.xlu0 %3422
        %v3424 = vadd.f32 %v2951, %v2953
        %3425 = vadd.xlane.f32.xlu0 %v3424
        %v3426 = vpop.xlane.xlu0 %3425
        %v3427 = vadd.f32 %v2955, %v2957
        %3428 = vadd.xlane.f32.xlu0 %v3427
        %v3429 = vpop.xlane.xlu0 %3428
        %v3430 = vadd.f32 %v2959, %v2961
        %3431 = vadd.xlane.f32.xlu0 %v3430
        %v3432 = vpop.xlane.xlu0 %3431
        %v3433 = vadd.f32 %v2963, %v2965
        %3434 = vadd.xlane.f32.xlu0 %v3433
        %v3435 = vpop.xlane.xlu0 %3434
        %v3436 = vadd.f32 %v2967, %v2969
        %3437 = vadd.xlane.f32.xlu0 %v3436
        %v3438 = vpop.xlane.xlu0 %3437
        %v3439 = vadd.f32 %v2971, %v2973
        %3440 = vadd.xlane.f32.xlu0 %v3439
        %v3441 = vpop.xlane.xlu0 %3440
        %v3442 = vadd.f32 %v2975, %v2977
        %3443 = vadd.xlane.f32.xlu0 %v3442
        %v3444 = vpop.xlane.xlu0 %3443
        %v3445 = vadd.f32 %v2979, %v2981
        %3446 = vadd.xlane.f32.xlu0 %v3445
        %v3447 = vpop.xlane.xlu0 %3446
        %v3448 = vadd.f32 %v2983, %v2985
        %3449 = vadd.xlane.f32.xlu0 %v3448
        %v3450 = vpop.xlane.xlu0 %3449
        %v3451 = vadd.f32 %v2987, %v2989
        %3452 = vadd.xlane.f32.xlu0 %v3451
        %v3453 = vpop.xlane.xlu0 %3452
        %v3454 = vadd.f32 %v2991, %v2993
        %3455 = vadd.xlane.f32.xlu0 %v3454
        %v3456 = vpop.xlane.xlu0 %3455
        %v3457 = vadd.f32 %v2995, %v2997
        %3458 = vadd.xlane.f32.xlu0 %v3457
        %v3459 = vpop.xlane.xlu0 %3458
        %v3460 = vadd.f32 %v2999, %v3001
        %3461 = vadd.xlane.f32.xlu0 %v3460
        %v3462 = vpop.xlane.xlu0 %3461
        %v3463 = vadd.f32 %v3003, %v3005
        %3464 = vadd.xlane.f32.xlu0 %v3463
        %v3465 = vpop.xlane.xlu0 %3464
        %v3466 = vadd.f32 %v3007, %v3009
        %3467 = vadd.xlane.f32.xlu0 %v3466
        %v3468 = vpop.xlane.xlu0 %3467
        %v3469 = vadd.f32 %v3011, %v3013
        %3470 = vadd.xlane.f32.xlu0 %v3469
        %v3471 = vpop.xlane.xlu0 %3470
        %v3472 = vadd.f32 %v3015, %v3017
        %3473 = vadd.xlane.f32.xlu0 %v3472
        %v3474 = vpop.xlane.xlu0 %3473
        %v3475 = vadd.f32 %v3019, %v3021
        %3476 = vadd.xlane.f32.xlu0 %v3475
        %v3477 = vpop.xlane.xlu0 %3476
        %v3478 = vadd.f32 %v3023, %v3025
        %3479 = vadd.xlane.f32.xlu0 %v3478
        %v3480 = vpop.xlane.xlu0 %3479
        %v3481 = vadd.f32 %v3027, %v3029
        %3482 = vadd.xlane.f32.xlu0 %v3481
        %v3483 = vpop.xlane.xlu0 %3482
        %v3484 = vadd.f32 %v3031, %v3033
        %3485 = vadd.xlane.f32.xlu0 %v3484
        %v3486 = vpop.xlane.xlu0 %3485
        %v3487 = vadd.f32 %v3035, %v3037
        %3488 = vadd.xlane.f32.xlu0 %v3487
        %v3489 = vpop.xlane.xlu0 %3488
        %v3490 = vadd.f32 %v3039, %v3041
        %3491 = vadd.xlane.f32.xlu0 %v3490
        %v3492 = vpop.xlane.xlu0 %3491
        %v3493 = vadd.f32 %v3043, %v3045
        %3494 = vadd.xlane.f32.xlu0 %v3493
        %v3495 = vpop.xlane.xlu0 %3494
        %v3496 = vadd.f32 %v3047, %v3049
        %3497 = vadd.xlane.f32.xlu0 %v3496
        %v3498 = vpop.xlane.xlu0 %3497
        %v3499 = vadd.f32 %v3051, %v3053
        %3500 = vadd.xlane.f32.xlu0 %v3499
        %v3501 = vpop.xlane.xlu0 %3500
        %v3502 = vadd.f32 %v3055, %v3057
        %3503 = vadd.xlane.f32.xlu0 %v3502
        %v3504 = vpop.xlane.xlu0 %3503
        %v3505 = vadd.f32 %v3059, %v3061
        %3506 = vadd.xlane.f32.xlu0 %v3505
        %v3507 = vpop.xlane.xlu0 %3506
        %v3508 = vadd.f32 %v3063, %v3065
        %3509 = vadd.xlane.f32.xlu0 %v3508
        %v3510 = vpop.xlane.xlu0 %3509
        %v3511 = vadd.f32 %v3067, %v3069
        %3512 = vadd.xlane.f32.xlu0 %v3511
        %v3513 = vpop.xlane.xlu0 %3512
        %v3514 = vadd.f32 %v3071, %v3073
        %3515 = vadd.xlane.f32.xlu0 %v3514
        %v3516 = vpop.xlane.xlu0 %3515
        %v3517 = vadd.f32 %v3075, %v3077
        %3518 = vadd.xlane.f32.xlu0 %v3517
        %v3519 = vpop.xlane.xlu0 %3518
        %v3520 = vadd.f32 %v3079, %v3081
        %3521 = vadd.xlane.f32.xlu0 %v3520
        %v3522 = vpop.xlane.xlu0 %3521
        %v3523 = vadd.f32 %v3083, %v3085
        %3524 = vadd.xlane.f32.xlu0 %v3523
        %v3525 = vpop.xlane.xlu0 %3524
        %v3526 = vadd.f32 %v3087, %v3089
        %3527 = vadd.xlane.f32.xlu0 %v3526
        %v3528 = vpop.xlane.xlu0 %3527
        %v3529 = vadd.f32 %v3091, %v3093
        %3530 = vadd.xlane.f32.xlu0 %v3529
        %v3531 = vpop.xlane.xlu0 %3530
        %v3532 = vadd.f32 %v3095, %v3097
        %3533 = vadd.xlane.f32.xlu0 %v3532
        %v3534 = vpop.xlane.xlu0 %3533
        %v3535 = vadd.f32 %v3099, %v3101
        %3536 = vadd.xlane.f32.xlu0 %v3535
        %v3537 = vpop.xlane.xlu0 %3536
        %v3538 = vadd.f32 %v3103, %v3105
        %3539 = vadd.xlane.f32.xlu0 %v3538
        %v3540 = vpop.xlane.xlu0 %3539
        %v3541 = vadd.f32 %v3107, %v3109
        %3542 = vadd.xlane.f32.xlu0 %v3541
        %v3543 = vpop.xlane.xlu0 %3542
        %v3544 = vadd.f32 %v3111, %v3113
        %3545 = vadd.xlane.f32.xlu0 %v3544
        %v3546 = vpop.xlane.xlu0 %3545
        %v3547 = vadd.f32 %v3115, %v3117
        %3548 = vadd.xlane.f32.xlu0 %v3547
        %v3549 = vpop.xlane.xlu0 %3548
        %v3550 = vadd.f32 %v3119, %v3121
        %3551 = vadd.xlane.f32.xlu0 %v3550
        %v3552 = vpop.xlane.xlu0 %3551
        %v3553 = vadd.f32 %v3123, %v3125
        %3554 = vadd.xlane.f32.xlu0 %v3553
        %v3555 = vpop.xlane.xlu0 %3554
        %v3556 = vadd.f32 %v3127, %v3129
        %3557 = vadd.xlane.f32.xlu0 %v3556
        %v3558 = vpop.xlane.xlu0 %3557
        %v3559 = vadd.f32 %v3131, %v3133
        %3560 = vadd.xlane.f32.xlu0 %v3559
        %v3561 = vpop.xlane.xlu0 %3560
        %v3562 = vadd.f32 %v3135, %v3137
        %3563 = vadd.xlane.f32.xlu0 %v3562
        %v3564 = vpop.xlane.xlu0 %3563
        %v3565 = vadd.f32 %v3139, %v3141
        %3566 = vadd.xlane.f32.xlu0 %v3565
        %v3567 = vpop.xlane.xlu0 %3566
        %v3568 = vadd.f32 %v3143, %v3145
        %3569 = vadd.xlane.f32.xlu0 %v3568
        %v3570 = vpop.xlane.xlu0 %3569
        %v3571 = vadd.f32 %v3147, %v3149
        %3572 = vadd.xlane.f32.xlu0 %v3571
        %v3573 = vpop.xlane.xlu0 %3572
        %v3574 = vadd.f32 %v3151, %v3153
        %3575 = vadd.xlane.f32.xlu0 %v3574
        %v3576 = vpop.xlane.xlu0 %3575
        %v3577 = vadd.f32 %v3155, %v3157
        %3578 = vadd.xlane.f32.xlu0 %v3577
        %v3579 = vpop.xlane.xlu0 %3578
        %v3580 = vadd.f32 %v3159, %v3161
        %3581 = vadd.xlane.f32.xlu0 %v3580
        %v3582 = vpop.xlane.xlu0 %3581
        %v3583 = vadd.f32 %v3163, %v3165
        %3584 = vadd.xlane.f32.xlu0 %v3583
        %v3585 = vpop.xlane.xlu0 %3584
        %v3586 = vadd.f32 %v3167, %v3169
        %3587 = vadd.xlane.f32.xlu0 %v3586
        %v3588 = vpop.xlane.xlu0 %3587
        %v3589 = vadd.f32 %v3171, %v3173
        %3590 = vadd.xlane.f32.xlu0 %v3589
        %v3591 = vpop.xlane.xlu0 %3590
        %v3592 = vadd.f32 %v3175, %v3177
        %3593 = vadd.xlane.f32.xlu0 %v3592
        %v3594 = vpop.xlane.xlu0 %3593
        %v3595 = vadd.f32 %v3179, %v3181
        %3596 = vadd.xlane.f32.xlu0 %v3595
        %v3597 = vpop.xlane.xlu0 %3596
        %v3598 = vadd.f32 %v3183, %v3185
        %3599 = vadd.xlane.f32.xlu0 %v3598
        %v3600 = vpop.xlane.xlu0 %3599
        %v3601 = vadd.f32 %v3187, %v3189
        %3602 = vadd.xlane.f32.xlu0 %v3601
        %v3603 = vpop.xlane.xlu0 %3602
        %v3604 = vadd.f32 %v3191, %v3193
        %3605 = vadd.xlane.f32.xlu0 %v3604
        %v3606 = vpop.xlane.xlu0 %3605
        %v3607 = vadd.f32 %v3195, %v3197
        %3608 = vadd.xlane.f32.xlu0 %v3607
        %v3609 = vpop.xlane.xlu0 %3608
        %v3610 = vadd.f32 %v3199, %v3201
        %3611 = vadd.xlane.f32.xlu0 %v3610
        %v3612 = vpop.xlane.xlu0 %3611
        %v3613 = vadd.f32 %v3203, %v3205
        %3614 = vadd.xlane.f32.xlu0 %v3613
        %v3615 = vpop.xlane.xlu0 %3614
        %v3616 = vadd.f32 %v3207, %v3209
        %3617 = vadd.xlane.f32.xlu0 %v3616
        %v3618 = vpop.xlane.xlu0 %3617
        %v3619 = vadd.f32 %v3211, %v3213
        %3620 = vadd.xlane.f32.xlu0 %v3619
        %v3621 = vpop.xlane.xlu0 %3620
        %v3622 = vadd.f32 %v3215, %v3217
        %3623 = vadd.xlane.f32.xlu0 %v3622
        %v3624 = vpop.xlane.xlu0 %3623
        %v3625 = vadd.f32 %v3219, %v3221
        %3626 = vadd.xlane.f32.xlu0 %v3625
        %v3627 = vpop.xlane.xlu0 %3626
        %v3628 = vadd.f32 %v3223, %v3225
        %3629 = vadd.xlane.f32.xlu0 %v3628
        %v3630 = vpop.xlane.xlu0 %3629
        %v3631 = vadd.f32 %v3227, %v3229
        %3632 = vadd.xlane.f32.xlu0 %v3631
        %v3633 = vpop.xlane.xlu0 %3632
        %v3634 = vadd.f32 %v3231, %v3233
        %3635 = vadd.xlane.f32.xlu0 %v3634
        %v3636 = vpop.xlane.xlu0 %3635
        %v3637 = vadd.f32 %v3235, %v3237
        %3638 = vadd.xlane.f32.xlu0 %v3637
        %v3639 = vpop.xlane.xlu0 %3638
        %v3640 = vadd.f32 %v3239, %v3241
        %3641 = vadd.xlane.f32.xlu0 %v3640
        %v3642 = vpop.xlane.xlu0 %3641
        %v3643 = vadd.f32 %v3243, %v3245
        %3644 = vadd.xlane.f32.xlu0 %v3643
        %v3645 = vpop.xlane.xlu0 %3644
        %v3646 = vadd.f32 %v3247, %v3249
        %3647 = vadd.xlane.f32.xlu0 %v3646
        %v3648 = vpop.xlane.xlu0 %3647
        %v3649 = vadd.f32 %v3251, %v3253
        %3650 = vadd.xlane.f32.xlu0 %v3649
        %v3651 = vpop.xlane.xlu0 %3650
        %v3652 = vadd.f32 %v3255, %v3257
        %3653 = vadd.xlane.f32.xlu0 %v3652
        %v3654 = vpop.xlane.xlu0 %3653
        %v3655 = vadd.f32 %v3259, %v3261
        %3656 = vadd.xlane.f32.xlu0 %v3655
        %v3657 = vpop.xlane.xlu0 %3656
        %v3658 = vadd.f32 %v3263, %v3265
        %3659 = vadd.xlane.f32.xlu0 %v3658
        %v3660 = vpop.xlane.xlu0 %3659
        %v3661 = vadd.f32 %v3267, %v3269
        %3662 = vadd.xlane.f32.xlu0 %v3661
        %v3663 = vpop.xlane.xlu0 %3662
        %v3664 = vadd.f32 %v3271, %v3273
        %3665 = vadd.xlane.f32.xlu0 %v3664
        %v3666 = vpop.xlane.xlu0 %3665
        %v3667 = vadd.f32 %v3275, %v3277
        %3668 = vadd.xlane.f32.xlu0 %v3667
        %v3669 = vpop.xlane.xlu0 %3668
        %v3670 = vadd.f32 %v3279, %v3281
        %3671 = vadd.xlane.f32.xlu0 %v3670
        %v3672 = vpop.xlane.xlu0 %3671
        %v3673 = vadd.f32 %v3283, %v3285
        %3674 = vadd.xlane.f32.xlu0 %v3673
        %v3675 = vpop.xlane.xlu0 %3674
        %v3676 = vadd.f32 %v3287, %v3289
        %3677 = vadd.xlane.f32.xlu0 %v3676
        %v3678 = vpop.xlane.xlu0 %3677
        %v3679 = vadd.f32 %v3291, %v3293
        %3680 = vadd.xlane.f32.xlu0 %v3679
        %v3681 = vpop.xlane.xlu0 %3680
        %v3682 = vadd.f32 %v3295, %v3297
        %3683 = vadd.xlane.f32.xlu0 %v3682
        %v3684 = vpop.xlane.xlu0 %3683
        %v3685 = vadd.f32 %v3299, %v3301
        %3686 = vadd.xlane.f32.xlu0 %v3685
        %v3687 = vpop.xlane.xlu0 %3686
        %v3688 = vadd.f32 %v3303, %v3305
        %3689 = vadd.xlane.f32.xlu0 %v3688
        %v3690 = vpop.xlane.xlu0 %3689
        %v3691 = vadd.f32 %v3307, %v3309
        %3692 = vadd.xlane.f32.xlu0 %v3691
        %v3693 = vpop.xlane.xlu0 %3692
        %v3694 = vrcp.pop %v3312
        %v3695 = vrcp.pop %v3315
        %v3696 = vrcp.pop %v3318
        %v3697 = vrcp.pop %v3321
        %v3698 = vrcp.pop %v3324
        %v3699 = vrcp.pop %v3327
        %v3700 = vrcp.pop %v3330
        %v3701 = vrcp.pop %v3333
        %v3702 = vrcp.pop %v3336
        %v3703 = vrcp.pop %v3339
        %v3704 = vrcp.pop %v3342
        %v3705 = vrcp.pop %v3345
        %v3706 = vrcp.pop %v3348
        %v3707 = vrcp.pop %v3351
        %v3708 = vrcp.pop %v3354
        %v3709 = vrcp.pop %v3357
        %v3710 = vrcp.pop %v3360
        %v3711 = vrcp.pop %v3363
        %v3712 = vrcp.pop %v3366
        %v3713 = vrcp.pop %v3369
        %v3714 = vrcp.pop %v3372
        %v3715 = vrcp.pop %v3375
        %v3716 = vrcp.pop %v3378
        %v3717 = vrcp.pop %v3381
        %v3718 = vrcp.pop %v3384
        %v3719 = vrcp.pop %v3387
        %v3720 = vrcp.pop %v3390
        %v3721 = vrcp.pop %v3393
        %v3722 = vrcp.pop %v3396
        %v3723 = vrcp.pop %v3399
        %v3724 = vrcp.pop %v3402
        %v3725 = vrcp.pop %v3405
        %v3726 = vrcp.pop %v3408
        %v3727 = vrcp.pop %v3411
        %v3728 = vrcp.pop %v3414
        %v3729 = vrcp.pop %v3417
        %v3730 = vrcp.pop %v3420
        %v3731 = vrcp.pop %v3423
        %v3732 = vrcp.pop %v3426
        %v3733 = vrcp.pop %v3429
        %v3734 = vrcp.pop %v3432
        %v3735 = vrcp.pop %v3435
        %v3736 = vrcp.pop %v3438
        %v3737 = vrcp.pop %v3441
        %v3738 = vrcp.pop %v3444
        %v3739 = vrcp.pop %v3447
        %v3740 = vrcp.pop %v3450
        %v3741 = vrcp.pop %v3453
        %v3742 = vrcp.pop %v3456
        %v3743 = vrcp.pop %v3459
        %v3744 = vrcp.pop %v3462
        %v3745 = vrcp.pop %v3465
        %v3746 = vrcp.pop %v3468
        %v3747 = vrcp.pop %v3471
        %v3748 = vrcp.pop %v3474
        %v3749 = vrcp.pop %v3477
        %v3750 = vrcp.pop %v3480
        %v3751 = vrcp.pop %v3483
        %v3752 = vrcp.pop %v3486
        %v3753 = vrcp.pop %v3489
        %v3754 = vrcp.pop %v3492
        %v3755 = vrcp.pop %v3495
        %v3756 = vrcp.pop %v3498
        %v3757 = vrcp.pop %v3501
        %v3758 = vrcp.pop %v3504
        %v3759 = vrcp.pop %v3507
        %v3760 = vrcp.pop %v3510
        %v3761 = vrcp.pop %v3513
        %v3762 = vrcp.pop %v3516
        %v3763 = vrcp.pop %v3519
        %v3764 = vrcp.pop %v3522
        %v3765 = vrcp.pop %v3525
        %v3766 = vrcp.pop %v3528
        %v3767 = vrcp.pop %v3531
        %v3768 = vrcp.pop %v3534
        %v3769 = vrcp.pop %v3537
        %v3770 = vrcp.pop %v3540
        %v3771 = vrcp.pop %v3543
        %v3772 = vrcp.pop %v3546
        %v3773 = vrcp.pop %v3549
        %v3774 = vrcp.pop %v3552
        %v3775 = vrcp.pop %v3555
        %v3776 = vrcp.pop %v3558
        %v3777 = vrcp.pop %v3561
        %v3778 = vrcp.pop %v3564
        %v3779 = vrcp.pop %v3567
        %v3780 = vrcp.pop %v3570
        %v3781 = vrcp.pop %v3573
        %v3782 = vrcp.pop %v3576
        %v3783 = vrcp.pop %v3579
        %v3784 = vrcp.pop %v3582
        %v3785 = vrcp.pop %v3585
        %v3786 = vrcp.pop %v3588
        %v3787 = vrcp.pop %v3591
        %v3788 = vrcp.pop %v3594
        %v3789 = vrcp.pop %v3597
        %v3790 = vrcp.pop %v3600
        %v3791 = vrcp.pop %v3603
        %v3792 = vrcp.pop %v3606
        %v3793 = vrcp.pop %v3609
        %v3794 = vrcp.pop %v3612
        %v3795 = vrcp.pop %v3615
        %v3796 = vrcp.pop %v3618
        %v3797 = vrcp.pop %v3621
        %v3798 = vrcp.pop %v3624
        %v3799 = vrcp.pop %v3627
        %v3800 = vrcp.pop %v3630
        %v3801 = vrcp.pop %v3633
        %v3802 = vrcp.pop %v3636
        %v3803 = vrcp.pop %v3639
        %v3804 = vrcp.pop %v3642
        %v3805 = vrcp.pop %v3645
        %v3806 = vrcp.pop %v3648
        %v3807 = vrcp.pop %v3651
        %v3808 = vrcp.pop %v3654
        %v3809 = vrcp.pop %v3657
        %v3810 = vrcp.pop %v3660
        %v3811 = vrcp.pop %v3663
        %v3812 = vrcp.pop %v3666
        %v3813 = vrcp.pop %v3669
        %v3814 = vrcp.pop %v3672
        %v3815 = vrcp.pop %v3675
        %v3816 = vrcp.pop %v3678
        %v3817 = vrcp.pop %v3681
        %v3818 = vrcp.pop %v3684
        %v3819 = vrcp.pop %v3687
        %v3820 = vrcp.pop %v3690
        %v3821 = vrcp.pop %v3693
        %v3822 = vmul.f32 %v2799, %v3694
        %v3823 = vmul.f32 %v2801, %v3694
        %v3824 = vmul.f32 %v2803, %v3695
        %v3825 = vmul.f32 %v2805, %v3695
        %v3826 = vmul.f32 %v2807, %v3696
        %v3827 = vmul.f32 %v2809, %v3696
        %v3828 = vmul.f32 %v2811, %v3697
        %v3829 = vmul.f32 %v2813, %v3697
        %v3830 = vmul.f32 %v2815, %v3698
        %v3831 = vmul.f32 %v2817, %v3698
        %v3832 = vmul.f32 %v2819, %v3699
        %v3833 = vmul.f32 %v2821, %v3699
        %v3834 = vmul.f32 %v2823, %v3700
        %v3835 = vmul.f32 %v2825, %v3700
        %v3836 = vmul.f32 %v2827, %v3701
        %v3837 = vmul.f32 %v2829, %v3701
        %v3838 = vmul.f32 %v2831, %v3702
        %v3839 = vmul.f32 %v2833, %v3702
        %v3840 = vmul.f32 %v2835, %v3703
        %v3841 = vmul.f32 %v2837, %v3703
        %v3842 = vmul.f32 %v2839, %v3704
        %v3843 = vmul.f32 %v2841, %v3704
        %v3844 = vmul.f32 %v2843, %v3705
        %v3845 = vmul.f32 %v2845, %v3705
        %v3846 = vmul.f32 %v2847, %v3706
        %v3847 = vmul.f32 %v2849, %v3706
        %v3848 = vmul.f32 %v2851, %v3707
        %v3849 = vmul.f32 %v2853, %v3707
        %v3850 = vmul.f32 %v2855, %v3708
        %v3851 = vmul.f32 %v2857, %v3708
        %v3852 = vmul.f32 %v2859, %v3709
        %v3853 = vmul.f32 %v2861, %v3709
        %v3854 = vmul.f32 %v2863, %v3710
        %v3855 = vmul.f32 %v2865, %v3710
        %v3856 = vmul.f32 %v2867, %v3711
        %v3857 = vmul.f32 %v2869, %v3711
        %v3858 = vmul.f32 %v2871, %v3712
        %v3859 = vmul.f32 %v2873, %v3712
        %v3860 = vmul.f32 %v2875, %v3713
        %v3861 = vmul.f32 %v2877, %v3713
        %v3862 = vmul.f32 %v2879, %v3714
        %v3863 = vmul.f32 %v2881, %v3714
        %v3864 = vmul.f32 %v2883, %v3715
        %v3865 = vmul.f32 %v2885, %v3715
        %v3866 = vmul.f32 %v2887, %v3716
        %v3867 = vmul.f32 %v2889, %v3716
        %v3868 = vmul.f32 %v2891, %v3717
        %v3869 = vmul.f32 %v2893, %v3717
        %v3870 = vmul.f32 %v2895, %v3718
        %v3871 = vmul.f32 %v2897, %v3718
        %v3872 = vmul.f32 %v2899, %v3719
        %v3873 = vmul.f32 %v2901, %v3719
        %v3874 = vmul.f32 %v2903, %v3720
        %v3875 = vmul.f32 %v2905, %v3720
        %v3876 = vmul.f32 %v2907, %v3721
        %v3877 = vmul.f32 %v2909, %v3721
        %v3878 = vmul.f32 %v2911, %v3722
        %v3879 = vmul.f32 %v2913, %v3722
        %v3880 = vmul.f32 %v2915, %v3723
        %v3881 = vmul.f32 %v2917, %v3723
        %v3882 = vmul.f32 %v2919, %v3724
        %v3883 = vmul.f32 %v2921, %v3724
        %v3884 = vmul.f32 %v2923, %v3725
        %v3885 = vmul.f32 %v2925, %v3725
        %v3886 = vmul.f32 %v2927, %v3726
        %v3887 = vmul.f32 %v2929, %v3726
        %v3888 = vmul.f32 %v2931, %v3727
        %v3889 = vmul.f32 %v2933, %v3727
        %v3890 = vmul.f32 %v2935, %v3728
        %v3891 = vmul.f32 %v2937, %v3728
        %v3892 = vmul.f32 %v2939, %v3729
        %v3893 = vmul.f32 %v2941, %v3729
        %v3894 = vmul.f32 %v2943, %v3730
        %v3895 = vmul.f32 %v2945, %v3730
        %v3896 = vmul.f32 %v2947, %v3731
        %v3897 = vmul.f32 %v2949, %v3731
        %v3898 = vmul.f32 %v2951, %v3732
        %v3899 = vmul.f32 %v2953, %v3732
        %v3900 = vmul.f32 %v2955, %v3733
        %v3901 = vmul.f32 %v2957, %v3733
        %v3902 = vmul.f32 %v2959, %v3734
        %v3903 = vmul.f32 %v2961, %v3734
        %v3904 = vmul.f32 %v2963, %v3735
        %v3905 = vmul.f32 %v2965, %v3735
        %v3906 = vmul.f32 %v2967, %v3736
        %v3907 = vmul.f32 %v2969, %v3736
        %v3908 = vmul.f32 %v2971, %v3737
        %v3909 = vmul.f32 %v2973, %v3737
        %v3910 = vmul.f32 %v2975, %v3738
        %v3911 = vmul.f32 %v2977, %v3738
        %v3912 = vmul.f32 %v2979, %v3739
        %v3913 = vmul.f32 %v2981, %v3739
        %v3914 = vmul.f32 %v2983, %v3740
        %v3915 = vmul.f32 %v2985, %v3740
        %v3916 = vmul.f32 %v2987, %v3741
        %v3917 = vmul.f32 %v2989, %v3741
        %v3918 = vmul.f32 %v2991, %v3742
        %v3919 = vmul.f32 %v2993, %v3742
        %v3920 = vmul.f32 %v2995, %v3743
        %v3921 = vmul.f32 %v2997, %v3743
        %v3922 = vmul.f32 %v2999, %v3744
        %v3923 = vmul.f32 %v3001, %v3744
        %v3924 = vmul.f32 %v3003, %v3745
        %v3925 = vmul.f32 %v3005, %v3745
        %v3926 = vmul.f32 %v3007, %v3746
        %v3927 = vmul.f32 %v3009, %v3746
        %v3928 = vmul.f32 %v3011, %v3747
        %v3929 = vmul.f32 %v3013, %v3747
        %v3930 = vmul.f32 %v3015, %v3748
        %v3931 = vmul.f32 %v3017, %v3748
        %v3932 = vmul.f32 %v3019, %v3749
        %v3933 = vmul.f32 %v3021, %v3749
        %v3934 = vmul.f32 %v3023, %v3750
        %v3935 = vmul.f32 %v3025, %v3750
        %v3936 = vmul.f32 %v3027, %v3751
        %v3937 = vmul.f32 %v3029, %v3751
        %v3938 = vmul.f32 %v3031, %v3752
        %v3939 = vmul.f32 %v3033, %v3752
        %v3940 = vmul.f32 %v3035, %v3753
        %v3941 = vmul.f32 %v3037, %v3753
        %v3942 = vmul.f32 %v3039, %v3754
        %v3943 = vmul.f32 %v3041, %v3754
        %v3944 = vmul.f32 %v3043, %v3755
        %v3945 = vmul.f32 %v3045, %v3755
        %v3946 = vmul.f32 %v3047, %v3756
        %v3947 = vmul.f32 %v3049, %v3756
        %v3948 = vmul.f32 %v3051, %v3757
        %v3949 = vmul.f32 %v3053, %v3757
        %v3950 = vmul.f32 %v3055, %v3758
        %v3951 = vmul.f32 %v3057, %v3758
        %v3952 = vmul.f32 %v3059, %v3759
        %v3953 = vmul.f32 %v3061, %v3759
        %v3954 = vmul.f32 %v3063, %v3760
        %v3955 = vmul.f32 %v3065, %v3760
        %v3956 = vmul.f32 %v3067, %v3761
        %v3957 = vmul.f32 %v3069, %v3761
        %v3958 = vmul.f32 %v3071, %v3762
        %v3959 = vmul.f32 %v3073, %v3762
        %v3960 = vmul.f32 %v3075, %v3763
        %v3961 = vmul.f32 %v3077, %v3763
        %v3962 = vmul.f32 %v3079, %v3764
        %v3963 = vmul.f32 %v3081, %v3764
        %v3964 = vmul.f32 %v3083, %v3765
        %v3965 = vmul.f32 %v3085, %v3765
        %v3966 = vmul.f32 %v3087, %v3766
        %v3967 = vmul.f32 %v3089, %v3766
        %v3968 = vmul.f32 %v3091, %v3767
        %v3969 = vmul.f32 %v3093, %v3767
        %v3970 = vmul.f32 %v3095, %v3768
        %v3971 = vmul.f32 %v3097, %v3768
        %v3972 = vmul.f32 %v3099, %v3769
        %v3973 = vmul.f32 %v3101, %v3769
        %v3974 = vmul.f32 %v3103, %v3770
        %v3975 = vmul.f32 %v3105, %v3770
        %v3976 = vmul.f32 %v3107, %v3771
        %v3977 = vmul.f32 %v3109, %v3771
        %v3978 = vmul.f32 %v3111, %v3772
        %v3979 = vmul.f32 %v3113, %v3772
        %v3980 = vmul.f32 %v3115, %v3773
        %v3981 = vmul.f32 %v3117, %v3773
        %v3982 = vmul.f32 %v3119, %v3774
        %v3983 = vmul.f32 %v3121, %v3774
        %v3984 = vmul.f32 %v3123, %v3775
        %v3985 = vmul.f32 %v3125, %v3775
        %v3986 = vmul.f32 %v3127, %v3776
        %v3987 = vmul.f32 %v3129, %v3776
        %v3988 = vmul.f32 %v3131, %v3777
        %v3989 = vmul.f32 %v3133, %v3777
        %v3990 = vmul.f32 %v3135, %v3778
        %v3991 = vmul.f32 %v3137, %v3778
        %v3992 = vmul.f32 %v3139, %v3779
        %v3993 = vmul.f32 %v3141, %v3779
        %v3994 = vmul.f32 %v3143, %v3780
        %v3995 = vmul.f32 %v3145, %v3780
        %v3996 = vmul.f32 %v3147, %v3781
        %v3997 = vmul.f32 %v3149, %v3781
        %v3998 = vmul.f32 %v3151, %v3782
        %v3999 = vmul.f32 %v3153, %v3782
        %v4000 = vmul.f32 %v3155, %v3783
        %v4001 = vmul.f32 %v3157, %v3783
        %v4002 = vmul.f32 %v3159, %v3784
        %v4003 = vmul.f32 %v3161, %v3784
        %v4004 = vmul.f32 %v3163, %v3785
        %v4005 = vmul.f32 %v3165, %v3785
        %v4006 = vmul.f32 %v3167, %v3786
        %v4007 = vmul.f32 %v3169, %v3786
        %v4008 = vmul.f32 %v3171, %v3787
        %v4009 = vmul.f32 %v3173, %v3787
        %v4010 = vmul.f32 %v3175, %v3788
        %v4011 = vmul.f32 %v3177, %v3788
        %v4012 = vmul.f32 %v3179, %v3789
        %v4013 = vmul.f32 %v3181, %v3789
        %v4014 = vmul.f32 %v3183, %v3790
        %v4015 = vmul.f32 %v3185, %v3790
        %v4016 = vmul.f32 %v3187, %v3791
        %v4017 = vmul.f32 %v3189, %v3791
        %v4018 = vmul.f32 %v3191, %v3792
        %v4019 = vmul.f32 %v3193, %v3792
        %v4020 = vmul.f32 %v3195, %v3793
        %v4021 = vmul.f32 %v3197, %v3793
        %v4022 = vmul.f32 %v3199, %v3794
        %v4023 = vmul.f32 %v3201, %v3794
        %v4024 = vmul.f32 %v3203, %v3795
        %v4025 = vmul.f32 %v3205, %v3795
        %v4026 = vmul.f32 %v3207, %v3796
        %v4027 = vmul.f32 %v3209, %v3796
        %v4028 = vmul.f32 %v3211, %v3797
        %v4029 = vmul.f32 %v3213, %v3797
        %v4030 = vmul.f32 %v3215, %v3798
        %v4031 = vmul.f32 %v3217, %v3798
        %v4032 = vmul.f32 %v3219, %v3799
        %v4033 = vmul.f32 %v3221, %v3799
        %v4034 = vmul.f32 %v3223, %v3800
        %v4035 = vmul.f32 %v3225, %v3800
        %v4036 = vmul.f32 %v3227, %v3801
        %v4037 = vmul.f32 %v3229, %v3801
        %v4038 = vmul.f32 %v3231, %v3802
        %v4039 = vmul.f32 %v3233, %v3802
        %v4040 = vmul.f32 %v3235, %v3803
        %v4041 = vmul.f32 %v3237, %v3803
        %v4042 = vmul.f32 %v3239, %v3804
        %v4043 = vmul.f32 %v3241, %v3804
        %v4044 = vmul.f32 %v3243, %v3805
        %v4045 = vmul.f32 %v3245, %v3805
        %v4046 = vmul.f32 %v3247, %v3806
        %v4047 = vmul.f32 %v3249, %v3806
        %v4048 = vmul.f32 %v3251, %v3807
        %v4049 = vmul.f32 %v3253, %v3807
        %v4050 = vmul.f32 %v3255, %v3808
        %v4051 = vmul.f32 %v3257, %v3808
        %v4052 = vmul.f32 %v3259, %v3809
        %v4053 = vmul.f32 %v3261, %v3809
        %v4054 = vmul.f32 %v3263, %v3810
        %v4055 = vmul.f32 %v3265, %v3810
        %v4056 = vmul.f32 %v3267, %v3811
        %v4057 = vmul.f32 %v3269, %v3811
        %v4058 = vmul.f32 %v3271, %v3812
        %v4059 = vmul.f32 %v3273, %v3812
        %v4060 = vmul.f32 %v3275, %v3813
        %v4061 = vmul.f32 %v3277, %v3813
        %v4062 = vmul.f32 %v3279, %v3814
        %v4063 = vmul.f32 %v3281, %v3814
        %v4064 = vmul.f32 %v3283, %v3815
        %v4065 = vmul.f32 %v3285, %v3815
        %v4066 = vmul.f32 %v3287, %v3816
        %v4067 = vmul.f32 %v3289, %v3816
        %v4068 = vmul.f32 %v3291, %v3817
        %v4069 = vmul.f32 %v3293, %v3817
        %v4070 = vmul.f32 %v3295, %v3818
        %v4071 = vmul.f32 %v3297, %v3818
        %v4072 = vmul.f32 %v3299, %v3819
        %v4073 = vmul.f32 %v3301, %v3819
        %v4074 = vmul.f32 %v3303, %v3820
        %v4075 = vmul.f32 %v3305, %v3820
        %v4076 = vmul.f32 %v3307, %v3821
        %v4077 = vmul.f32 %v3309, %v3821
        %4078 = vmatprep.subr.mxu0 %v3823
        %4079 = vmatpush1.xpose.msra.mxu0 %v3822
        %4080 = vmatprep.subr.mxu0 %v3825
        %4081 = vmatpush1.xpose.msra.mxu0 %v3824
        %4082 = vmatprep.subr.mxu0 %v3827
        %4083 = vmatpush1.xpose.msra.mxu0 %v3826
        %4084 = vmatprep.subr.mxu0 %v3829
        %4085 = vmatpush1.xpose.msra.mxu0 %v3828
        %4086 = vmatprep.subr.mxu0 %v3831
        %4087 = vmatpush1.xpose.msra.mxu0 %v3830
        %4088 = vmatprep.subr.mxu0 %v3833
        %4089 = vmatpush1.xpose.msra.mxu0 %v3832
        %4090 = vmatprep.subr.mxu0 %v3835
        %4091 = vmatpush1.xpose.msra.mxu0 %v3834
        %4092 = vmatprep.subr.mxu0 %v3837
        %4093 = vmatpush1.xpose.msra.mxu0 %v3836
        %4094 = vmatprep.subr.mxu0 %v3839
        %4095 = vmatpush1.xpose.msra.mxu0 %v3838
        %4096 = vmatprep.subr.mxu0 %v3841
        %4097 = vmatpush1.xpose.msra.mxu0 %v3840
        %4098 = vmatprep.subr.mxu0 %v3843
        %4099 = vmatpush1.xpose.msra.mxu0 %v3842
        %4100 = vmatprep.subr.mxu0 %v3845
        %4101 = vmatpush1.xpose.msra.mxu0 %v3844
        %4102 = vmatprep.subr.mxu0 %v3847
        %4103 = vmatpush1.xpose.msra.mxu0 %v3846
        %4104 = vmatprep.subr.mxu0 %v3849
        %4105 = vmatpush1.xpose.msra.mxu0 %v3848
        %4106 = vmatprep.subr.mxu0 %v3851
        %4107 = vmatpush1.xpose.msra.mxu0 %v3850
        %4108 = vmatprep.subr.mxu0 %v3853
        %4109 = vmatpush1.xpose.msra.mxu0 %v3852
        %4110 = vmatprep.subr.mxu0 %v3855
        %4111 = vmatpush1.xpose.msra.mxu0 %v3854
        %4112 = vmatprep.subr.mxu0 %v3857
        %4113 = vmatpush1.xpose.msra.mxu0 %v3856
        %4114 = vmatprep.subr.mxu0 %v3859
        %4115 = vmatpush1.xpose.msra.mxu0 %v3858
        %4116 = vmatprep.subr.mxu0 %v3861
        %4117 = vmatpush1.xpose.msra.mxu0 %v3860
        %4118 = vmatprep.subr.mxu0 %v3863
        %4119 = vmatpush1.xpose.msra.mxu0 %v3862
        %4120 = vmatprep.subr.mxu0 %v3865
        %4121 = vmatpush1.xpose.msra.mxu0 %v3864
        %4122 = vmatprep.subr.mxu0 %v3867
        %4123 = vmatpush1.xpose.msra.mxu0 %v3866
        %4124 = vmatprep.subr.mxu0 %v3869
        %4125 = vmatpush1.xpose.msra.mxu0 %v3868
        %4126 = vmatprep.subr.mxu0 %v3871
        %4127 = vmatpush1.xpose.msra.mxu0 %v3870
        %4128 = vmatprep.subr.mxu0 %v3873
        %4129 = vmatpush1.xpose.msra.mxu0 %v3872
        %4130 = vmatprep.subr.mxu0 %v3875
        %4131 = vmatpush1.xpose.msra.mxu0 %v3874
        %4132 = vmatprep.subr.mxu0 %v3877
        %4133 = vmatpush1.xpose.msra.mxu0 %v3876
        %4134 = vmatprep.subr.mxu0 %v3879
        %4135 = vmatpush1.xpose.msra.mxu0 %v3878
        %4136 = vmatprep.subr.mxu0 %v3881
        %4137 = vmatpush1.xpose.msra.mxu0 %v3880
        %4138 = vmatprep.subr.mxu0 %v3883
        %4139 = vmatpush1.xpose.msra.mxu0 %v3882
        %4140 = vmatprep.subr.mxu0 %v3885
        %4141 = vmatpush1.xpose.msra.mxu0 %v3884
        %4142 = vmatprep.mubr.f32.mxu0 %v469
        %4143 = vmatmul.mubr.f32.gmra.mrb[0].mxu0 %v467
        %v4144 = vpop.f32.mrb[0].mxu0
        %v4145 = vadd.f32 0.0, %v4144
        %v4146 = vpop.f32.mrb[0].mxu0
        %v4147 = vadd.f32 0.0, %v4146
        %4148 = vdwg.mxu0
        %4149 = vmatprep.subr.mxu0 %v3887
        %4150 = vmatpush1.xpose.msra.mxu0 %v3886
        %4151 = vmatprep.subr.mxu0 %v3889
        %4152 = vmatpush1.xpose.msra.mxu0 %v3888
        %4153 = vmatprep.subr.mxu0 %v3891
        %4154 = vmatpush1.xpose.msra.mxu0 %v3890
        %4155 = vmatprep.subr.mxu0 %v3893
        %4156 = vmatpush1.xpose.msra.mxu0 %v3892
        %4157 = vmatprep.subr.mxu0 %v3895
        %4158 = vmatpush1.xpose.msra.mxu0 %v3894
        %4159 = vmatprep.subr.mxu0 %v3897
        %4160 = vmatpush1.xpose.msra.mxu0 %v3896
        %4161 = vmatprep.subr.mxu0 %v3899
        %4162 = vmatpush1.xpose.msra.mxu0 %v3898
        %4163 = vmatprep.subr.mxu0 %v3901
        %4164 = vmatpush1.xpose.msra.mxu0 %v3900
        %4165 = vmatprep.subr.mxu0 %v3903
        %4166 = vmatpush1.xpose.msra.mxu0 %v3902
        %4167 = vmatprep.subr.mxu0 %v3905
        %4168 = vmatpush1.xpose.msra.mxu0 %v3904
        %4169 = vmatprep.subr.mxu0 %v3907
        %4170 = vmatpush1.xpose.msra.mxu0 %v3906
        %4171 = vmatprep.subr.mxu0 %v3909
        %4172 = vmatpush1.xpose.msra.mxu0 %v3908
        %4173 = vmatprep.subr.mxu0 %v3911
        %4174 = vmatpush1.xpose.msra.mxu0 %v3910
        %4175 = vmatprep.subr.mxu0 %v3913
        %4176 = vmatpush1.xpose.msra.mxu0 %v3912
        %4177 = vmatprep.subr.mxu0 %v3915
        %4178 = vmatpush1.xpose.msra.mxu0 %v3914
        %4179 = vmatprep.subr.mxu0 %v3917
        %4180 = vmatpush1.xpose.msra.mxu0 %v3916
        %4181 = vmatprep.subr.mxu0 %v3919
        %4182 = vmatpush1.xpose.msra.mxu0 %v3918
        %4183 = vmatprep.subr.mxu0 %v3921
        %4184 = vmatpush1.xpose.msra.mxu0 %v3920
        %4185 = vmatprep.subr.mxu0 %v3923
        %4186 = vmatpush1.xpose.msra.mxu0 %v3922
        %4187 = vmatprep.subr.mxu0 %v3925
        %4188 = vmatpush1.xpose.msra.mxu0 %v3924
        %4189 = vmatprep.subr.mxu0 %v3927
        %4190 = vmatpush1.xpose.msra.mxu0 %v3926
        %4191 = vmatprep.subr.mxu0 %v3929
        %4192 = vmatpush1.xpose.msra.mxu0 %v3928
        %4193 = vmatprep.subr.mxu0 %v3931
        %4194 = vmatpush1.xpose.msra.mxu0 %v3930
        %4195 = vmatprep.subr.mxu0 %v3933
        %4196 = vmatpush1.xpose.msra.mxu0 %v3932
        %4197 = vmatprep.subr.mxu0 %v3935
        %4198 = vmatpush1.xpose.msra.mxu0 %v3934
        %4199 = vmatprep.subr.mxu0 %v3937
        %4200 = vmatpush1.xpose.msra.mxu0 %v3936
        %4201 = vmatprep.subr.mxu0 %v3939
        %4202 = vmatpush1.xpose.msra.mxu0 %v3938
        %4203 = vmatprep.subr.mxu0 %v3941
        %4204 = vmatpush1.xpose.msra.mxu0 %v3940
        %4205 = vmatprep.subr.mxu0 %v3943
        %4206 = vmatpush1.xpose.msra.mxu0 %v3942
        %4207 = vmatprep.subr.mxu0 %v3945
        %4208 = vmatpush1.xpose.msra.mxu0 %v3944
        %4209 = vmatprep.subr.mxu0 %v3947
        %4210 = vmatpush1.xpose.msra.mxu0 %v3946
        %4211 = vmatprep.subr.mxu0 %v3949
        %4212 = vmatpush1.xpose.msra.mxu0 %v3948
        %4213 = vmatprep.mubr.f32.mxu0 %v475
        %4214 = vmatmul.mubr.f32.gmra.mrb[0].mxu0 %v473
        %v4215 = vpop.f32.mrb[0].mxu0
        %v4216 = vadd.f32 0.0, %v4215
        %v4217 = vpop.f32.mrb[0].mxu0
        %v4218 = vadd.f32 0.0, %v4217
        %4219 = vdwg.mxu0
        %4220 = vmatprep.subr.mxu0 %v3951
        %4221 = vmatpush1.xpose.msra.mxu0 %v3950
        %4222 = vmatprep.subr.mxu0 %v3953
        %4223 = vmatpush1.xpose.msra.mxu0 %v3952
        %4224 = vmatprep.subr.mxu0 %v3955
        %4225 = vmatpush1.xpose.msra.mxu0 %v3954
        %4226 = vmatprep.subr.mxu0 %v3957
        %4227 = vmatpush1.xpose.msra.mxu0 %v3956
        %4228 = vmatprep.subr.mxu0 %v3959
        %4229 = vmatpush1.xpose.msra.mxu0 %v3958
        %4230 = vmatprep.subr.mxu0 %v3961
        %4231 = vmatpush1.xpose.msra.mxu0 %v3960
        %4232 = vmatprep.subr.mxu0 %v3963
        %4233 = vmatpush1.xpose.msra.mxu0 %v3962
        %4234 = vmatprep.subr.mxu0 %v3965
        %4235 = vmatpush1.xpose.msra.mxu0 %v3964
        %4236 = vmatprep.subr.mxu0 %v3967
        %4237 = vmatpush1.xpose.msra.mxu0 %v3966
        %4238 = vmatprep.subr.mxu0 %v3969
        %4239 = vmatpush1.xpose.msra.mxu0 %v3968
        %4240 = vmatprep.subr.mxu0 %v3971
        %4241 = vmatpush1.xpose.msra.mxu0 %v3970
        %4242 = vmatprep.subr.mxu0 %v3973
        %4243 = vmatpush1.xpose.msra.mxu0 %v3972
        %4244 = vmatprep.subr.mxu0 %v3975
        %4245 = vmatpush1.xpose.msra.mxu0 %v3974
        %4246 = vmatprep.subr.mxu0 %v3977
        %4247 = vmatpush1.xpose.msra.mxu0 %v3976
        %4248 = vmatprep.subr.mxu0 %v3979
        %4249 = vmatpush1.xpose.msra.mxu0 %v3978
        %4250 = vmatprep.subr.mxu0 %v3981
        %4251 = vmatpush1.xpose.msra.mxu0 %v3980
        %4252 = vmatprep.subr.mxu0 %v3983
        %4253 = vmatpush1.xpose.msra.mxu0 %v3982
        %4254 = vmatprep.subr.mxu0 %v3985
        %4255 = vmatpush1.xpose.msra.mxu0 %v3984
        %4256 = vmatprep.subr.mxu0 %v3987
        %4257 = vmatpush1.xpose.msra.mxu0 %v3986
        %4258 = vmatprep.subr.mxu0 %v3989
        %4259 = vmatpush1.xpose.msra.mxu0 %v3988
        %4260 = vmatprep.subr.mxu0 %v3991
        %4261 = vmatpush1.xpose.msra.mxu0 %v3990
        %4262 = vmatprep.subr.mxu0 %v3993
        %4263 = vmatpush1.xpose.msra.mxu0 %v3992
        %4264 = vmatprep.subr.mxu0 %v3995
        %4265 = vmatpush1.xpose.msra.mxu0 %v3994
        %4266 = vmatprep.subr.mxu0 %v3997
        %4267 = vmatpush1.xpose.msra.mxu0 %v3996
        %4268 = vmatprep.subr.mxu0 %v3999
        %4269 = vmatpush1.xpose.msra.mxu0 %v3998
        %4270 = vmatprep.subr.mxu0 %v4001
        %4271 = vmatpush1.xpose.msra.mxu0 %v4000
        %4272 = vmatprep.subr.mxu0 %v4003
        %4273 = vmatpush1.xpose.msra.mxu0 %v4002
        %4274 = vmatprep.subr.mxu0 %v4005
        %4275 = vmatpush1.xpose.msra.mxu0 %v4004
        %4276 = vmatprep.subr.mxu0 %v4007
        %4277 = vmatpush1.xpose.msra.mxu0 %v4006
        %4278 = vmatprep.subr.mxu0 %v4009
        %4279 = vmatpush1.xpose.msra.mxu0 %v4008
        %4280 = vmatprep.subr.mxu0 %v4011
        %4281 = vmatpush1.xpose.msra.mxu0 %v4010
        %4282 = vmatprep.subr.mxu0 %v4013
        %4283 = vmatpush1.xpose.msra.mxu0 %v4012
        %4284 = vmatprep.mubr.f32.mxu0 %v481
        %4285 = vmatmul.mubr.f32.gmra.mrb[0].mxu0 %v479
        %v4286 = vpop.f32.mrb[0].mxu0
        %v4287 = vadd.f32 0.0, %v4286
        %v4288 = vpop.f32.mrb[0].mxu0
        %v4289 = vadd.f32 0.0, %v4288
        %4290 = vdwg.mxu0
        %4291 = vmatprep.subr.mxu0 %v4015
        %4292 = vmatpush1.xpose.msra.mxu0 %v4014
        %4293 = vmatprep.subr.mxu0 %v4017
        %4294 = vmatpush1.xpose.msra.mxu0 %v4016
        %4295 = vmatprep.subr.mxu0 %v4019
        %4296 = vmatpush1.xpose.msra.mxu0 %v4018
        %4297 = vmatprep.subr.mxu0 %v4021
        %4298 = vmatpush1.xpose.msra.mxu0 %v4020
        %4299 = vmatprep.subr.mxu0 %v4023
        %4300 = vmatpush1.xpose.msra.mxu0 %v4022
        %4301 = vmatprep.subr.mxu0 %v4025
        %4302 = vmatpush1.xpose.msra.mxu0 %v4024
        %4303 = vmatprep.subr.mxu0 %v4027
        %4304 = vmatpush1.xpose.msra.mxu0 %v4026
        %4305 = vmatprep.subr.mxu0 %v4029
        %4306 = vmatpush1.xpose.msra.mxu0 %v4028
        %4307 = vmatprep.subr.mxu0 %v4031
        %4308 = vmatpush1.xpose.msra.mxu0 %v4030
        %4309 = vmatprep.subr.mxu0 %v4033
        %4310 = vmatpush1.xpose.msra.mxu0 %v4032
        %4311 = vmatprep.subr.mxu0 %v4035
        %4312 = vmatpush1.xpose.msra.mxu0 %v4034
        %4313 = vmatprep.subr.mxu0 %v4037
        %4314 = vmatpush1.xpose.msra.mxu0 %v4036
        %4315 = vmatprep.subr.mxu0 %v4039
        %4316 = vmatpush1.xpose.msra.mxu0 %v4038
        %4317 = vmatprep.subr.mxu0 %v4041
        %4318 = vmatpush1.xpose.msra.mxu0 %v4040
        %4319 = vmatprep.subr.mxu0 %v4043
        %4320 = vmatpush1.xpose.msra.mxu0 %v4042
        %4321 = vmatprep.subr.mxu0 %v4045
        %4322 = vmatpush1.xpose.msra.mxu0 %v4044
        %4323 = vmatprep.subr.mxu0 %v4047
        %4324 = vmatpush1.xpose.msra.mxu0 %v4046
        %4325 = vmatprep.subr.mxu0 %v4049
        %4326 = vmatpush1.xpose.msra.mxu0 %v4048
        %4327 = vmatprep.subr.mxu0 %v4051
        %4328 = vmatpush1.xpose.msra.mxu0 %v4050
        %4329 = vmatprep.subr.mxu0 %v4053
        %4330 = vmatpush1.xpose.msra.mxu0 %v4052
        %4331 = vmatprep.subr.mxu0 %v4055
        %4332 = vmatpush1.xpose.msra.mxu0 %v4054
        %4333 = vmatprep.subr.mxu0 %v4057
        %4334 = vmatpush1.xpose.msra.mxu0 %v4056
        %4335 = vmatprep.subr.mxu0 %v4059
        %4336 = vmatpush1.xpose.msra.mxu0 %v4058
        %4337 = vmatprep.subr.mxu0 %v4061
        %4338 = vmatpush1.xpose.msra.mxu0 %v4060
        %4339 = vmatprep.subr.mxu0 %v4063
        %4340 = vmatpush1.xpose.msra.mxu0 %v4062
        %4341 = vmatprep.subr.mxu0 %v4065
        %4342 = vmatpush1.xpose.msra.mxu0 %v4064
        %4343 = vmatprep.subr.mxu0 %v4067
        %4344 = vmatpush1.xpose.msra.mxu0 %v4066
        %4345 = vmatprep.subr.mxu0 %v4069
        %4346 = vmatpush1.xpose.msra.mxu0 %v4068
        %4347 = vmatprep.subr.mxu0 %v4071
        %4348 = vmatpush1.xpose.msra.mxu0 %v4070
        %4349 = vmatprep.subr.mxu0 %v4073
        %4350 = vmatpush1.xpose.msra.mxu0 %v4072
        %4351 = vmatprep.subr.mxu0 %v4075
        %4352 = vmatpush1.xpose.msra.mxu0 %v4074
        %4353 = vmatprep.subr.mxu0 %v4077
        %4354 = vmatpush1.xpose.msra.mxu0 %v4076
        %4355 = vmatprep.mubr.f32.mxu0 %v487
        %4356 = vmatmul.mubr.f32.gmra.mrb[0].mxu0 %v485
        %v4357 = vpop.f32.mrb[0].mxu0
        %v4358 = vadd.f32 0.0, %v4357
        %v4359 = vpop.f32.mrb[0].mxu0
        %v4360 = vadd.f32 0.0, %v4359
        %4361 = vdwg.mxu0
        %v4362 = vld [vmem:[%s3] sm:$0xff]
        %v4363 = vld [vmem:[%s3 + $0x8] sm:$0xff]
        %v4364 = vld [vmem:[%s3 + $0x10] sm:$0xff]
        %v4365 = vld [vmem:[%s3 + $0x18] sm:$0xff]
        %v4366 = vld [vmem:[%s4] sm:$0xff]
        %v4367 = vld [vmem:[%s4 + $0x8] sm:$0xff]
        %v4368 = vld [vmem:[%s4 + $0x10] sm:$0xff]
        %v4369 = vld [vmem:[%s4 + $0x18] sm:$0xff]
        %4371 = vset.pattern.permute.xlu0 0
        %4372 = vperm.xlu0 %4371, %v4366
        %v4373 = vpop.permute.xlu0 %4372
        %4376 = vset.pattern.permute.xlu0 0
        %4377 = vperm.xlu0 %4376, %v4367
        %v4378 = vpop.permute.xlu0 %4377
        %4381 = vset.pattern.permute.xlu0 0
        %4382 = vperm.xlu0 %4381, %v4368
        %v4383 = vpop.permute.xlu0 %4382
        %4386 = vset.pattern.permute.xlu0 0
        %4387 = vperm.xlu0 %4386, %v4369
        %v4388 = vpop.permute.xlu0 %4387
        %v4391 = vsel %vm315, %v4362, 0
        %v4394 = vsel %vm315, %v4363, 0
        %v4397 = vsel %vm315, %v4364, 0
        %v4400 = vsel %vm315, %v4365, 0
        %4402 = vmatprep.subr.mxu0 %v4147
        %4403 = vmatpush1.msra.mxu0 %v4145
        %4404 = vmatprep.subr.mxu0 %v4218
        %4405 = vmatpush1.msra.mxu0 %v4216
        %4406 = vmatprep.subr.mxu0 %v4289
        %4407 = vmatpush1.msra.mxu0 %v4287
        %4408 = vmatprep.subr.mxu0 %v4360
        %4409 = vmatpush1.msra.mxu0 %v4358
        %4410 = vmatprep.subr.mxu0 0.0
        %4411 = vmatpush1.msra.mxu0 0.0
        %4412 = vmatprep.subr.mxu0 0.0
        %4413 = vmatpush1.msra.mxu0 0.0
        %4414 = vmatprep.subr.mxu0 0.0
        %4415 = vmatpush1.msra.mxu0 0.0
        %4416 = vmatprep.subr.mxu0 0.0
        %4417 = vmatpush1.msra.mxu0 0.0
        %4418 = vmatprep.subr.mxu0 0.0
        %4419 = vmatpush1.msra.mxu0 0.0
        %4420 = vmatprep.subr.mxu0 0.0
        %4421 = vmatpush1.msra.mxu0 0.0
        %4422 = vmatprep.subr.mxu0 0.0
        %4423 = vmatpush1.msra.mxu0 0.0
        %4424 = vmatprep.subr.mxu0 0.0
        %4425 = vmatpush1.msra.mxu0 0.0
        %4426 = vmatprep.subr.mxu0 0.0
        %4427 = vmatpush1.msra.mxu0 0.0
        %4428 = vmatprep.subr.mxu0 0.0
        %4429 = vmatpush1.msra.mxu0 0.0
        %4430 = vmatprep.subr.mxu0 0.0
        %4431 = vmatpush1.msra.mxu0 0.0
        %4432 = vmatprep.subr.mxu0 0.0
        %4433 = vmatpush1.msra.mxu0 0.0
        %4434 = vmatprep.subr.mxu0 0.0
        %4435 = vmatpush1.msra.mxu0 0.0
        %4436 = vmatprep.subr.mxu0 0.0
        %4437 = vmatpush1.msra.mxu0 0.0
        %4438 = vmatprep.subr.mxu0 0.0
        %4439 = vmatpush1.msra.mxu0 0.0
        %4440 = vmatprep.subr.mxu0 0.0
        %4441 = vmatpush1.msra.mxu0 0.0
        %4442 = vmatprep.subr.mxu0 0.0
        %4443 = vmatpush1.msra.mxu0 0.0
        %4444 = vmatprep.subr.mxu0 0.0
        %4445 = vmatpush1.msra.mxu0 0.0
        %4446 = vmatprep.subr.mxu0 0.0
        %4447 = vmatpush1.msra.mxu0 0.0
        %4448 = vmatprep.subr.mxu0 0.0
        %4449 = vmatpush1.msra.mxu0 0.0
        %4450 = vmatprep.subr.mxu0 0.0
        %4451 = vmatpush1.msra.mxu0 0.0
        %4452 = vmatprep.subr.mxu0 0.0
        %4453 = vmatpush1.msra.mxu0 0.0
        %4454 = vmatprep.subr.mxu0 0.0
        %4455 = vmatpush1.msra.mxu0 0.0
        %4456 = vmatprep.subr.mxu0 0.0
        %4457 = vmatpush1.msra.mxu0 0.0
        %4458 = vmatprep.subr.mxu0 0.0
        %4459 = vmatpush1.msra.mxu0 0.0
        %4460 = vmatprep.subr.mxu0 0.0
        %4461 = vmatpush1.msra.mxu0 0.0
        %4462 = vmatprep.subr.mxu0 0.0
        %4463 = vmatpush1.msra.mxu0 0.0
        %4464 = vmatprep.subr.mxu0 0.0
        %4465 = vmatpush1.msra.mxu0 0.0
        %4466 = vmatprep.mubr.f32.mxu0 0.0
        %4467 = vmatmul.mubr.f32.gmra.mrb[0].mxu0 %v4391
        %v4468 = vpop.f32.mrb[0].mxu0
        %v4469 = vadd.f32 %v4373, %v4468
        %v4470 = vpop.f32.mrb[0].mxu0
        %v4471 = vadd.f32 %v4373, %v4470
        %4472 = vmatprep.mubr.f32.mxu0 0.0
        %4473 = vmatmul.mubr.f32.gmra.mrb[0].mxu0 %v4394
        %v4474 = vpop.f32.mrb[0].mxu0
        %v4475 = vadd.f32 %v4378, %v4474
        %v4476 = vpop.f32.mrb[0].mxu0
        %v4477 = vadd.f32 %v4378, %v4476
        %4478 = vmatprep.mubr.f32.mxu0 0.0
        %4479 = vmatmul.mubr.f32.gmra.mrb[0].mxu0 %v4397
        %v4480 = vpop.f32.mrb[0].mxu0
        %v4481 = vadd.f32 %v4383, %v4480
        %v4482 = vpop.f32.mrb[0].mxu0
        %v4483 = vadd.f32 %v4383, %v4482
        %4484 = vmatprep.mubr.f32.mxu0 0.0
        %4485 = vmatmul.mubr.f32.gmra.mrb[0].mxu0 %v4400
        %v4486 = vpop.f32.mrb[0].mxu0
        %v4487 = vadd.f32 %v4388, %v4486
        %v4488 = vpop.f32.mrb[0].mxu0
        %v4489 = vadd.f32 %v4388, %v4488
        %4490 = vdwg.mxu0
        %4491 = vst [vmem:[%s217] sm:$0xff] %v4469
        %4492 = vst [vmem:[%s217 + $0x8] sm:$0xff] %v4471
        %4493 = vst [vmem:[%s217 + $0x10] sm:$0xff] %v4475
        %4494 = vst [vmem:[%s217 + $0x18] sm:$0xff] %v4477
        %4495 = vst [vmem:[%s217 + $0x20] sm:$0xff] %v4481
        %4496 = vst [vmem:[%s217 + $0x28] sm:$0xff] %v4483
        %4497 = vst [vmem:[%s217 + $0x30] sm:$0xff] %v4487
        %4498 = vst [vmem:[%s217 + $0x38] sm:$0xff] %v4489
        %s4499 = sand.u32 %s137, 1
        %s4500 = scalar_lea.sflag [#allocation3], %s4499
        %s4501 = sand.u32 %s137, 1
        %s4502 = smul.addr %s4501, 64
        %s4503 = scalar_lea.vmem [#allocation2], %s4502
        // Predicated region
        $region41: #{tpu_custom_call.1} parent=39 // pred_check
          %p4504 = pneg %p147
        $region42: #{tpu_custom_call.1} parent=39 // pred_check_branch
          %4506 = sbr.rel (%p4504) target = $region44
        $region43: #{tpu_custom_call.1} parent=39 // pred_region
          %s4508 = ssub.s32 1024, 1024
          %4509 = vsyncadd %s4500, %s4508
          %s4510 = smul.addr %s19, 8
          %s4511 = smul.addr %s4510, 128
          %s4512 = scalar_lea.hbm %s5, %s4511
          %s4513 = sshll.u32 %s4503, 4
          %s4514 = int_to_ptr.vmem [resolvable:$true] %s4513
          %4519 = dma.vmem_to_hbm [thread:$0]  %s4514, 1024, %s4512, %s4500, 256, 256, 16
        $region44: #{tpu_custom_call.1} parent=39 // pred_fallthru
          _
      $region40: #{tpu_custom_call.1} parent=5 // pred_fallthru
        _
      %p4520 = scmp.le.s32.totalorder 2, %s14
      // Predicated region
      $region45: #{tpu_custom_call.1} parent=5 // pred_check
        %p4521 = pneg %p4520
      $region46: #{tpu_custom_call.1} parent=5 // pred_check_branch
        %4523 = sbr.rel (%p4521) target = $region48
      $region47: #{tpu_custom_call.1} parent=5 // pred_region
        %s4524 = ssub.s32 %s14, 2
        // Predicated region
        $region49: #{tpu_custom_call.1} parent=47 // pred_check
          %p4525 = pneg %p153
        $region50: #{tpu_custom_call.1} parent=47 // pred_check_branch
          %4527 = sbr.rel (%p4525) target = $region52
        $region51: #{tpu_custom_call.1} parent=47 // pred_region
          %s4528 = sand.u32 %s138, 1
          %s4529 = scalar_lea.sflag [#allocation3], %s4528
          %s4530 = sand.u32 %s138, 1
          %s4531 = smul.addr %s4530, 64
          %s4532 = scalar_lea.vmem [#allocation2], %s4531
          %4533 = dma.done %s4529, 1024
        $region52: #{tpu_custom_call.1} parent=47 // pred_fallthru
          _
      $region48: #{tpu_custom_call.1} parent=5 // pred_fallthru
        _
    $region6: #{tpu_custom_call.1} parent=1 // loop_footer
      %s18 = sadd.s32 1, %s14
    $region7: #{tpu_custom_call.1} parent=1 // loop_footer_branch
      %13 = sbr.rel target = $region3
    $region8: #{tpu_custom_call.1} parent=1 // loop_exit
      _
    %4534 = vsyncpa [#allocation3], 1
    %s4535 = scalar_lea.sflag [#allocation3], 1
    %4536 = vsyncpa %s4535, 1

</llo_original>
